<compile_context>
chip_gen: v7x
topology: tpu7x:2x2x1
jax: 0.10.0
libtpu: 0.0.40
codegen_flags: <defaults>
</compile_context>

<pallas_src>
import functools

import jax
import jax.numpy as jnp
import numpy as np
from jax.experimental import pallas as pl
from jax.experimental.pallas import tpu as pltpu


def _unet_kernel(x_ref, mask_ref, w1_ref, b1_ref, w2_ref, b2_ref,
                 w3_ref, b3_ref, w4_ref, b4_ref, o_ref, im2col_ref, *, W):
    """Fused SimpleUNet forward for the whole batch in one grid step.

    x_ref     : (Cin_pad, N*H*W)  channels on sublanes, all batch pixels on lanes
    mask_ref  : (8, N*H*W)        0/1 boundary masks, 8 off-center taps in
                                  (kh, kw) order (center skipped)
    w*_ref    : (Cout, 9*Cin) / (Cout, Cin)  packed conv weights
    b*_ref    : (Cout, 1)
    o_ref     : (1, N*H*W)        lane-dense sigmoid output
    im2col_ref: (K_max, N*H*W)    VMEM scratch for im2col assembly
    """
    nhw = x_ref.shape[1]

    def conv3x3_relu(a, w_mat, b_col):
        cin = a.shape[0]
        m_idx = 0
        t = 0
        for kh in range(3):
            for kw in range(3):
                dh, dw = kh - 1, kw - 1
                if dh == 0 and dw == 0:
                    im2col_ref[pl.ds(t * cin, cin), :] = a
                else:
                    # tap[p] = a[p + dh*W + dw], then boundary-masked.
                    shift = (-(dh * W + dw)) % nhw
                    rolled = pltpu.roll(a, shift=shift, axis=1)      # XLU
                    m = mask_ref[pl.ds(m_idx, 1), :]                 # (1, nhw)
                    im2col_ref[pl.ds(t * cin, cin), :] = rolled * m  # VPU
                    m_idx += 1
                t += 1
        im2col = im2col_ref[pl.ds(0, 9 * cin), :]                    # (9*cin, nhw)
        out = jnp.dot(w_mat, im2col,
                      preferred_element_type=jnp.float32) + b_col
        return jnp.maximum(out, 0.0)

    a0 = x_ref[...]                                                  # (8,  nhw)
    a1 = conv3x3_relu(a0, w1_ref[...], b1_ref[...])                  # (16, nhw)
    a2 = conv3x3_relu(a1, w2_ref[...], b2_ref[...])                  # (32, nhw)
    a3 = conv3x3_relu(a2, w3_ref[...], b3_ref[...])                  # (16, nhw)

    # 1x1 conv + sigmoid, lane-dense store.
    logits = jnp.dot(w4_ref[...], a3,
                     preferred_element_type=jnp.float32) + b4_ref[...]
    o_ref[...] = jax.nn.sigmoid(logits).astype(o_ref.dtype)


def _build_tap_masks(N, H, W):
    """(8, N*H*W) f32 0/1 validity masks for the 8 off-center 3x3 taps.

    Per-image coordinates (p % (H*W)) so folding the batch onto lanes is safe.
    """
    HW = H * W
    p = np.arange(N * HW)
    q = p % HW
    hq, wq = q // W, q % W
    rows = []
    for kh in range(3):
        for kw in range(3):
            dh, dw = kh - 1, kw - 1
            if dh == 0 and dw == 0:
                continue
            valid = ((wq + dw >= 0) & (wq + dw < W) &
                     (hq + dh >= 0) & (hq + dh < H))
            rows.append(valid)
    return np.stack(rows, axis=0).astype(np.float32)


def _simple_unet_forward_impl(x_nchw, pk):
    N, Cin, H, W = x_nchw.shape
    NHW = N * H * W
    cin_pad = pk["w1"].shape[1] // 9          # layer-1 Cin padded to mult of 8

    # Lane-dense layout: (Cin_pad, N*H*W), channels on sublanes.
    x_flat = jnp.transpose(x_nchw, (1, 0, 2, 3)).reshape(Cin, NHW)
    if cin_pad > Cin:
        x_flat = jnp.pad(x_flat, ((0, cin_pad - Cin), (0, 0)))

    masks = jnp.asarray(_build_tap_masks(N, H, W))    # trace-time constant

    k_max = max(pk["w1"].shape[1], pk["w2"].shape[1], pk["w3"].shape[1])
    kernel = functools.partial(_unet_kernel, W=W)

    def full(arr):  # whole-array (2-D) resident block
        return pl.BlockSpec(arr.shape, lambda i: (0, 0))

    out_flat = pl.pallas_call(
        kernel,
        out_shape=jax.ShapeDtypeStruct((1, NHW), jnp.float32),
        grid=(1,),
        in_specs=[
            full(x_flat), full(masks),
            full(pk["w1"]), full(pk["b1"]),
            full(pk["w2"]), full(pk["b2"]),
            full(pk["w3"]), full(pk["b3"]),
            full(pk["w4"]), full(pk["b4"]),
        ],
        out_specs=pl.BlockSpec((1, NHW), lambda i: (0, 0)),
        scratch_shapes=[pltpu.VMEM((k_max, NHW), jnp.float32)],
        compiler_params=pltpu.CompilerParams(
            dimension_semantics=("arbitrary",)),
    )(x_flat, masks, pk["w1"], pk["b1"], pk["w2"], pk["b2"],
      pk["w3"], pk["b3"], pk["w4"], pk["b4"])

    # (1, N*H*W) -> (N, 1, H, W): free row-major reshape.
    return out_flat.reshape(N, 1, H, W)


simple_unet_forward = jax.jit(_simple_unet_forward_impl)


def init_params(key, in_channels=6, out_channels=1):
    """PyTorch-layout params: weight (Cout, Cin, kh, kw), bias (Cout,)."""
    def conv_param(k, cout, cin, ksz):
        k1, k2 = jax.random.split(k)
        bound = 1.0 / float(np.sqrt(cin * ksz * ksz))
        w = jax.random.uniform(k1, (cout, cin, ksz, ksz), jnp.float32,
                               -bound, bound)
        b = jax.random.uniform(k2, (cout,), jnp.float32, -bound, bound)
        return w, b

    ks = jax.random.split(key, 4)
    p = {}
    p["w1"], p["b1"] = conv_param(ks[0], 16, in_channels, 3)
    p["w2"], p["b2"] = conv_param(ks[1], 32, 16, 3)
    p["w3"], p["b3"] = conv_param(ks[2], 16, 32, 3)
    p["w4"], p["b4"] = conv_param(ks[3], out_channels, 16, 1)
    return p


def pack_params(params):
    """(Cout, Cin, kh, kw) -> (Cout, kh*kw*Cin) matmul weight; bias -> (Cout, 1).

    K ordering is (kh, kw, cin), matching the kernel's im2col tap order.
    Layer 1's Cin is zero-padded to a multiple of 8 for sublane alignment.
    """
    def w_mat(w, cin_pad=None):
        cout, cin, kh, kw = w.shape
        if cin_pad is not None and cin_pad > cin:
            w = jnp.pad(w, ((0, 0), (0, cin_pad - cin), (0, 0), (0, 0)))
            cin = cin_pad
        return jnp.transpose(w, (0, 2, 3, 1)).reshape(cout, kh * kw * cin)

    cin1 = params["w1"].shape[1]
    cin1_pad = max(8, -(-cin1 // 8) * 8)
    pk = {
        "w1": w_mat(params["w1"], cin1_pad),
        "w2": w_mat(params["w2"]),
        "w3": w_mat(params["w3"]),
        "w4": w_mat(params["w4"]),
    }
    for i in range(1, 5):
        pk[f"b{i}"] = params[f"b{i}"].reshape(-1, 1)
    return pk


def _reference_forward(x, params):
    """Pure-JAX (XLA) reference with the PyTorch module's exact semantics."""
    def conv(h, w, b, pad):
        y = jax.lax.conv_general_dilated(
            h, w, window_strides=(1, 1), padding=[(pad, pad), (pad, pad)],
            dimension_numbers=("NCHW", "OIHW", "NCHW"))
        return y + b.reshape(1, -1, 1, 1)

    h = jax.nn.relu(conv(x, params["w1"], params["b1"], 1))
    h = jax.nn.relu(conv(h, params["w2"], params["b2"], 1))
    h = jax.nn.relu(conv(h, params["w3"], params["b3"], 1))
    return jax.nn.sigmoid(conv(h, params["w4"], params["b4"], 0))


if __name__ == "__main__":
    key = jax.random.PRNGKey(0)
    k_x, k_p = jax.random.split(key)

    # batch=2, in_channels=6, 16x16 spatial (consistent with the module spec).
    x = jax.random.normal(k_x, (2, 6, 16, 16), dtype=jnp.float32)
    params = init_params(k_p, in_channels=6, out_channels=1)
    packed = pack_params(params)

    out = simple_unet_forward(x, packed)
    out = jax.block_until_ready(out)

    assert out.shape == (2, 1, 16, 16), out.shape
    assert out.dtype == jnp.float32
    assert bool(jnp.all((out >= 0.0) & (out <= 1.0)))  # sigmoid range

    ref = _reference_forward(x, params)
    max_err = float(jnp.max(jnp.abs(out - ref)))
    assert bool(jnp.allclose(out, ref, atol=1e-4, rtol=1e-4)), max_err

    print("KERNEL_OK")
</pallas_src>

<mosaic_0001>
module attributes {stable_mosaic.version = 11 : i64} {
  func.func @_unet_kernel(%arg0: i32, %arg1: memref<8x512xf32, #tpu.memory_space<vmem>>, %arg2: memref<8x512xf32, #tpu.memory_space<vmem>>, %arg3: memref<16x72xf32, #tpu.memory_space<vmem>>, %arg4: memref<16x1xf32, #tpu.memory_space<vmem>>, %arg5: memref<32x144xf32, #tpu.memory_space<vmem>>, %arg6: memref<32x1xf32, #tpu.memory_space<vmem>>, %arg7: memref<16x288xf32, #tpu.memory_space<vmem>>, %arg8: memref<16x1xf32, #tpu.memory_space<vmem>>, %arg9: memref<1x16xf32, #tpu.memory_space<vmem>>, %arg10: memref<1x1xf32, #tpu.memory_space<vmem>>, %arg11: memref<1x512xf32, #tpu.memory_space<vmem>>, %arg12: memref<288x512xf32, #tpu.memory_space<vmem>>) attributes {dimension_semantics = [#tpu.dimension_semantics<arbitrary>], iteration_bounds = array<i64: 1>, scalar_prefetch = 0 : i64, scratch_operands = 1 : i64, tpu.core_type = #tpu.core_type<tc>, window_params = [{pipeline_mode = #tpu.pipeline_mode<synchronous>, transform_indices = @transform_0, window_bounds = array<i64: 8, 512>}, {pipeline_mode = #tpu.pipeline_mode<synchronous>, transform_indices = @transform_1, window_bounds = array<i64: 8, 512>}, {pipeline_mode = #tpu.pipeline_mode<synchronous>, transform_indices = @transform_2, window_bounds = array<i64: 16, 72>}, {pipeline_mode = #tpu.pipeline_mode<synchronous>, transform_indices = @transform_3, window_bounds = array<i64: 16, 1>}, {pipeline_mode = #tpu.pipeline_mode<synchronous>, transform_indices = @transform_4, window_bounds = array<i64: 32, 144>}, {pipeline_mode = #tpu.pipeline_mode<synchronous>, transform_indices = @transform_5, window_bounds = array<i64: 32, 1>}, {pipeline_mode = #tpu.pipeline_mode<synchronous>, transform_indices = @transform_6, window_bounds = array<i64: 16, 288>}, {pipeline_mode = #tpu.pipeline_mode<synchronous>, transform_indices = @transform_7, window_bounds = array<i64: 16, 1>}, {pipeline_mode = #tpu.pipeline_mode<synchronous>, transform_indices = @transform_8, window_bounds = array<i64: 1, 16>}, {pipeline_mode = #tpu.pipeline_mode<synchronous>, transform_indices = @transform_9, window_bounds = array<i64: 1, 1>}, {pipeline_mode = #tpu.pipeline_mode<synchronous>, transform_indices = @transform_10, window_bounds = array<i64: 1, 512>}]} {
    %c0 = arith.constant 0 : index
    %c0_0 = arith.constant 0 : index
    %0 = vector.load %arg1[%c0, %c0_0] : memref<8x512xf32, #tpu.memory_space<vmem>>, vector<8x512xf32>
    %c0_1 = arith.constant 0 : index
    %c0_2 = arith.constant 0 : index
    %1 = vector.load %arg3[%c0_1, %c0_2] : memref<16x72xf32, #tpu.memory_space<vmem>>, vector<16x72xf32>
    %c0_3 = arith.constant 0 : index
    %c0_4 = arith.constant 0 : index
    %2 = vector.load %arg4[%c0_3, %c0_4] : memref<16x1xf32, #tpu.memory_space<vmem>>, vector<16x1xf32>
    %c17_i32 = arith.constant 17 : i32
    %3 = tpu.dynamic_rotate %0 by %c17_i32 dim 1 : vector<8x512xf32>, i32 -> vector<8x512xf32>
    %c0_5 = arith.constant 0 : index
    %c0_6 = arith.constant 0 : index
    %4 = vector.load %arg2[%c0_5, %c0_6] : memref<8x512xf32, #tpu.memory_space<vmem>>, vector<1x512xf32>
    %5 = vector.broadcast %4 : vector<1x512xf32> to vector<8x512xf32>
    %6 = arith.mulf %3, %5 : vector<8x512xf32>
    %c0_7 = arith.constant 0 : index
    %c0_8 = arith.constant 0 : index
    %7 = vector.load %arg12[%c0_7, %c0_8] : memref<288x512xf32, #tpu.memory_space<vmem>>, vector<8x512xf32>
    tpu.vector_store %arg12[%c0_7, %c0_8], %6 {strides = array<i32>} : memref<288x512xf32, #tpu.memory_space<vmem>>, vector<8x512xf32>,
    %c16_i32 = arith.constant 16 : i32
    %8 = tpu.dynamic_rotate %0 by %c16_i32 dim 1 : vector<8x512xf32>, i32 -> vector<8x512xf32>
    %c1 = arith.constant 1 : index
    %c0_9 = arith.constant 0 : index
    %9 = vector.load %arg2[%c1, %c0_9] : memref<8x512xf32, #tpu.memory_space<vmem>>, vector<1x512xf32>
    %10 = vector.broadcast %9 : vector<1x512xf32> to vector<8x512xf32>
    %11 = arith.mulf %8, %10 : vector<8x512xf32>
    %c8 = arith.constant 8 : index
    %c0_10 = arith.constant 0 : index
    %12 = vector.load %arg12[%c8, %c0_10] : memref<288x512xf32, #tpu.memory_space<vmem>>, vector<8x512xf32>
    tpu.vector_store %arg12[%c8, %c0_10], %11 {strides = array<i32>} : memref<288x512xf32, #tpu.memory_space<vmem>>, vector<8x512xf32>,
    %c15_i32 = arith.constant 15 : i32
    %13 = tpu.dynamic_rotate %0 by %c15_i32 dim 1 : vector<8x512xf32>, i32 -> vector<8x512xf32>
    %c2 = arith.constant 2 : index
    %c0_11 = arith.constant 0 : index
    %14 = vector.load %arg2[%c2, %c0_11] : memref<8x512xf32, #tpu.memory_space<vmem>>, vector<1x512xf32>
    %15 = vector.broadcast %14 : vector<1x512xf32> to vector<8x512xf32>
    %16 = arith.mulf %13, %15 : vector<8x512xf32>
    %c16 = arith.constant 16 : index
    %c0_12 = arith.constant 0 : index
    %17 = vector.load %arg12[%c16, %c0_12] : memref<288x512xf32, #tpu.memory_space<vmem>>, vector<8x512xf32>
    tpu.vector_store %arg12[%c16, %c0_12], %16 {strides = array<i32>} : memref<288x512xf32, #tpu.memory_space<vmem>>, vector<8x512xf32>,
    %c1_i32 = arith.constant 1 : i32
    %18 = tpu.dynamic_rotate %0 by %c1_i32 dim 1 : vector<8x512xf32>, i32 -> vector<8x512xf32>
    %c3 = arith.constant 3 : index
    %c0_13 = arith.constant 0 : index
    %19 = vector.load %arg2[%c3, %c0_13] : memref<8x512xf32, #tpu.memory_space<vmem>>, vector<1x512xf32>
    %20 = vector.broadcast %19 : vector<1x512xf32> to vector<8x512xf32>
    %21 = arith.mulf %18, %20 : vector<8x512xf32>
    %c24 = arith.constant 24 : index
    %c0_14 = arith.constant 0 : index
    %22 = vector.load %arg12[%c24, %c0_14] : memref<288x512xf32, #tpu.memory_space<vmem>>, vector<8x512xf32>
    tpu.vector_store %arg12[%c24, %c0_14], %21 {strides = array<i32>} : memref<288x512xf32, #tpu.memory_space<vmem>>, vector<8x512xf32>,
    %c32 = arith.constant 32 : index
    %c0_15 = arith.constant 0 : index
    %23 = vector.load %arg12[%c32, %c0_15] : memref<288x512xf32, #tpu.memory_space<vmem>>, vector<8x512xf32>
    tpu.vector_store %arg12[%c32, %c0_15], %0 {strides = array<i32>} : memref<288x512xf32, #tpu.memory_space<vmem>>, vector<8x512xf32>,
    %c511_i32 = arith.constant 511 : i32
    %24 = tpu.dynamic_rotate %0 by %c511_i32 dim 1 : vector<8x512xf32>, i32 -> vector<8x512xf32>
    %c4 = arith.constant 4 : index
    %c0_16 = arith.constant 0 : index
    %25 = vector.load %arg2[%c4, %c0_16] : memref<8x512xf32, #tpu.memory_space<vmem>>, vector<1x512xf32>
    %26 = vector.broadcast %25 : vector<1x512xf32> to vector<8x512xf32>
    %27 = arith.mulf %24, %26 : vector<8x512xf32>
    %c40 = arith.constant 40 : index
    %c0_17 = arith.constant 0 : index
    %28 = vector.load %arg12[%c40, %c0_17] : memref<288x512xf32, #tpu.memory_space<vmem>>, vector<8x512xf32>
    tpu.vector_store %arg12[%c40, %c0_17], %27 {strides = array<i32>} : memref<288x512xf32, #tpu.memory_space<vmem>>, vector<8x512xf32>,
    %c497_i32 = arith.constant 497 : i32
    %29 = tpu.dynamic_rotate %0 by %c497_i32 dim 1 : vector<8x512xf32>, i32 -> vector<8x512xf32>
    %c5 = arith.constant 5 : index
    %c0_18 = arith.constant 0 : index
    %30 = vector.load %arg2[%c5, %c0_18] : memref<8x512xf32, #tpu.memory_space<vmem>>, vector<1x512xf32>
    %31 = vector.broadcast %30 : vector<1x512xf32> to vector<8x512xf32>
    %32 = arith.mulf %29, %31 : vector<8x512xf32>
    %c48 = arith.constant 48 : index
    %c0_19 = arith.constant 0 : index
    %33 = vector.load %arg12[%c48, %c0_19] : memref<288x512xf32, #tpu.memory_space<vmem>>, vector<8x512xf32>
    tpu.vector_store %arg12[%c48, %c0_19], %32 {strides = array<i32>} : memref<288x512xf32, #tpu.memory_space<vmem>>, vector<8x512xf32>,
    %c496_i32 = arith.constant 496 : i32
    %34 = tpu.dynamic_rotate %0 by %c496_i32 dim 1 : vector<8x512xf32>, i32 -> vector<8x512xf32>
    %c6 = arith.constant 6 : index
    %c0_20 = arith.constant 0 : index
    %35 = vector.load %arg2[%c6, %c0_20] : memref<8x512xf32, #tpu.memory_space<vmem>>, vector<1x512xf32>
    %36 = vector.broadcast %35 : vector<1x512xf32> to vector<8x512xf32>
    %37 = arith.mulf %34, %36 : vector<8x512xf32>
    %c56 = arith.constant 56 : index
    %c0_21 = arith.constant 0 : index
    %38 = vector.load %arg12[%c56, %c0_21] : memref<288x512xf32, #tpu.memory_space<vmem>>, vector<8x512xf32>
    tpu.vector_store %arg12[%c56, %c0_21], %37 {strides = array<i32>} : memref<288x512xf32, #tpu.memory_space<vmem>>, vector<8x512xf32>,
    %c495_i32 = arith.constant 495 : i32
    %39 = tpu.dynamic_rotate %0 by %c495_i32 dim 1 : vector<8x512xf32>, i32 -> vector<8x512xf32>
    %c7 = arith.constant 7 : index
    %c0_22 = arith.constant 0 : index
    %40 = vector.load %arg2[%c7, %c0_22] : memref<8x512xf32, #tpu.memory_space<vmem>>, vector<1x512xf32>
    %41 = vector.broadcast %40 : vector<1x512xf32> to vector<8x512xf32>
    %42 = arith.mulf %39, %41 : vector<8x512xf32>
    %c64 = arith.constant 64 : index
    %c0_23 = arith.constant 0 : index
    %43 = vector.load %arg12[%c64, %c0_23] : memref<288x512xf32, #tpu.memory_space<vmem>>, vector<8x512xf32>
    tpu.vector_store %arg12[%c64, %c0_23], %42 {strides = array<i32>} : memref<288x512xf32, #tpu.memory_space<vmem>>, vector<8x512xf32>,
    %c0_24 = arith.constant 0 : index
    %c0_25 = arith.constant 0 : index
    %44 = vector.load %arg12[%c0_24, %c0_25] : memref<288x512xf32, #tpu.memory_space<vmem>>, vector<72x512xf32>
    %cst = arith.constant dense<0.000000e+00> : vector<16x512xf32>
    %45 = tpu.matmul %1, %44, %cst {dimension_numbers = #tpu.dot_dimension_numbers<[1], [0], [0], [1], [0, 0, 1, 1], [], []>} : vector<16x72xf32>, vector<72x512xf32>, vector<16x512xf32> -> vector<16x512xf32>
    %46 = vector.broadcast %2 : vector<16x1xf32> to vector<16x512xf32>
    %47 = arith.addf %45, %46 : vector<16x512xf32>
    %cst_26 = arith.constant 0.000000e+00 : f32
    %48 = vector.broadcast %cst_26 : f32 to vector<16x512xf32>
    %49 = arith.maximumf %47, %48 : vector<16x512xf32>
    %c0_27 = arith.constant 0 : index
    %c0_28 = arith.constant 0 : index
    %50 = vector.load %arg5[%c0_27, %c0_28] : memref<32x144xf32, #tpu.memory_space<vmem>>, vector<32x144xf32>
    %c0_29 = arith.constant 0 : index
    %c0_30 = arith.constant 0 : index
    %51 = vector.load %arg6[%c0_29, %c0_30] : memref<32x1xf32, #tpu.memory_space<vmem>>, vector<32x1xf32>
    %c17_i32_31 = arith.constant 17 : i32
    %52 = tpu.dynamic_rotate %49 by %c17_i32_31 dim 1 : vector<16x512xf32>, i32 -> vector<16x512xf32>
    %c0_32 = arith.constant 0 : index
    %c0_33 = arith.constant 0 : index
    %53 = vector.load %arg2[%c0_32, %c0_33] : memref<8x512xf32, #tpu.memory_space<vmem>>, vector<1x512xf32>
    %54 = vector.broadcast %53 : vector<1x512xf32> to vector<16x512xf32>
    %55 = arith.mulf %52, %54 : vector<16x512xf32>
    %c0_34 = arith.constant 0 : index
    %c0_35 = arith.constant 0 : index
    %56 = vector.load %arg12[%c0_34, %c0_35] : memref<288x512xf32, #tpu.memory_space<vmem>>, vector<16x512xf32>
    tpu.vector_store %arg12[%c0_34, %c0_35], %55 {strides = array<i32>} : memref<288x512xf32, #tpu.memory_space<vmem>>, vector<16x512xf32>,
    %c16_i32_36 = arith.constant 16 : i32
    %57 = tpu.dynamic_rotate %49 by %c16_i32_36 dim 1 : vector<16x512xf32>, i32 -> vector<16x512xf32>
    %c1_37 = arith.constant 1 : index
    %c0_38 = arith.constant 0 : index
    %58 = vector.load %arg2[%c1_37, %c0_38] : memref<8x512xf32, #tpu.memory_space<vmem>>, vector<1x512xf32>
    %59 = vector.broadcast %58 : vector<1x512xf32> to vector<16x512xf32>
    %60 = arith.mulf %57, %59 : vector<16x512xf32>
    %c16_39 = arith.constant 16 : index
    %c0_40 = arith.constant 0 : index
    %61 = vector.load %arg12[%c16_39, %c0_40] : memref<288x512xf32, #tpu.memory_space<vmem>>, vector<16x512xf32>
    tpu.vector_store %arg12[%c16_39, %c0_40], %60 {strides = array<i32>} : memref<288x512xf32, #tpu.memory_space<vmem>>, vector<16x512xf32>,
    %c15_i32_41 = arith.constant 15 : i32
    %62 = tpu.dynamic_rotate %49 by %c15_i32_41 dim 1 : vector<16x512xf32>, i32 -> vector<16x512xf32>
    %c2_42 = arith.constant 2 : index
    %c0_43 = arith.constant 0 : index
    %63 = vector.load %arg2[%c2_42, %c0_43] : memref<8x512xf32, #tpu.memory_space<vmem>>, vector<1x512xf32>
    %64 = vector.broadcast %63 : vector<1x512xf32> to vector<16x512xf32>
    %65 = arith.mulf %62, %64 : vector<16x512xf32>
    %c32_44 = arith.constant 32 : index
    %c0_45 = arith.constant 0 : index
    %66 = vector.load %arg12[%c32_44, %c0_45] : memref<288x512xf32, #tpu.memory_space<vmem>>, vector<16x512xf32>
    tpu.vector_store %arg12[%c32_44, %c0_45], %65 {strides = array<i32>} : memref<288x512xf32, #tpu.memory_space<vmem>>, vector<16x512xf32>,
    %c1_i32_46 = arith.constant 1 : i32
    %67 = tpu.dynamic_rotate %49 by %c1_i32_46 dim 1 : vector<16x512xf32>, i32 -> vector<16x512xf32>
    %c3_47 = arith.constant 3 : index
    %c0_48 = arith.constant 0 : index
    %68 = vector.load %arg2[%c3_47, %c0_48] : memref<8x512xf32, #tpu.memory_space<vmem>>, vector<1x512xf32>
    %69 = vector.broadcast %68 : vector<1x512xf32> to vector<16x512xf32>
    %70 = arith.mulf %67, %69 : vector<16x512xf32>
    %c48_49 = arith.constant 48 : index
    %c0_50 = arith.constant 0 : index
    %71 = vector.load %arg12[%c48_49, %c0_50] : memref<288x512xf32, #tpu.memory_space<vmem>>, vector<16x512xf32>
    tpu.vector_store %arg12[%c48_49, %c0_50], %70 {strides = array<i32>} : memref<288x512xf32, #tpu.memory_space<vmem>>, vector<16x512xf32>,
    %c64_51 = arith.constant 64 : index
    %c0_52 = arith.constant 0 : index
    %72 = vector.load %arg12[%c64_51, %c0_52] : memref<288x512xf32, #tpu.memory_space<vmem>>, vector<16x512xf32>
    tpu.vector_store %arg12[%c64_51, %c0_52], %49 {strides = array<i32>} : memref<288x512xf32, #tpu.memory_space<vmem>>, vector<16x512xf32>,
    %c511_i32_53 = arith.constant 511 : i32
    %73 = tpu.dynamic_rotate %49 by %c511_i32_53 dim 1 : vector<16x512xf32>, i32 -> vector<16x512xf32>
    %c4_54 = arith.constant 4 : index
    %c0_55 = arith.constant 0 : index
    %74 = vector.load %arg2[%c4_54, %c0_55] : memref<8x512xf32, #tpu.memory_space<vmem>>, vector<1x512xf32>
    %75 = vector.broadcast %74 : vector<1x512xf32> to vector<16x512xf32>
    %76 = arith.mulf %73, %75 : vector<16x512xf32>
    %c80 = arith.constant 80 : index
    %c0_56 = arith.constant 0 : index
    %77 = vector.load %arg12[%c80, %c0_56] : memref<288x512xf32, #tpu.memory_space<vmem>>, vector<16x512xf32>
    tpu.vector_store %arg12[%c80, %c0_56], %76 {strides = array<i32>} : memref<288x512xf32, #tpu.memory_space<vmem>>, vector<16x512xf32>,
    %c497_i32_57 = arith.constant 497 : i32
    %78 = tpu.dynamic_rotate %49 by %c497_i32_57 dim 1 : vector<16x512xf32>, i32 -> vector<16x512xf32>
    %c5_58 = arith.constant 5 : index
    %c0_59 = arith.constant 0 : index
    %79 = vector.load %arg2[%c5_58, %c0_59] : memref<8x512xf32, #tpu.memory_space<vmem>>, vector<1x512xf32>
    %80 = vector.broadcast %79 : vector<1x512xf32> to vector<16x512xf32>
    %81 = arith.mulf %78, %80 : vector<16x512xf32>
    %c96 = arith.constant 96 : index
    %c0_60 = arith.constant 0 : index
    %82 = vector.load %arg12[%c96, %c0_60] : memref<288x512xf32, #tpu.memory_space<vmem>>, vector<16x512xf32>
    tpu.vector_store %arg12[%c96, %c0_60], %81 {strides = array<i32>} : memref<288x512xf32, #tpu.memory_space<vmem>>, vector<16x512xf32>,
    %c496_i32_61 = arith.constant 496 : i32
    %83 = tpu.dynamic_rotate %49 by %c496_i32_61 dim 1 : vector<16x512xf32>, i32 -> vector<16x512xf32>
    %c6_62 = arith.constant 6 : index
    %c0_63 = arith.constant 0 : index
    %84 = vector.load %arg2[%c6_62, %c0_63] : memref<8x512xf32, #tpu.memory_space<vmem>>, vector<1x512xf32>
    %85 = vector.broadcast %84 : vector<1x512xf32> to vector<16x512xf32>
    %86 = arith.mulf %83, %85 : vector<16x512xf32>
    %c112 = arith.constant 112 : index
    %c0_64 = arith.constant 0 : index
    %87 = vector.load %arg12[%c112, %c0_64] : memref<288x512xf32, #tpu.memory_space<vmem>>, vector<16x512xf32>
    tpu.vector_store %arg12[%c112, %c0_64], %86 {strides = array<i32>} : memref<288x512xf32, #tpu.memory_space<vmem>>, vector<16x512xf32>,
    %c495_i32_65 = arith.constant 495 : i32
    %88 = tpu.dynamic_rotate %49 by %c495_i32_65 dim 1 : vector<16x512xf32>, i32 -> vector<16x512xf32>
    %c7_66 = arith.constant 7 : index
    %c0_67 = arith.constant 0 : index
    %89 = vector.load %arg2[%c7_66, %c0_67] : memref<8x512xf32, #tpu.memory_space<vmem>>, vector<1x512xf32>
    %90 = vector.broadcast %89 : vector<1x512xf32> to vector<16x512xf32>
    %91 = arith.mulf %88, %90 : vector<16x512xf32>
    %c128 = arith.constant 128 : index
    %c0_68 = arith.constant 0 : index
    %92 = vector.load %arg12[%c128, %c0_68] : memref<288x512xf32, #tpu.memory_space<vmem>>, vector<16x512xf32>
    tpu.vector_store %arg12[%c128, %c0_68], %91 {strides = array<i32>} : memref<288x512xf32, #tpu.memory_space<vmem>>, vector<16x512xf32>,
    %c0_69 = arith.constant 0 : index
    %c0_70 = arith.constant 0 : index
    %93 = vector.load %arg12[%c0_69, %c0_70] : memref<288x512xf32, #tpu.memory_space<vmem>>, vector<144x512xf32>
    %cst_71 = arith.constant dense<0.000000e+00> : vector<32x512xf32>
    %94 = tpu.matmul %50, %93, %cst_71 {dimension_numbers = #tpu.dot_dimension_numbers<[1], [0], [0], [1], [0, 0, 1, 1], [], []>} : vector<32x144xf32>, vector<144x512xf32>, vector<32x512xf32> -> vector<32x512xf32>
    %95 = vector.broadcast %51 : vector<32x1xf32> to vector<32x512xf32>
    %96 = arith.addf %94, %95 : vector<32x512xf32>
    %cst_72 = arith.constant 0.000000e+00 : f32
    %97 = vector.broadcast %cst_72 : f32 to vector<32x512xf32>
    %98 = arith.maximumf %96, %97 : vector<32x512xf32>
    %c0_73 = arith.constant 0 : index
    %c0_74 = arith.constant 0 : index
    %99 = vector.load %arg7[%c0_73, %c0_74] : memref<16x288xf32, #tpu.memory_space<vmem>>, vector<16x288xf32>
    %c0_75 = arith.constant 0 : index
    %c0_76 = arith.constant 0 : index
    %100 = vector.load %arg8[%c0_75, %c0_76] : memref<16x1xf32, #tpu.memory_space<vmem>>, vector<16x1xf32>
    %c17_i32_77 = arith.constant 17 : i32
    %101 = tpu.dynamic_rotate %98 by %c17_i32_77 dim 1 : vector<32x512xf32>, i32 -> vector<32x512xf32>
    %c0_78 = arith.constant 0 : index
    %c0_79 = arith.constant 0 : index
    %102 = vector.load %arg2[%c0_78, %c0_79] : memref<8x512xf32, #tpu.memory_space<vmem>>, vector<1x512xf32>
    %103 = vector.broadcast %102 : vector<1x512xf32> to vector<32x512xf32>
    %104 = arith.mulf %101, %103 : vector<32x512xf32>
    %c0_80 = arith.constant 0 : index
    %c0_81 = arith.constant 0 : index
    %105 = vector.load %arg12[%c0_80, %c0_81] : memref<288x512xf32, #tpu.memory_space<vmem>>, vector<32x512xf32>
    tpu.vector_store %arg12[%c0_80, %c0_81], %104 {strides = array<i32>} : memref<288x512xf32, #tpu.memory_space<vmem>>, vector<32x512xf32>,
    %c16_i32_82 = arith.constant 16 : i32
    %106 = tpu.dynamic_rotate %98 by %c16_i32_82 dim 1 : vector<32x512xf32>, i32 -> vector<32x512xf32>
    %c1_83 = arith.constant 1 : index
    %c0_84 = arith.constant 0 : index
    %107 = vector.load %arg2[%c1_83, %c0_84] : memref<8x512xf32, #tpu.memory_space<vmem>>, vector<1x512xf32>
    %108 = vector.broadcast %107 : vector<1x512xf32> to vector<32x512xf32>
    %109 = arith.mulf %106, %108 : vector<32x512xf32>
    %c32_85 = arith.constant 32 : index
    %c0_86 = arith.constant 0 : index
    %110 = vector.load %arg12[%c32_85, %c0_86] : memref<288x512xf32, #tpu.memory_space<vmem>>, vector<32x512xf32>
    tpu.vector_store %arg12[%c32_85, %c0_86], %109 {strides = array<i32>} : memref<288x512xf32, #tpu.memory_space<vmem>>, vector<32x512xf32>,
    %c15_i32_87 = arith.constant 15 : i32
    %111 = tpu.dynamic_rotate %98 by %c15_i32_87 dim 1 : vector<32x512xf32>, i32 -> vector<32x512xf32>
    %c2_88 = arith.constant 2 : index
    %c0_89 = arith.constant 0 : index
    %112 = vector.load %arg2[%c2_88, %c0_89] : memref<8x512xf32, #tpu.memory_space<vmem>>, vector<1x512xf32>
    %113 = vector.broadcast %112 : vector<1x512xf32> to vector<32x512xf32>
    %114 = arith.mulf %111, %113 : vector<32x512xf32>
    %c64_90 = arith.constant 64 : index
    %c0_91 = arith.constant 0 : index
    %115 = vector.load %arg12[%c64_90, %c0_91] : memref<288x512xf32, #tpu.memory_space<vmem>>, vector<32x512xf32>
    tpu.vector_store %arg12[%c64_90, %c0_91], %114 {strides = array<i32>} : memref<288x512xf32, #tpu.memory_space<vmem>>, vector<32x512xf32>,
    %c1_i32_92 = arith.constant 1 : i32
    %116 = tpu.dynamic_rotate %98 by %c1_i32_92 dim 1 : vector<32x512xf32>, i32 -> vector<32x512xf32>
    %c3_93 = arith.constant 3 : index
    %c0_94 = arith.constant 0 : index
    %117 = vector.load %arg2[%c3_93, %c0_94] : memref<8x512xf32, #tpu.memory_space<vmem>>, vector<1x512xf32>
    %118 = vector.broadcast %117 : vector<1x512xf32> to vector<32x512xf32>
    %119 = arith.mulf %116, %118 : vector<32x512xf32>
    %c96_95 = arith.constant 96 : index
    %c0_96 = arith.constant 0 : index
    %120 = vector.load %arg12[%c96_95, %c0_96] : memref<288x512xf32, #tpu.memory_space<vmem>>, vector<32x512xf32>
    tpu.vector_store %arg12[%c96_95, %c0_96], %119 {strides = array<i32>} : memref<288x512xf32, #tpu.memory_space<vmem>>, vector<32x512xf32>,
    %c128_97 = arith.constant 128 : index
    %c0_98 = arith.constant 0 : index
    %121 = vector.load %arg12[%c128_97, %c0_98] : memref<288x512xf32, #tpu.memory_space<vmem>>, vector<32x512xf32>
    tpu.vector_store %arg12[%c128_97, %c0_98], %98 {strides = array<i32>} : memref<288x512xf32, #tpu.memory_space<vmem>>, vector<32x512xf32>,
    %c511_i32_99 = arith.constant 511 : i32
    %122 = tpu.dynamic_rotate %98 by %c511_i32_99 dim 1 : vector<32x512xf32>, i32 -> vector<32x512xf32>
    %c4_100 = arith.constant 4 : index
    %c0_101 = arith.constant 0 : index
    %123 = vector.load %arg2[%c4_100, %c0_101] : memref<8x512xf32, #tpu.memory_space<vmem>>, vector<1x512xf32>
    %124 = vector.broadcast %123 : vector<1x512xf32> to vector<32x512xf32>
    %125 = arith.mulf %122, %124 : vector<32x512xf32>
    %c160 = arith.constant 160 : index
    %c0_102 = arith.constant 0 : index
    %126 = vector.load %arg12[%c160, %c0_102] : memref<288x512xf32, #tpu.memory_space<vmem>>, vector<32x512xf32>
    tpu.vector_store %arg12[%c160, %c0_102], %125 {strides = array<i32>} : memref<288x512xf32, #tpu.memory_space<vmem>>, vector<32x512xf32>,
    %c497_i32_103 = arith.constant 497 : i32
    %127 = tpu.dynamic_rotate %98 by %c497_i32_103 dim 1 : vector<32x512xf32>, i32 -> vector<32x512xf32>
    %c5_104 = arith.constant 5 : index
    %c0_105 = arith.constant 0 : index
    %128 = vector.load %arg2[%c5_104, %c0_105] : memref<8x512xf32, #tpu.memory_space<vmem>>, vector<1x512xf32>
    %129 = vector.broadcast %128 : vector<1x512xf32> to vector<32x512xf32>
    %130 = arith.mulf %127, %129 : vector<32x512xf32>
    %c192 = arith.constant 192 : index
    %c0_106 = arith.constant 0 : index
    %131 = vector.load %arg12[%c192, %c0_106] : memref<288x512xf32, #tpu.memory_space<vmem>>, vector<32x512xf32>
    tpu.vector_store %arg12[%c192, %c0_106], %130 {strides = array<i32>} : memref<288x512xf32, #tpu.memory_space<vmem>>, vector<32x512xf32>,
    %c496_i32_107 = arith.constant 496 : i32
    %132 = tpu.dynamic_rotate %98 by %c496_i32_107 dim 1 : vector<32x512xf32>, i32 -> vector<32x512xf32>
    %c6_108 = arith.constant 6 : index
    %c0_109 = arith.constant 0 : index
    %133 = vector.load %arg2[%c6_108, %c0_109] : memref<8x512xf32, #tpu.memory_space<vmem>>, vector<1x512xf32>
    %134 = vector.broadcast %133 : vector<1x512xf32> to vector<32x512xf32>
    %135 = arith.mulf %132, %134 : vector<32x512xf32>
    %c224 = arith.constant 224 : index
    %c0_110 = arith.constant 0 : index
    %136 = vector.load %arg12[%c224, %c0_110] : memref<288x512xf32, #tpu.memory_space<vmem>>, vector<32x512xf32>
    tpu.vector_store %arg12[%c224, %c0_110], %135 {strides = array<i32>} : memref<288x512xf32, #tpu.memory_space<vmem>>, vector<32x512xf32>,
    %c495_i32_111 = arith.constant 495 : i32
    %137 = tpu.dynamic_rotate %98 by %c495_i32_111 dim 1 : vector<32x512xf32>, i32 -> vector<32x512xf32>
    %c7_112 = arith.constant 7 : index
    %c0_113 = arith.constant 0 : index
    %138 = vector.load %arg2[%c7_112, %c0_113] : memref<8x512xf32, #tpu.memory_space<vmem>>, vector<1x512xf32>
    %139 = vector.broadcast %138 : vector<1x512xf32> to vector<32x512xf32>
    %140 = arith.mulf %137, %139 : vector<32x512xf32>
    %c256 = arith.constant 256 : index
    %c0_114 = arith.constant 0 : index
    %141 = vector.load %arg12[%c256, %c0_114] : memref<288x512xf32, #tpu.memory_space<vmem>>, vector<32x512xf32>
    tpu.vector_store %arg12[%c256, %c0_114], %140 {strides = array<i32>} : memref<288x512xf32, #tpu.memory_space<vmem>>, vector<32x512xf32>,
    %c0_115 = arith.constant 0 : index
    %c0_116 = arith.constant 0 : index
    %142 = vector.load %arg12[%c0_115, %c0_116] : memref<288x512xf32, #tpu.memory_space<vmem>>, vector<288x512xf32>
    %cst_117 = arith.constant dense<0.000000e+00> : vector<16x512xf32>
    %143 = tpu.matmul %99, %142, %cst_117 {dimension_numbers = #tpu.dot_dimension_numbers<[1], [0], [0], [1], [0, 0, 1, 1], [], []>} : vector<16x288xf32>, vector<288x512xf32>, vector<16x512xf32> -> vector<16x512xf32>
    %144 = vector.broadcast %100 : vector<16x1xf32> to vector<16x512xf32>
    %145 = arith.addf %143, %144 : vector<16x512xf32>
    %cst_118 = arith.constant 0.000000e+00 : f32
    %146 = vector.broadcast %cst_118 : f32 to vector<16x512xf32>
    %147 = arith.maximumf %145, %146 : vector<16x512xf32>
    %c0_119 = arith.constant 0 : index
    %c0_120 = arith.constant 0 : index
    %148 = vector.load %arg9[%c0_119, %c0_120] : memref<1x16xf32, #tpu.memory_space<vmem>>, vector<1x16xf32>
    %cst_121 = arith.constant dense<0.000000e+00> : vector<1x512xf32>
    %149 = tpu.matmul %148, %147, %cst_121 {dimension_numbers = #tpu.dot_dimension_numbers<[1], [0], [0], [1], [0, 0, 1, 1], [], []>} : vector<1x16xf32>, vector<16x512xf32>, vector<1x512xf32> -> vector<1x512xf32>
    %c0_122 = arith.constant 0 : index
    %c0_123 = arith.constant 0 : index
    %150 = vector.load %arg10[%c0_122, %c0_123] : memref<1x1xf32, #tpu.memory_space<vmem>>, vector<1x1xf32>
    %151 = vector.broadcast %150 : vector<1x1xf32> to vector<1x512xf32>
    %152 = arith.addf %149, %151 : vector<1x512xf32>
    %153 = arith.negf %152 : vector<1x512xf32>
    %154 = math.exp %153 : vector<1x512xf32>
    %cst_124 = arith.constant 1.000000e+00 : f32
    %155 = vector.broadcast %cst_124 : f32 to vector<1x512xf32>
    %156 = arith.addf %155, %154 : vector<1x512xf32>
    %157 = arith.divf %155, %156 : vector<1x512xf32>
    %c0_125 = arith.constant 0 : index
    %c0_126 = arith.constant 0 : index
    %158 = vector.load %arg11[%c0_125, %c0_126] : memref<1x512xf32, #tpu.memory_space<vmem>>, vector<1x512xf32>
    tpu.vector_store %arg11[%c0_125, %c0_126], %157 {strides = array<i32>} : memref<1x512xf32, #tpu.memory_space<vmem>>, vector<1x512xf32>,
    return
  }
  func.func @transform_0(%arg0: i32) -> (i32, i32) {
    %c0_i32 = arith.constant 0 : i32
    %c0_i32_0 = arith.constant 0 : i32
    %c0_i32_1 = arith.constant 0 : i32
    return %c0_i32, %c0_i32_0 : i32, i32
  }
  func.func @transform_1(%arg0: i32) -> (i32, i32) {
    %c0_i32 = arith.constant 0 : i32
    %c0_i32_0 = arith.constant 0 : i32
    %c0_i32_1 = arith.constant 0 : i32
    return %c0_i32, %c0_i32_0 : i32, i32
  }
  func.func @transform_2(%arg0: i32) -> (i32, i32) {
    %c0_i32 = arith.constant 0 : i32
    %c0_i32_0 = arith.constant 0 : i32
    %c0_i32_1 = arith.constant 0 : i32
    return %c0_i32, %c0_i32_0 : i32, i32
  }
  func.func @transform_3(%arg0: i32) -> (i32, i32) {
    %c0_i32 = arith.constant 0 : i32
    %c0_i32_0 = arith.constant 0 : i32
    %c0_i32_1 = arith.constant 0 : i32
    return %c0_i32, %c0_i32_0 : i32, i32
  }
  func.func @transform_4(%arg0: i32) -> (i32, i32) {
    %c0_i32 = arith.constant 0 : i32
    %c0_i32_0 = arith.constant 0 : i32
    %c0_i32_1 = arith.constant 0 : i32
    return %c0_i32, %c0_i32_0 : i32, i32
  }
  func.func @transform_5(%arg0: i32) -> (i32, i32) {
    %c0_i32 = arith.constant 0 : i32
    %c0_i32_0 = arith.constant 0 : i32
    %c0_i32_1 = arith.constant 0 : i32
    return %c0_i32, %c0_i32_0 : i32, i32
  }
  func.func @transform_6(%arg0: i32) -> (i32, i32) {
    %c0_i32 = arith.constant 0 : i32
    %c0_i32_0 = arith.constant 0 : i32
    %c0_i32_1 = arith.constant 0 : i32
    return %c0_i32, %c0_i32_0 : i32, i32
  }
  func.func @transform_7(%arg0: i32) -> (i32, i32) {
    %c0_i32 = arith.constant 0 : i32
    %c0_i32_0 = arith.constant 0 : i32
    %c0_i32_1 = arith.constant 0 : i32
    return %c0_i32, %c0_i32_0 : i32, i32
  }
  func.func @transform_8(%arg0: i32) -> (i32, i32) {
    %c0_i32 = arith.constant 0 : i32
    %c0_i32_0 = arith.constant 0 : i32
    %c0_i32_1 = arith.constant 0 : i32
    return %c0_i32, %c0_i32_0 : i32, i32
  }
  func.func @transform_9(%arg0: i32) -> (i32, i32) {
    %c0_i32 = arith.constant 0 : i32
    %c0_i32_0 = arith.constant 0 : i32
    %c0_i32_1 = arith.constant 0 : i32
    return %c0_i32, %c0_i32_0 : i32, i32
  }
  func.func @transform_10(%arg0: i32) -> (i32, i32) {
    %c0_i32 = arith.constant 0 : i32
    %c0_i32_0 = arith.constant 0 : i32
    %c0_i32_1 = arith.constant 0 : i32
    return %c0_i32, %c0_i32_0 : i32, i32
  }
}

</mosaic_0001>

<llo_original>
// kernel: _simple_unet_forward_impl.1
$region0: #{_simple_unet_forward_impl.1}
  #allocation0 [shape = 'u32[]', space=smem, size = 0x4, offset = 0x4, fixed_abs, tag = 'smem constant byte address 0x4 - core index']
  #allocation1 [shape = 'u32[144,128]{1,0:T(1,128)}', space=vmem, size = 0x12000, scoped, tag = 'internal scratch']
  #allocation2 [shape = 'f32[288,512]{1,0:T(8,128)}', space=vmem, size = 0x90000, scoped, tag = 'scratch operand']
  #allocation3 [shape = 'f32[1,1]{1,0:T(1,128)S(1)}', space=vmem, size = 0x200, scoped, tag = 'scoped memory for _simple_unet_forward_impl.1']
  %s0 = inlined_call_operand.vmem [shape: f32[8,512], index: 0, kind: input, shape index: {}]
  %s1 = inlined_call_operand.vmem [shape: f32[8,512], index: 1, kind: input, shape index: {}]
  %s2 = inlined_call_operand.vmem [shape: f32[16,72], index: 2, kind: input, shape index: {}]
  %s3 = inlined_call_operand.vmem [shape: f32[16,1], index: 3, kind: input, shape index: {}]
  %s4 = inlined_call_operand.vmem [shape: f32[32,144], index: 4, kind: input, shape index: {}]
  %s5 = inlined_call_operand.vmem [shape: f32[32,1], index: 5, kind: input, shape index: {}]
  %s6 = inlined_call_operand.vmem [shape: f32[16,288], index: 6, kind: input, shape index: {}]
  %s7 = inlined_call_operand.vmem [shape: f32[16,1], index: 7, kind: input, shape index: {}]
  %s8 = inlined_call_operand.vmem [shape: f32[1,16], index: 8, kind: input, shape index: {}]
  %s9 = inlined_call_operand.<no memory space> [shape: f32[1,1], index: 9, kind: input, shape index: {}]
  %s10 = inlined_call_operand.vmem [shape: f32[1,512], index: 10, kind: output, shape index: {}]
  %s11 = sld [smem:[#allocation0]]
  $region50: #{_simple_unet_forward_impl.1} parent=0
    _
  %s13 = ssub.s32 1, %s11
  %s14 = scalar_select 0, %s13, %s11
  %v15 = vstv %s9
  %16 = vst [vmem:[#allocation3] sm:$0x1] %v15
  // Predicated region
  $region2: #{_simple_unet_forward_impl.1} parent=0 // pred_check
    _
  $region3: #{_simple_unet_forward_impl.1} parent=0 // pred_check_branch
    %18 = sbr.rel (0) target = $region5
  $region4: #{_simple_unet_forward_impl.1} parent=0 // pred_region
    _
  $region5: #{_simple_unet_forward_impl.1} parent=0 // pred_fallthru
    _
  // Predicated region
  $region6: #{_simple_unet_forward_impl.1} parent=0 // pred_check
    _
  $region7: #{_simple_unet_forward_impl.1} parent=0 // pred_check_branch
    %20 = sbr.rel (0) target = $region9
  $region8: #{_simple_unet_forward_impl.1} parent=0 // pred_region
    _
  $region9: #{_simple_unet_forward_impl.1} parent=0 // pred_fallthru
    _
  // Predicated region
  $region10: #{_simple_unet_forward_impl.1} parent=0 // pred_check
    _
  $region11: #{_simple_unet_forward_impl.1} parent=0 // pred_check_branch
    %22 = sbr.rel (0) target = $region13
  $region12: #{_simple_unet_forward_impl.1} parent=0 // pred_region
    _
  $region13: #{_simple_unet_forward_impl.1} parent=0 // pred_fallthru
    _
  // Predicated region
  $region14: #{_simple_unet_forward_impl.1} parent=0 // pred_check
    _
  $region15: #{_simple_unet_forward_impl.1} parent=0 // pred_check_branch
    %24 = sbr.rel (0) target = $region17
  $region16: #{_simple_unet_forward_impl.1} parent=0 // pred_region
    _
  $region17: #{_simple_unet_forward_impl.1} parent=0 // pred_fallthru
    _
  // Predicated region
  $region18: #{_simple_unet_forward_impl.1} parent=0 // pred_check
    _
  $region19: #{_simple_unet_forward_impl.1} parent=0 // pred_check_branch
    %26 = sbr.rel (0) target = $region21
  $region20: #{_simple_unet_forward_impl.1} parent=0 // pred_region
    _
  $region21: #{_simple_unet_forward_impl.1} parent=0 // pred_fallthru
    _
  // Predicated region
  $region22: #{_simple_unet_forward_impl.1} parent=0 // pred_check
    _
  $region23: #{_simple_unet_forward_impl.1} parent=0 // pred_check_branch
    %28 = sbr.rel (0) target = $region25
  $region24: #{_simple_unet_forward_impl.1} parent=0 // pred_region
    _
  $region25: #{_simple_unet_forward_impl.1} parent=0 // pred_fallthru
    _
  // Predicated region
  $region26: #{_simple_unet_forward_impl.1} parent=0 // pred_check
    _
  $region27: #{_simple_unet_forward_impl.1} parent=0 // pred_check_branch
    %30 = sbr.rel (0) target = $region29
  $region28: #{_simple_unet_forward_impl.1} parent=0 // pred_region
    _
  $region29: #{_simple_unet_forward_impl.1} parent=0 // pred_fallthru
    _
  // Predicated region
  $region30: #{_simple_unet_forward_impl.1} parent=0 // pred_check
    _
  $region31: #{_simple_unet_forward_impl.1} parent=0 // pred_check_branch
    %32 = sbr.rel (0) target = $region33
  $region32: #{_simple_unet_forward_impl.1} parent=0 // pred_region
    _
  $region33: #{_simple_unet_forward_impl.1} parent=0 // pred_fallthru
    _
  // Predicated region
  $region34: #{_simple_unet_forward_impl.1} parent=0 // pred_check
    _
  $region35: #{_simple_unet_forward_impl.1} parent=0 // pred_check_branch
    %34 = sbr.rel (0) target = $region37
  $region36: #{_simple_unet_forward_impl.1} parent=0 // pred_region
    _
  $region37: #{_simple_unet_forward_impl.1} parent=0 // pred_fallthru
    _
  // Predicated region
  $region38: #{_simple_unet_forward_impl.1} parent=0 // pred_check
    _
  $region39: #{_simple_unet_forward_impl.1} parent=0 // pred_check_branch
    %36 = sbr.rel (0) target = $region41
  $region40: #{_simple_unet_forward_impl.1} parent=0 // pred_region
    _
  $region41: #{_simple_unet_forward_impl.1} parent=0 // pred_fallthru
    _
  %v37 = vld [vmem:[%s0] sm:$0xff]
  %v38 = vld [vmem:[%s0 + $0x8] sm:$0xff]
  %v39 = vld [vmem:[%s0 + $0x10] sm:$0xff]
  %v40 = vld [vmem:[%s0 + $0x18] sm:$0xff]
  %v41 = vld [vmem:[%s2] sm:$0xff]
  %v42 = vld [vmem:[%s2 + $0x8] sm:$0xff]
  %v43 = vld [vmem:[%s3] sm:$0xff]
  %v44 = vld [vmem:[%s3 + $0x8] sm:$0xff]
  %45 = vrot.lane.b32.xlu0 %v37, 17
  %v46 = vpop.permute.xlu0 %45
  %47 = vrot.lane.b32.xlu0 %v38, 17
  %v48 = vpop.permute.xlu0 %47
  %49 = vrot.lane.b32.xlu0 %v39, 17
  %v50 = vpop.permute.xlu0 %49
  %51 = vrot.lane.b32.xlu0 %v40, 17
  %v52 = vpop.permute.xlu0 %51
  %v53 = vlaneseq
  %v54 = vand.u32 %v53, 127
  %vm55 = vcmp.lt.s32.totalorder %v54, 17
  %v56 = vsel %vm55, %v50, %v52
  %v57 = vsel %vm55, %v48, %v50
  %v58 = vsel %vm55, %v46, %v48
  %v59 = vsel %vm55, %v52, %v46
  %v60 = vld [vmem:[%s1] ss:$8 sm:$0xf]
  %v62 = vlaneseq
  %v63 = vshrl.u32 %v62, 7
  %v64 = vsub.s32 0, %v63
  %v65 = vrot.slane %v60, %v64
  %v66 = vlaneseq
  %v67 = vshrl.u32 %v66, 7
  %v68 = vsub.s32 1, %v67
  %v69 = vrot.slane %v60, %v68
  %v70 = vlaneseq
  %v71 = vshrl.u32 %v70, 7
  %v72 = vsub.s32 2, %v71
  %v73 = vrot.slane %v60, %v72
  %v74 = vlaneseq
  %v75 = vshrl.u32 %v74, 7
  %v76 = vsub.s32 3, %v75
  %v77 = vrot.slane %v60, %v76
  %v82 = vmul.f32 %v59, %v65
  %v83 = vmul.f32 %v58, %v69
  %v84 = vmul.f32 %v57, %v73
  %v85 = vmul.f32 %v56, %v77
  %86 = vst [vmem:[#allocation2] sm:$0xff] %v82
  %87 = vst [vmem:[#allocation2 + $0x8] sm:$0xff] %v83
  %88 = vst [vmem:[#allocation2 + $0x10] sm:$0xff] %v84
  %89 = vst [vmem:[#allocation2 + $0x18] sm:$0xff] %v85
  %90 = vrot.lane.b32.xlu0 %v37, 16
  %v91 = vpop.permute.xlu0 %90
  %92 = vrot.lane.b32.xlu0 %v38, 16
  %v93 = vpop.permute.xlu0 %92
  %94 = vrot.lane.b32.xlu0 %v39, 16
  %v95 = vpop.permute.xlu0 %94
  %96 = vrot.lane.b32.xlu0 %v40, 16
  %v97 = vpop.permute.xlu0 %96
  %vm98 = vcmp.lt.s32.totalorder %v54, 16
  %v99 = vsel %vm98, %v95, %v97
  %v100 = vsel %vm98, %v93, %v95
  %v101 = vsel %vm98, %v91, %v93
  %v102 = vsel %vm98, %v97, %v91
  %s103 = scalar_lea.vmem %s1, 1
  %v104 = vld [vmem:[%s103] ss:$8 sm:$0xf]
  %v106 = vlaneseq
  %v107 = vshrl.u32 %v106, 7
  %v108 = vsub.s32 0, %v107
  %v109 = vrot.slane %v104, %v108
  %v110 = vlaneseq
  %v111 = vshrl.u32 %v110, 7
  %v112 = vsub.s32 1, %v111
  %v113 = vrot.slane %v104, %v112
  %v114 = vlaneseq
  %v115 = vshrl.u32 %v114, 7
  %v116 = vsub.s32 2, %v115
  %v117 = vrot.slane %v104, %v116
  %v118 = vlaneseq
  %v119 = vshrl.u32 %v118, 7
  %v120 = vsub.s32 3, %v119
  %v121 = vrot.slane %v104, %v120
  %v126 = vmul.f32 %v102, %v109
  %v127 = vmul.f32 %v101, %v113
  %v128 = vmul.f32 %v100, %v117
  %v129 = vmul.f32 %v99, %v121
  %130 = vst [vmem:[#allocation2 + $0x20] sm:$0xff] %v126
  %131 = vst [vmem:[#allocation2 + $0x28] sm:$0xff] %v127
  %132 = vst [vmem:[#allocation2 + $0x30] sm:$0xff] %v128
  %133 = vst [vmem:[#allocation2 + $0x38] sm:$0xff] %v129
  %134 = vrot.lane.b32.xlu0 %v37, 15
  %v135 = vpop.permute.xlu0 %134
  %136 = vrot.lane.b32.xlu0 %v38, 15
  %v137 = vpop.permute.xlu0 %136
  %138 = vrot.lane.b32.xlu0 %v39, 15
  %v139 = vpop.permute.xlu0 %138
  %140 = vrot.lane.b32.xlu0 %v40, 15
  %v141 = vpop.permute.xlu0 %140
  %vm142 = vcmp.lt.s32.totalorder %v54, 15
  %v143 = vsel %vm142, %v139, %v141
  %v144 = vsel %vm142, %v137, %v139
  %v145 = vsel %vm142, %v135, %v137
  %v146 = vsel %vm142, %v141, %v135
  %s147 = scalar_lea.vmem %s1, 2
  %v148 = vld [vmem:[%s147] ss:$8 sm:$0xf]
  %v150 = vlaneseq
  %v151 = vshrl.u32 %v150, 7
  %v152 = vsub.s32 0, %v151
  %v153 = vrot.slane %v148, %v152
  %v154 = vlaneseq
  %v155 = vshrl.u32 %v154, 7
  %v156 = vsub.s32 1, %v155
  %v157 = vrot.slane %v148, %v156
  %v158 = vlaneseq
  %v159 = vshrl.u32 %v158, 7
  %v160 = vsub.s32 2, %v159
  %v161 = vrot.slane %v148, %v160
  %v162 = vlaneseq
  %v163 = vshrl.u32 %v162, 7
  %v164 = vsub.s32 3, %v163
  %v165 = vrot.slane %v148, %v164
  %v170 = vmul.f32 %v146, %v153
  %v171 = vmul.f32 %v145, %v157
  %v172 = vmul.f32 %v144, %v161
  %v173 = vmul.f32 %v143, %v165
  %174 = vst [vmem:[#allocation2 + $0x40] sm:$0xff] %v170
  %175 = vst [vmem:[#allocation2 + $0x48] sm:$0xff] %v171
  %176 = vst [vmem:[#allocation2 + $0x50] sm:$0xff] %v172
  %177 = vst [vmem:[#allocation2 + $0x58] sm:$0xff] %v173
  %178 = vrot.lane.b32.xlu0 %v37, 1
  %v179 = vpop.permute.xlu0 %178
  %180 = vrot.lane.b32.xlu0 %v38, 1
  %v181 = vpop.permute.xlu0 %180
  %182 = vrot.lane.b32.xlu0 %v39, 1
  %v183 = vpop.permute.xlu0 %182
  %184 = vrot.lane.b32.xlu0 %v40, 1
  %v185 = vpop.permute.xlu0 %184
  %vm186 = vcmp.lt.s32.totalorder %v54, 1
  %v187 = vsel %vm186, %v183, %v185
  %v188 = vsel %vm186, %v181, %v183
  %v189 = vsel %vm186, %v179, %v181
  %v190 = vsel %vm186, %v185, %v179
  %s191 = scalar_lea.vmem %s1, 3
  %v192 = vld [vmem:[%s191] ss:$8 sm:$0xf]
  %v194 = vlaneseq
  %v195 = vshrl.u32 %v194, 7
  %v196 = vsub.s32 0, %v195
  %v197 = vrot.slane %v192, %v196
  %v198 = vlaneseq
  %v199 = vshrl.u32 %v198, 7
  %v200 = vsub.s32 1, %v199
  %v201 = vrot.slane %v192, %v200
  %v202 = vlaneseq
  %v203 = vshrl.u32 %v202, 7
  %v204 = vsub.s32 2, %v203
  %v205 = vrot.slane %v192, %v204
  %v206 = vlaneseq
  %v207 = vshrl.u32 %v206, 7
  %v208 = vsub.s32 3, %v207
  %v209 = vrot.slane %v192, %v208
  %v214 = vmul.f32 %v190, %v197
  %v215 = vmul.f32 %v189, %v201
  %v216 = vmul.f32 %v188, %v205
  %v217 = vmul.f32 %v187, %v209
  %218 = vst [vmem:[#allocation2 + $0x60] sm:$0xff] %v214
  %219 = vst [vmem:[#allocation2 + $0x68] sm:$0xff] %v215
  %220 = vst [vmem:[#allocation2 + $0x70] sm:$0xff] %v216
  %221 = vst [vmem:[#allocation2 + $0x78] sm:$0xff] %v217
  %222 = vst [vmem:[#allocation2 + $0x80] sm:$0xff] %v37
  %223 = vst [vmem:[#allocation2 + $0x88] sm:$0xff] %v38
  %224 = vst [vmem:[#allocation2 + $0x90] sm:$0xff] %v39
  %225 = vst [vmem:[#allocation2 + $0x98] sm:$0xff] %v40
  %226 = vrot.lane.b32.xlu0 %v37, 127
  %v227 = vpop.permute.xlu0 %226
  %228 = vrot.lane.b32.xlu0 %v38, 127
  %v229 = vpop.permute.xlu0 %228
  %230 = vrot.lane.b32.xlu0 %v39, 127
  %v231 = vpop.permute.xlu0 %230
  %232 = vrot.lane.b32.xlu0 %v40, 127
  %v233 = vpop.permute.xlu0 %232
  %vm234 = vcmp.lt.s32.totalorder %v54, 127
  %v235 = vsel %vm234, %v231, %v233
  %v236 = vsel %vm234, %v229, %v231
  %v237 = vsel %vm234, %v227, %v229
  %v238 = vsel %vm234, %v233, %v227
  %s239 = scalar_lea.vmem %s1, 4
  %v240 = vld [vmem:[%s239] ss:$8 sm:$0xf]
  %v242 = vlaneseq
  %v243 = vshrl.u32 %v242, 7
  %v244 = vsub.s32 0, %v243
  %v245 = vrot.slane %v240, %v244
  %v246 = vlaneseq
  %v247 = vshrl.u32 %v246, 7
  %v248 = vsub.s32 1, %v247
  %v249 = vrot.slane %v240, %v248
  %v250 = vlaneseq
  %v251 = vshrl.u32 %v250, 7
  %v252 = vsub.s32 2, %v251
  %v253 = vrot.slane %v240, %v252
  %v254 = vlaneseq
  %v255 = vshrl.u32 %v254, 7
  %v256 = vsub.s32 3, %v255
  %v257 = vrot.slane %v240, %v256
  %v262 = vmul.f32 %v237, %v245
  %v263 = vmul.f32 %v236, %v249
  %v264 = vmul.f32 %v235, %v253
  %v265 = vmul.f32 %v238, %v257
  %266 = vst [vmem:[#allocation2 + $0xa0] sm:$0xff] %v262
  %267 = vst [vmem:[#allocation2 + $0xa8] sm:$0xff] %v263
  %268 = vst [vmem:[#allocation2 + $0xb0] sm:$0xff] %v264
  %269 = vst [vmem:[#allocation2 + $0xb8] sm:$0xff] %v265
  %270 = vrot.lane.b32.xlu0 %v37, 113
  %v271 = vpop.permute.xlu0 %270
  %272 = vrot.lane.b32.xlu0 %v38, 113
  %v273 = vpop.permute.xlu0 %272
  %274 = vrot.lane.b32.xlu0 %v39, 113
  %v275 = vpop.permute.xlu0 %274
  %276 = vrot.lane.b32.xlu0 %v40, 113
  %v277 = vpop.permute.xlu0 %276
  %vm278 = vcmp.lt.s32.totalorder %v54, 113
  %v279 = vsel %vm278, %v275, %v277
  %v280 = vsel %vm278, %v273, %v275
  %v281 = vsel %vm278, %v271, %v273
  %v282 = vsel %vm278, %v277, %v271
  %s283 = scalar_lea.vmem %s1, 5
  %v284 = vld [vmem:[%s283] ss:$8 sm:$0xf]
  %v286 = vlaneseq
  %v287 = vshrl.u32 %v286, 7
  %v288 = vsub.s32 0, %v287
  %v289 = vrot.slane %v284, %v288
  %v290 = vlaneseq
  %v291 = vshrl.u32 %v290, 7
  %v292 = vsub.s32 1, %v291
  %v293 = vrot.slane %v284, %v292
  %v294 = vlaneseq
  %v295 = vshrl.u32 %v294, 7
  %v296 = vsub.s32 2, %v295
  %v297 = vrot.slane %v284, %v296
  %v298 = vlaneseq
  %v299 = vshrl.u32 %v298, 7
  %v300 = vsub.s32 3, %v299
  %v301 = vrot.slane %v284, %v300
  %v306 = vmul.f32 %v281, %v289
  %v307 = vmul.f32 %v280, %v293
  %v308 = vmul.f32 %v279, %v297
  %v309 = vmul.f32 %v282, %v301
  %310 = vst [vmem:[#allocation2 + $0xc0] sm:$0xff] %v306
  %311 = vst [vmem:[#allocation2 + $0xc8] sm:$0xff] %v307
  %312 = vst [vmem:[#allocation2 + $0xd0] sm:$0xff] %v308
  %313 = vst [vmem:[#allocation2 + $0xd8] sm:$0xff] %v309
  %314 = vrot.lane.b32.xlu0 %v37, 112
  %v315 = vpop.permute.xlu0 %314
  %316 = vrot.lane.b32.xlu0 %v38, 112
  %v317 = vpop.permute.xlu0 %316
  %318 = vrot.lane.b32.xlu0 %v39, 112
  %v319 = vpop.permute.xlu0 %318
  %320 = vrot.lane.b32.xlu0 %v40, 112
  %v321 = vpop.permute.xlu0 %320
  %vm322 = vcmp.lt.s32.totalorder %v54, 112
  %v323 = vsel %vm322, %v319, %v321
  %v324 = vsel %vm322, %v317, %v319
  %v325 = vsel %vm322, %v315, %v317
  %v326 = vsel %vm322, %v321, %v315
  %s327 = scalar_lea.vmem %s1, 6
  %v328 = vld [vmem:[%s327] ss:$8 sm:$0xf]
  %v330 = vlaneseq
  %v331 = vshrl.u32 %v330, 7
  %v332 = vsub.s32 0, %v331
  %v333 = vrot.slane %v328, %v332
  %v334 = vlaneseq
  %v335 = vshrl.u32 %v334, 7
  %v336 = vsub.s32 1, %v335
  %v337 = vrot.slane %v328, %v336
  %v338 = vlaneseq
  %v339 = vshrl.u32 %v338, 7
  %v340 = vsub.s32 2, %v339
  %v341 = vrot.slane %v328, %v340
  %v342 = vlaneseq
  %v343 = vshrl.u32 %v342, 7
  %v344 = vsub.s32 3, %v343
  %v345 = vrot.slane %v328, %v344
  %v350 = vmul.f32 %v325, %v333
  %v351 = vmul.f32 %v324, %v337
  %v352 = vmul.f32 %v323, %v341
  %v353 = vmul.f32 %v326, %v345
  %354 = vst [vmem:[#allocation2 + $0xe0] sm:$0xff] %v350
  %355 = vst [vmem:[#allocation2 + $0xe8] sm:$0xff] %v351
  %356 = vst [vmem:[#allocation2 + $0xf0] sm:$0xff] %v352
  %357 = vst [vmem:[#allocation2 + $0xf8] sm:$0xff] %v353
  %358 = vrot.lane.b32.xlu0 %v37, 111
  %v359 = vpop.permute.xlu0 %358
  %360 = vrot.lane.b32.xlu0 %v38, 111
  %v361 = vpop.permute.xlu0 %360
  %362 = vrot.lane.b32.xlu0 %v39, 111
  %v363 = vpop.permute.xlu0 %362
  %364 = vrot.lane.b32.xlu0 %v40, 111
  %v365 = vpop.permute.xlu0 %364
  %vm366 = vcmp.lt.s32.totalorder %v54, 111
  %v367 = vsel %vm366, %v363, %v365
  %v368 = vsel %vm366, %v361, %v363
  %v369 = vsel %vm366, %v359, %v361
  %v370 = vsel %vm366, %v365, %v359
  %s371 = scalar_lea.vmem %s1, 7
  %v372 = vld [vmem:[%s371] ss:$8 sm:$0xf]
  %v374 = vlaneseq
  %v375 = vshrl.u32 %v374, 7
  %v376 = vsub.s32 0, %v375
  %v377 = vrot.slane %v372, %v376
  %v378 = vlaneseq
  %v379 = vshrl.u32 %v378, 7
  %v380 = vsub.s32 1, %v379
  %v381 = vrot.slane %v372, %v380
  %v382 = vlaneseq
  %v383 = vshrl.u32 %v382, 7
  %v384 = vsub.s32 2, %v383
  %v385 = vrot.slane %v372, %v384
  %v386 = vlaneseq
  %v387 = vshrl.u32 %v386, 7
  %v388 = vsub.s32 3, %v387
  %v389 = vrot.slane %v372, %v388
  %v394 = vmul.f32 %v369, %v377
  %v395 = vmul.f32 %v368, %v381
  %v396 = vmul.f32 %v367, %v385
  %v397 = vmul.f32 %v370, %v389
  %398 = vst [vmem:[#allocation2 + $0x100] sm:$0xff] %v394
  %399 = vst [vmem:[#allocation2 + $0x108] sm:$0xff] %v395
  %400 = vst [vmem:[#allocation2 + $0x110] sm:$0xff] %v396
  %401 = vst [vmem:[#allocation2 + $0x118] sm:$0xff] %v397
  %v402 = vld [vmem:[#allocation2] sm:$0xff]
  %v403 = vld [vmem:[#allocation2 + $0x8] sm:$0xff]
  %v404 = vld [vmem:[#allocation2 + $0x10] sm:$0xff]
  %v405 = vld [vmem:[#allocation2 + $0x18] sm:$0xff]
  %v406 = vld [vmem:[#allocation2 + $0x20] sm:$0xff]
  %v407 = vld [vmem:[#allocation2 + $0x28] sm:$0xff]
  %v408 = vld [vmem:[#allocation2 + $0x30] sm:$0xff]
  %v409 = vld [vmem:[#allocation2 + $0x38] sm:$0xff]
  %v410 = vld [vmem:[#allocation2 + $0x40] sm:$0xff]
  %v411 = vld [vmem:[#allocation2 + $0x48] sm:$0xff]
  %v412 = vld [vmem:[#allocation2 + $0x50] sm:$0xff]
  %v413 = vld [vmem:[#allocation2 + $0x58] sm:$0xff]
  %v414 = vld [vmem:[#allocation2 + $0x60] sm:$0xff]
  %v415 = vld [vmem:[#allocation2 + $0x68] sm:$0xff]
  %v416 = vld [vmem:[#allocation2 + $0x70] sm:$0xff]
  %v417 = vld [vmem:[#allocation2 + $0x78] sm:$0xff]
  %v418 = vld [vmem:[#allocation2 + $0x80] sm:$0xff]
  %v419 = vld [vmem:[#allocation2 + $0x88] sm:$0xff]
  %v420 = vld [vmem:[#allocation2 + $0x90] sm:$0xff]
  %v421 = vld [vmem:[#allocation2 + $0x98] sm:$0xff]
  %v422 = vld [vmem:[#allocation2 + $0xa0] sm:$0xff]
  %v423 = vld [vmem:[#allocation2 + $0xa8] sm:$0xff]
  %v424 = vld [vmem:[#allocation2 + $0xb0] sm:$0xff]
  %v425 = vld [vmem:[#allocation2 + $0xb8] sm:$0xff]
  %v426 = vld [vmem:[#allocation2 + $0xc0] sm:$0xff]
  %v427 = vld [vmem:[#allocation2 + $0xc8] sm:$0xff]
  %v428 = vld [vmem:[#allocation2 + $0xd0] sm:$0xff]
  %v429 = vld [vmem:[#allocation2 + $0xd8] sm:$0xff]
  %v430 = vld [vmem:[#allocation2 + $0xe0] sm:$0xff]
  %v431 = vld [vmem:[#allocation2 + $0xe8] sm:$0xff]
  %v432 = vld [vmem:[#allocation2 + $0xf0] sm:$0xff]
  %v433 = vld [vmem:[#allocation2 + $0xf8] sm:$0xff]
  %v434 = vld [vmem:[#allocation2 + $0x100] sm:$0xff]
  %v435 = vld [vmem:[#allocation2 + $0x108] sm:$0xff]
  %v436 = vld [vmem:[#allocation2 + $0x110] sm:$0xff]
  %v437 = vld [vmem:[#allocation2 + $0x118] sm:$0xff]
  %439 = vset.pattern.permute.xlu0 0
  %440 = vperm.xlu0 %439, %v43
  %v441 = vpop.permute.xlu0 %440
  %444 = vset.pattern.permute.xlu0 0
  %445 = vperm.xlu0 %444, %v44
  %v446 = vpop.permute.xlu0 %445
  %vm448 = vcmask 588800
  %v450 = vsel %vm448, %v41, 0
  %v453 = vsel %vm448, %v42, 0
  %455 = vmatprep.subr.mxu0 %v403
  %456 = vmatpush1.msra.mxu0 %v402
  %457 = vmatprep.subr.mxu0 %v407
  %458 = vmatpush1.msra.mxu0 %v406
  %459 = vmatprep.subr.mxu0 %v411
  %460 = vmatpush1.msra.mxu0 %v410
  %461 = vmatprep.subr.mxu0 %v415
  %462 = vmatpush1.msra.mxu0 %v414
  %463 = vmatprep.subr.mxu0 %v419
  %464 = vmatpush1.msra.mxu0 %v418
  %465 = vmatprep.subr.mxu0 %v423
  %466 = vmatpush1.msra.mxu0 %v422
  %467 = vmatprep.subr.mxu0 %v427
  %468 = vmatpush1.msra.mxu0 %v426
  %469 = vmatprep.subr.mxu0 %v431
  %470 = vmatpush1.msra.mxu0 %v430
  %471 = vmatprep.subr.mxu0 %v435
  %472 = vmatpush1.msra.mxu0 %v434
  %473 = vmatprep.subr.mxu0 0.0
  %474 = vmatpush1.msra.mxu0 0.0
  %475 = vmatprep.subr.mxu0 0.0
  %476 = vmatpush1.msra.mxu0 0.0
  %477 = vmatprep.subr.mxu0 0.0
  %478 = vmatpush1.msra.mxu0 0.0
  %479 = vmatprep.subr.mxu0 0.0
  %480 = vmatpush1.msra.mxu0 0.0
  %481 = vmatprep.subr.mxu0 0.0
  %482 = vmatpush1.msra.mxu0 0.0
  %483 = vmatprep.subr.mxu0 0.0
  %484 = vmatpush1.msra.mxu0 0.0
  %485 = vmatprep.subr.mxu0 0.0
  %486 = vmatpush1.msra.mxu0 0.0
  %487 = vmatprep.subr.mxu0 0.0
  %488 = vmatpush1.msra.mxu0 0.0
  %489 = vmatprep.subr.mxu0 0.0
  %490 = vmatpush1.msra.mxu0 0.0
  %491 = vmatprep.subr.mxu0 0.0
  %492 = vmatpush1.msra.mxu0 0.0
  %493 = vmatprep.subr.mxu0 0.0
  %494 = vmatpush1.msra.mxu0 0.0
  %495 = vmatprep.subr.mxu0 0.0
  %496 = vmatpush1.msra.mxu0 0.0
  %497 = vmatprep.subr.mxu0 0.0
  %498 = vmatpush1.msra.mxu0 0.0
  %499 = vmatprep.subr.mxu0 0.0
  %500 = vmatpush1.msra.mxu0 0.0
  %501 = vmatprep.subr.mxu0 0.0
  %502 = vmatpush1.msra.mxu0 0.0
  %503 = vmatprep.subr.mxu0 0.0
  %504 = vmatpush1.msra.mxu0 0.0
  %505 = vmatprep.subr.mxu0 0.0
  %506 = vmatpush1.msra.mxu0 0.0
  %507 = vmatprep.subr.mxu0 0.0
  %508 = vmatpush1.msra.mxu0 0.0
  %509 = vmatprep.subr.mxu0 0.0
  %510 = vmatpush1.msra.mxu0 0.0
  %511 = vmatprep.subr.mxu0 0.0
  %512 = vmatpush1.msra.mxu0 0.0
  %513 = vmatprep.subr.mxu0 0.0
  %514 = vmatpush1.msra.mxu0 0.0
  %515 = vmatprep.subr.mxu0 0.0
  %516 = vmatpush1.msra.mxu0 0.0
  %517 = vmatprep.subr.mxu0 0.0
  %518 = vmatpush1.msra.mxu0 0.0
  %519 = vmatprep.mubr.f32.mxu0 0.0
  %520 = vmatmul.mubr.f32.gmra.mrb[0].mxu0 %v450
  %v521 = vpop.f32.mrb[0].mxu0
  %v522 = vadd.f32 %v441, %v521
  %v523 = vpop.f32.mrb[0].mxu0
  %v524 = vadd.f32 %v441, %v523
  %525 = vmatprep.mubr.f32.mxu0 0.0
  %526 = vmatmul.mubr.f32.gmra.mrb[0].mxu0 %v453
  %v527 = vpop.f32.mrb[0].mxu0
  %v528 = vadd.f32 %v446, %v527
  %v529 = vpop.f32.mrb[0].mxu0
  %v530 = vadd.f32 %v446, %v529
  %531 = vdwg.mxu0
  %532 = vmatprep.subr.mxu0 %v405
  %533 = vmatpush1.msra.mxu0 %v404
  %534 = vmatprep.subr.mxu0 %v409
  %535 = vmatpush1.msra.mxu0 %v408
  %536 = vmatprep.subr.mxu0 %v413
  %537 = vmatpush1.msra.mxu0 %v412
  %538 = vmatprep.subr.mxu0 %v417
  %539 = vmatpush1.msra.mxu0 %v416
  %540 = vmatprep.subr.mxu0 %v421
  %541 = vmatpush1.msra.mxu0 %v420
  %542 = vmatprep.subr.mxu0 %v425
  %543 = vmatpush1.msra.mxu0 %v424
  %544 = vmatprep.subr.mxu0 %v429
  %545 = vmatpush1.msra.mxu0 %v428
  %546 = vmatprep.subr.mxu0 %v433
  %547 = vmatpush1.msra.mxu0 %v432
  %548 = vmatprep.subr.mxu0 %v437
  %549 = vmatpush1.msra.mxu0 %v436
  %550 = vmatprep.subr.mxu0 0.0
  %551 = vmatpush1.msra.mxu0 0.0
  %552 = vmatprep.subr.mxu0 0.0
  %553 = vmatpush1.msra.mxu0 0.0
  %554 = vmatprep.subr.mxu0 0.0
  %555 = vmatpush1.msra.mxu0 0.0
  %556 = vmatprep.subr.mxu0 0.0
  %557 = vmatpush1.msra.mxu0 0.0
  %558 = vmatprep.subr.mxu0 0.0
  %559 = vmatpush1.msra.mxu0 0.0
  %560 = vmatprep.subr.mxu0 0.0
  %561 = vmatpush1.msra.mxu0 0.0
  %562 = vmatprep.subr.mxu0 0.0
  %563 = vmatpush1.msra.mxu0 0.0
  %564 = vmatprep.subr.mxu0 0.0
  %565 = vmatpush1.msra.mxu0 0.0
  %566 = vmatprep.subr.mxu0 0.0
  %567 = vmatpush1.msra.mxu0 0.0
  %568 = vmatprep.subr.mxu0 0.0
  %569 = vmatpush1.msra.mxu0 0.0
  %570 = vmatprep.subr.mxu0 0.0
  %571 = vmatpush1.msra.mxu0 0.0
  %572 = vmatprep.subr.mxu0 0.0
  %573 = vmatpush1.msra.mxu0 0.0
  %574 = vmatprep.subr.mxu0 0.0
  %575 = vmatpush1.msra.mxu0 0.0
  %576 = vmatprep.subr.mxu0 0.0
  %577 = vmatpush1.msra.mxu0 0.0
  %578 = vmatprep.subr.mxu0 0.0
  %579 = vmatpush1.msra.mxu0 0.0
  %580 = vmatprep.subr.mxu0 0.0
  %581 = vmatpush1.msra.mxu0 0.0
  %582 = vmatprep.subr.mxu0 0.0
  %583 = vmatpush1.msra.mxu0 0.0
  %584 = vmatprep.subr.mxu0 0.0
  %585 = vmatpush1.msra.mxu0 0.0
  %586 = vmatprep.subr.mxu0 0.0
  %587 = vmatpush1.msra.mxu0 0.0
  %588 = vmatprep.subr.mxu0 0.0
  %589 = vmatpush1.msra.mxu0 0.0
  %590 = vmatprep.subr.mxu0 0.0
  %591 = vmatpush1.msra.mxu0 0.0
  %592 = vmatprep.subr.mxu0 0.0
  %593 = vmatpush1.msra.mxu0 0.0
  %594 = vmatprep.subr.mxu0 0.0
  %595 = vmatpush1.msra.mxu0 0.0
  %596 = vmatprep.mubr.f32.mxu0 0.0
  %597 = vmatmul.mubr.f32.gmra.mrb[0].mxu0 %v450
  %v598 = vpop.f32.mrb[0].mxu0
  %v599 = vadd.f32 %v441, %v598
  %v600 = vpop.f32.mrb[0].mxu0
  %v601 = vadd.f32 %v441, %v600
  %602 = vmatprep.mubr.f32.mxu0 0.0
  %603 = vmatmul.mubr.f32.gmra.mrb[0].mxu0 %v453
  %v604 = vpop.f32.mrb[0].mxu0
  %v605 = vadd.f32 %v446, %v604
  %v606 = vpop.f32.mrb[0].mxu0
  %v607 = vadd.f32 %v446, %v606
  %608 = vdwg.mxu0
  %v609 = vmax.f32 %v522, 0.0
  %v610 = vmax.f32 %v524, 0.0
  %v611 = vmax.f32 %v599, 0.0
  %v612 = vmax.f32 %v601, 0.0
  %v613 = vmax.f32 %v528, 0.0
  %v614 = vmax.f32 %v530, 0.0
  %v615 = vmax.f32 %v605, 0.0
  %v616 = vmax.f32 %v607, 0.0
  %v617 = vld [vmem:[%s4] sm:$0xff]
  %v618 = vld [vmem:[%s4 + $0x8] sm:$0xff]
  %v619 = vld [vmem:[%s4 + $0x10] sm:$0xff]
  %v620 = vld [vmem:[%s4 + $0x18] sm:$0xff]
  %v621 = vld [vmem:[%s4 + $0x20] sm:$0xff]
  %v622 = vld [vmem:[%s4 + $0x28] sm:$0xff]
  %v623 = vld [vmem:[%s4 + $0x30] sm:$0xff]
  %v624 = vld [vmem:[%s4 + $0x38] sm:$0xff]
  %v625 = vld [vmem:[%s5] sm:$0xff]
  %v626 = vld [vmem:[%s5 + $0x8] sm:$0xff]
  %v627 = vld [vmem:[%s5 + $0x10] sm:$0xff]
  %v628 = vld [vmem:[%s5 + $0x18] sm:$0xff]
  %629 = vrot.lane.b32.xlu0 %v609, 17
  %v630 = vpop.permute.xlu0 %629
  %631 = vrot.lane.b32.xlu0 %v613, 17
  %v632 = vpop.permute.xlu0 %631
  %633 = vrot.lane.b32.xlu0 %v610, 17
  %v634 = vpop.permute.xlu0 %633
  %635 = vrot.lane.b32.xlu0 %v614, 17
  %v636 = vpop.permute.xlu0 %635
  %637 = vrot.lane.b32.xlu0 %v611, 17
  %v638 = vpop.permute.xlu0 %637
  %639 = vrot.lane.b32.xlu0 %v615, 17
  %v640 = vpop.permute.xlu0 %639
  %641 = vrot.lane.b32.xlu0 %v612, 17
  %v642 = vpop.permute.xlu0 %641
  %643 = vrot.lane.b32.xlu0 %v616, 17
  %v644 = vpop.permute.xlu0 %643
  %v645 = vsel %vm55, %v638, %v642
  %v646 = vsel %vm55, %v640, %v644
  %v647 = vsel %vm55, %v634, %v638
  %v648 = vsel %vm55, %v636, %v640
  %v649 = vsel %vm55, %v630, %v634
  %v650 = vsel %vm55, %v632, %v636
  %v651 = vsel %vm55, %v642, %v630
  %v652 = vsel %vm55, %v644, %v632
  %v653 = vld [vmem:[%s1] ss:$8 sm:$0xf]
  %v655 = vlaneseq
  %v656 = vshrl.u32 %v655, 7
  %v657 = vsub.s32 0, %v656
  %v658 = vrot.slane %v653, %v657
  %v659 = vlaneseq
  %v660 = vshrl.u32 %v659, 7
  %v661 = vsub.s32 1, %v660
  %v662 = vrot.slane %v653, %v661
  %v663 = vlaneseq
  %v664 = vshrl.u32 %v663, 7
  %v665 = vsub.s32 2, %v664
  %v666 = vrot.slane %v653, %v665
  %v667 = vlaneseq
  %v668 = vshrl.u32 %v667, 7
  %v669 = vsub.s32 3, %v668
  %v670 = vrot.slane %v653, %v669
  %v675 = vmul.f32 %v651, %v658
  %v676 = vmul.f32 %v649, %v662
  %v677 = vmul.f32 %v647, %v666
  %v678 = vmul.f32 %v645, %v670
  %v679 = vmul.f32 %v652, %v658
  %v680 = vmul.f32 %v650, %v662
  %v681 = vmul.f32 %v648, %v666
  %v682 = vmul.f32 %v646, %v670
  %683 = vst [vmem:[#allocation2] sm:$0xff] %v675
  %684 = vst [vmem:[#allocation2 + $0x8] sm:$0xff] %v676
  %685 = vst [vmem:[#allocation2 + $0x10] sm:$0xff] %v677
  %686 = vst [vmem:[#allocation2 + $0x18] sm:$0xff] %v678
  %687 = vst [vmem:[#allocation2 + $0x20] sm:$0xff] %v679
  %688 = vst [vmem:[#allocation2 + $0x28] sm:$0xff] %v680
  %689 = vst [vmem:[#allocation2 + $0x30] sm:$0xff] %v681
  %690 = vst [vmem:[#allocation2 + $0x38] sm:$0xff] %v682
  %691 = vrot.lane.b32.xlu0 %v609, 16
  %v692 = vpop.permute.xlu0 %691
  %693 = vrot.lane.b32.xlu0 %v613, 16
  %v694 = vpop.permute.xlu0 %693
  %695 = vrot.lane.b32.xlu0 %v610, 16
  %v696 = vpop.permute.xlu0 %695
  %697 = vrot.lane.b32.xlu0 %v614, 16
  %v698 = vpop.permute.xlu0 %697
  %699 = vrot.lane.b32.xlu0 %v611, 16
  %v700 = vpop.permute.xlu0 %699
  %701 = vrot.lane.b32.xlu0 %v615, 16
  %v702 = vpop.permute.xlu0 %701
  %703 = vrot.lane.b32.xlu0 %v612, 16
  %v704 = vpop.permute.xlu0 %703
  %705 = vrot.lane.b32.xlu0 %v616, 16
  %v706 = vpop.permute.xlu0 %705
  %v707 = vsel %vm98, %v700, %v704
  %v708 = vsel %vm98, %v702, %v706
  %v709 = vsel %vm98, %v696, %v700
  %v710 = vsel %vm98, %v698, %v702
  %v711 = vsel %vm98, %v692, %v696
  %v712 = vsel %vm98, %v694, %v698
  %v713 = vsel %vm98, %v704, %v692
  %v714 = vsel %vm98, %v706, %v694
  %v715 = vld [vmem:[%s103] ss:$8 sm:$0xf]
  %v717 = vlaneseq
  %v718 = vshrl.u32 %v717, 7
  %v719 = vsub.s32 0, %v718
  %v720 = vrot.slane %v715, %v719
  %v721 = vlaneseq
  %v722 = vshrl.u32 %v721, 7
  %v723 = vsub.s32 1, %v722
  %v724 = vrot.slane %v715, %v723
  %v725 = vlaneseq
  %v726 = vshrl.u32 %v725, 7
  %v727 = vsub.s32 2, %v726
  %v728 = vrot.slane %v715, %v727
  %v729 = vlaneseq
  %v730 = vshrl.u32 %v729, 7
  %v731 = vsub.s32 3, %v730
  %v732 = vrot.slane %v715, %v731
  %v737 = vmul.f32 %v713, %v720
  %v738 = vmul.f32 %v711, %v724
  %v739 = vmul.f32 %v709, %v728
  %v740 = vmul.f32 %v707, %v732
  %v741 = vmul.f32 %v714, %v720
  %v742 = vmul.f32 %v712, %v724
  %v743 = vmul.f32 %v710, %v728
  %v744 = vmul.f32 %v708, %v732
  %745 = vst [vmem:[#allocation2 + $0x40] sm:$0xff] %v737
  %746 = vst [vmem:[#allocation2 + $0x48] sm:$0xff] %v738
  %747 = vst [vmem:[#allocation2 + $0x50] sm:$0xff] %v739
  %748 = vst [vmem:[#allocation2 + $0x58] sm:$0xff] %v740
  %749 = vst [vmem:[#allocation2 + $0x60] sm:$0xff] %v741
  %750 = vst [vmem:[#allocation2 + $0x68] sm:$0xff] %v742
  %751 = vst [vmem:[#allocation2 + $0x70] sm:$0xff] %v743
  %752 = vst [vmem:[#allocation2 + $0x78] sm:$0xff] %v744
  %753 = vrot.lane.b32.xlu0 %v609, 15
  %v754 = vpop.permute.xlu0 %753
  %755 = vrot.lane.b32.xlu0 %v613, 15
  %v756 = vpop.permute.xlu0 %755
  %757 = vrot.lane.b32.xlu0 %v610, 15
  %v758 = vpop.permute.xlu0 %757
  %759 = vrot.lane.b32.xlu0 %v614, 15
  %v760 = vpop.permute.xlu0 %759
  %761 = vrot.lane.b32.xlu0 %v611, 15
  %v762 = vpop.permute.xlu0 %761
  %763 = vrot.lane.b32.xlu0 %v615, 15
  %v764 = vpop.permute.xlu0 %763
  %765 = vrot.lane.b32.xlu0 %v612, 15
  %v766 = vpop.permute.xlu0 %765
  %767 = vrot.lane.b32.xlu0 %v616, 15
  %v768 = vpop.permute.xlu0 %767
  %v769 = vsel %vm142, %v762, %v766
  %v770 = vsel %vm142, %v764, %v768
  %v771 = vsel %vm142, %v758, %v762
  %v772 = vsel %vm142, %v760, %v764
  %v773 = vsel %vm142, %v754, %v758
  %v774 = vsel %vm142, %v756, %v760
  %v775 = vsel %vm142, %v766, %v754
  %v776 = vsel %vm142, %v768, %v756
  %v777 = vld [vmem:[%s147] ss:$8 sm:$0xf]
  %v779 = vlaneseq
  %v780 = vshrl.u32 %v779, 7
  %v781 = vsub.s32 0, %v780
  %v782 = vrot.slane %v777, %v781
  %v783 = vlaneseq
  %v784 = vshrl.u32 %v783, 7
  %v785 = vsub.s32 1, %v784
  %v786 = vrot.slane %v777, %v785
  %v787 = vlaneseq
  %v788 = vshrl.u32 %v787, 7
  %v789 = vsub.s32 2, %v788
  %v790 = vrot.slane %v777, %v789
  %v791 = vlaneseq
  %v792 = vshrl.u32 %v791, 7
  %v793 = vsub.s32 3, %v792
  %v794 = vrot.slane %v777, %v793
  %v799 = vmul.f32 %v775, %v782
  %v800 = vmul.f32 %v773, %v786
  %v801 = vmul.f32 %v771, %v790
  %v802 = vmul.f32 %v769, %v794
  %v803 = vmul.f32 %v776, %v782
  %v804 = vmul.f32 %v774, %v786
  %v805 = vmul.f32 %v772, %v790
  %v806 = vmul.f32 %v770, %v794
  %807 = vst [vmem:[#allocation2 + $0x80] sm:$0xff] %v799
  %808 = vst [vmem:[#allocation2 + $0x88] sm:$0xff] %v800
  %809 = vst [vmem:[#allocation2 + $0x90] sm:$0xff] %v801
  %810 = vst [vmem:[#allocation2 + $0x98] sm:$0xff] %v802
  %811 = vst [vmem:[#allocation2 + $0xa0] sm:$0xff] %v803
  %812 = vst [vmem:[#allocation2 + $0xa8] sm:$0xff] %v804
  %813 = vst [vmem:[#allocation2 + $0xb0] sm:$0xff] %v805
  %814 = vst [vmem:[#allocation2 + $0xb8] sm:$0xff] %v806
  %815 = vrot.lane.b32.xlu0 %v609, 1
  %v816 = vpop.permute.xlu0 %815
  %817 = vrot.lane.b32.xlu0 %v613, 1
  %v818 = vpop.permute.xlu0 %817
  %819 = vrot.lane.b32.xlu0 %v610, 1
  %v820 = vpop.permute.xlu0 %819
  %821 = vrot.lane.b32.xlu0 %v614, 1
  %v822 = vpop.permute.xlu0 %821
  %823 = vrot.lane.b32.xlu0 %v611, 1
  %v824 = vpop.permute.xlu0 %823
  %825 = vrot.lane.b32.xlu0 %v615, 1
  %v826 = vpop.permute.xlu0 %825
  %827 = vrot.lane.b32.xlu0 %v612, 1
  %v828 = vpop.permute.xlu0 %827
  %829 = vrot.lane.b32.xlu0 %v616, 1
  %v830 = vpop.permute.xlu0 %829
  %v831 = vsel %vm186, %v824, %v828
  %v832 = vsel %vm186, %v826, %v830
  %v833 = vsel %vm186, %v820, %v824
  %v834 = vsel %vm186, %v822, %v826
  %v835 = vsel %vm186, %v816, %v820
  %v836 = vsel %vm186, %v818, %v822
  %v837 = vsel %vm186, %v828, %v816
  %v838 = vsel %vm186, %v830, %v818
  %v839 = vld [vmem:[%s191] ss:$8 sm:$0xf]
  %v841 = vlaneseq
  %v842 = vshrl.u32 %v841, 7
  %v843 = vsub.s32 0, %v842
  %v844 = vrot.slane %v839, %v843
  %v845 = vlaneseq
  %v846 = vshrl.u32 %v845, 7
  %v847 = vsub.s32 1, %v846
  %v848 = vrot.slane %v839, %v847
  %v849 = vlaneseq
  %v850 = vshrl.u32 %v849, 7
  %v851 = vsub.s32 2, %v850
  %v852 = vrot.slane %v839, %v851
  %v853 = vlaneseq
  %v854 = vshrl.u32 %v853, 7
  %v855 = vsub.s32 3, %v854
  %v856 = vrot.slane %v839, %v855
  %v861 = vmul.f32 %v837, %v844
  %v862 = vmul.f32 %v835, %v848
  %v863 = vmul.f32 %v833, %v852
  %v864 = vmul.f32 %v831, %v856
  %v865 = vmul.f32 %v838, %v844
  %v866 = vmul.f32 %v836, %v848
  %v867 = vmul.f32 %v834, %v852
  %v868 = vmul.f32 %v832, %v856
  %869 = vst [vmem:[#allocation2 + $0xc0] sm:$0xff] %v861
  %870 = vst [vmem:[#allocation2 + $0xc8] sm:$0xff] %v862
  %871 = vst [vmem:[#allocation2 + $0xd0] sm:$0xff] %v863
  %872 = vst [vmem:[#allocation2 + $0xd8] sm:$0xff] %v864
  %873 = vst [vmem:[#allocation2 + $0xe0] sm:$0xff] %v865
  %874 = vst [vmem:[#allocation2 + $0xe8] sm:$0xff] %v866
  %875 = vst [vmem:[#allocation2 + $0xf0] sm:$0xff] %v867
  %876 = vst [vmem:[#allocation2 + $0xf8] sm:$0xff] %v868
  %877 = vst [vmem:[#allocation2 + $0x100] sm:$0xff] %v609
  %878 = vst [vmem:[#allocation2 + $0x108] sm:$0xff] %v610
  %879 = vst [vmem:[#allocation2 + $0x110] sm:$0xff] %v611
  %880 = vst [vmem:[#allocation2 + $0x118] sm:$0xff] %v612
  %881 = vst [vmem:[#allocation2 + $0x120] sm:$0xff] %v613
  %882 = vst [vmem:[#allocation2 + $0x128] sm:$0xff] %v614
  %883 = vst [vmem:[#allocation2 + $0x130] sm:$0xff] %v615
  %884 = vst [vmem:[#allocation2 + $0x138] sm:$0xff] %v616
  %885 = vrot.lane.b32.xlu0 %v609, 127
  %v886 = vpop.permute.xlu0 %885
  %887 = vrot.lane.b32.xlu0 %v613, 127
  %v888 = vpop.permute.xlu0 %887
  %889 = vrot.lane.b32.xlu0 %v610, 127
  %v890 = vpop.permute.xlu0 %889
  %891 = vrot.lane.b32.xlu0 %v614, 127
  %v892 = vpop.permute.xlu0 %891
  %893 = vrot.lane.b32.xlu0 %v611, 127
  %v894 = vpop.permute.xlu0 %893
  %895 = vrot.lane.b32.xlu0 %v615, 127
  %v896 = vpop.permute.xlu0 %895
  %897 = vrot.lane.b32.xlu0 %v612, 127
  %v898 = vpop.permute.xlu0 %897
  %899 = vrot.lane.b32.xlu0 %v616, 127
  %v900 = vpop.permute.xlu0 %899
  %v901 = vsel %vm234, %v894, %v898
  %v902 = vsel %vm234, %v896, %v900
  %v903 = vsel %vm234, %v890, %v894
  %v904 = vsel %vm234, %v892, %v896
  %v905 = vsel %vm234, %v886, %v890
  %v906 = vsel %vm234, %v888, %v892
  %v907 = vsel %vm234, %v898, %v886
  %v908 = vsel %vm234, %v900, %v888
  %v909 = vld [vmem:[%s239] ss:$8 sm:$0xf]
  %v911 = vlaneseq
  %v912 = vshrl.u32 %v911, 7
  %v913 = vsub.s32 0, %v912
  %v914 = vrot.slane %v909, %v913
  %v915 = vlaneseq
  %v916 = vshrl.u32 %v915, 7
  %v917 = vsub.s32 1, %v916
  %v918 = vrot.slane %v909, %v917
  %v919 = vlaneseq
  %v920 = vshrl.u32 %v919, 7
  %v921 = vsub.s32 2, %v920
  %v922 = vrot.slane %v909, %v921
  %v923 = vlaneseq
  %v924 = vshrl.u32 %v923, 7
  %v925 = vsub.s32 3, %v924
  %v926 = vrot.slane %v909, %v925
  %v931 = vmul.f32 %v905, %v914
  %v932 = vmul.f32 %v903, %v918
  %v933 = vmul.f32 %v901, %v922
  %v934 = vmul.f32 %v907, %v926
  %v935 = vmul.f32 %v906, %v914
  %v936 = vmul.f32 %v904, %v918
  %v937 = vmul.f32 %v902, %v922
  %v938 = vmul.f32 %v908, %v926
  %939 = vst [vmem:[#allocation2 + $0x140] sm:$0xff] %v931
  %940 = vst [vmem:[#allocation2 + $0x148] sm:$0xff] %v932
  %941 = vst [vmem:[#allocation2 + $0x150] sm:$0xff] %v933
  %942 = vst [vmem:[#allocation2 + $0x158] sm:$0xff] %v934
  %943 = vst [vmem:[#allocation2 + $0x160] sm:$0xff] %v935
  %944 = vst [vmem:[#allocation2 + $0x168] sm:$0xff] %v936
  %945 = vst [vmem:[#allocation2 + $0x170] sm:$0xff] %v937
  %946 = vst [vmem:[#allocation2 + $0x178] sm:$0xff] %v938
  %947 = vrot.lane.b32.xlu0 %v609, 113
  %v948 = vpop.permute.xlu0 %947
  %949 = vrot.lane.b32.xlu0 %v613, 113
  %v950 = vpop.permute.xlu0 %949
  %951 = vrot.lane.b32.xlu0 %v610, 113
  %v952 = vpop.permute.xlu0 %951
  %953 = vrot.lane.b32.xlu0 %v614, 113
  %v954 = vpop.permute.xlu0 %953
  %955 = vrot.lane.b32.xlu0 %v611, 113
  %v956 = vpop.permute.xlu0 %955
  %957 = vrot.lane.b32.xlu0 %v615, 113
  %v958 = vpop.permute.xlu0 %957
  %959 = vrot.lane.b32.xlu0 %v612, 113
  %v960 = vpop.permute.xlu0 %959
  %961 = vrot.lane.b32.xlu0 %v616, 113
  %v962 = vpop.permute.xlu0 %961
  %v963 = vsel %vm278, %v956, %v960
  %v964 = vsel %vm278, %v958, %v962
  %v965 = vsel %vm278, %v952, %v956
  %v966 = vsel %vm278, %v954, %v958
  %v967 = vsel %vm278, %v948, %v952
  %v968 = vsel %vm278, %v950, %v954
  %v969 = vsel %vm278, %v960, %v948
  %v970 = vsel %vm278, %v962, %v950
  %v971 = vld [vmem:[%s283] ss:$8 sm:$0xf]
  %v973 = vlaneseq
  %v974 = vshrl.u32 %v973, 7
  %v975 = vsub.s32 0, %v974
  %v976 = vrot.slane %v971, %v975
  %v977 = vlaneseq
  %v978 = vshrl.u32 %v977, 7
  %v979 = vsub.s32 1, %v978
  %v980 = vrot.slane %v971, %v979
  %v981 = vlaneseq
  %v982 = vshrl.u32 %v981, 7
  %v983 = vsub.s32 2, %v982
  %v984 = vrot.slane %v971, %v983
  %v985 = vlaneseq
  %v986 = vshrl.u32 %v985, 7
  %v987 = vsub.s32 3, %v986
  %v988 = vrot.slane %v971, %v987
  %v993 = vmul.f32 %v967, %v976
  %v994 = vmul.f32 %v965, %v980
  %v995 = vmul.f32 %v963, %v984
  %v996 = vmul.f32 %v969, %v988
  %v997 = vmul.f32 %v968, %v976
  %v998 = vmul.f32 %v966, %v980
  %v999 = vmul.f32 %v964, %v984
  %v1000 = vmul.f32 %v970, %v988
  %1001 = vst [vmem:[#allocation2 + $0x180] sm:$0xff] %v993
  %1002 = vst [vmem:[#allocation2 + $0x188] sm:$0xff] %v994
  %1003 = vst [vmem:[#allocation2 + $0x190] sm:$0xff] %v995
  %1004 = vst [vmem:[#allocation2 + $0x198] sm:$0xff] %v996
  %1005 = vst [vmem:[#allocation2 + $0x1a0] sm:$0xff] %v997
  %1006 = vst [vmem:[#allocation2 + $0x1a8] sm:$0xff] %v998
  %1007 = vst [vmem:[#allocation2 + $0x1b0] sm:$0xff] %v999
  %1008 = vst [vmem:[#allocation2 + $0x1b8] sm:$0xff] %v1000
  %1009 = vrot.lane.b32.xlu0 %v609, 112
  %v1010 = vpop.permute.xlu0 %1009
  %1011 = vrot.lane.b32.xlu0 %v613, 112
  %v1012 = vpop.permute.xlu0 %1011
  %1013 = vrot.lane.b32.xlu0 %v610, 112
  %v1014 = vpop.permute.xlu0 %1013
  %1015 = vrot.lane.b32.xlu0 %v614, 112
  %v1016 = vpop.permute.xlu0 %1015
  %1017 = vrot.lane.b32.xlu0 %v611, 112
  %v1018 = vpop.permute.xlu0 %1017
  %1019 = vrot.lane.b32.xlu0 %v615, 112
  %v1020 = vpop.permute.xlu0 %1019
  %1021 = vrot.lane.b32.xlu0 %v612, 112
  %v1022 = vpop.permute.xlu0 %1021
  %1023 = vrot.lane.b32.xlu0 %v616, 112
  %v1024 = vpop.permute.xlu0 %1023
  %v1025 = vsel %vm322, %v1018, %v1022
  %v1026 = vsel %vm322, %v1020, %v1024
  %v1027 = vsel %vm322, %v1014, %v1018
  %v1028 = vsel %vm322, %v1016, %v1020
  %v1029 = vsel %vm322, %v1010, %v1014
  %v1030 = vsel %vm322, %v1012, %v1016
  %v1031 = vsel %vm322, %v1022, %v1010
  %v1032 = vsel %vm322, %v1024, %v1012
  %v1033 = vld [vmem:[%s327] ss:$8 sm:$0xf]
  %v1035 = vlaneseq
  %v1036 = vshrl.u32 %v1035, 7
  %v1037 = vsub.s32 0, %v1036
  %v1038 = vrot.slane %v1033, %v1037
  %v1039 = vlaneseq
  %v1040 = vshrl.u32 %v1039, 7
  %v1041 = vsub.s32 1, %v1040
  %v1042 = vrot.slane %v1033, %v1041
  %v1043 = vlaneseq
  %v1044 = vshrl.u32 %v1043, 7
  %v1045 = vsub.s32 2, %v1044
  %v1046 = vrot.slane %v1033, %v1045
  %v1047 = vlaneseq
  %v1048 = vshrl.u32 %v1047, 7
  %v1049 = vsub.s32 3, %v1048
  %v1050 = vrot.slane %v1033, %v1049
  %v1055 = vmul.f32 %v1029, %v1038
  %v1056 = vmul.f32 %v1027, %v1042
  %v1057 = vmul.f32 %v1025, %v1046
  %v1058 = vmul.f32 %v1031, %v1050
  %v1059 = vmul.f32 %v1030, %v1038
  %v1060 = vmul.f32 %v1028, %v1042
  %v1061 = vmul.f32 %v1026, %v1046
  %v1062 = vmul.f32 %v1032, %v1050
  %1063 = vst [vmem:[#allocation2 + $0x1c0] sm:$0xff] %v1055
  %1064 = vst [vmem:[#allocation2 + $0x1c8] sm:$0xff] %v1056
  %1065 = vst [vmem:[#allocation2 + $0x1d0] sm:$0xff] %v1057
  %1066 = vst [vmem:[#allocation2 + $0x1d8] sm:$0xff] %v1058
  %1067 = vst [vmem:[#allocation2 + $0x1e0] sm:$0xff] %v1059
  %1068 = vst [vmem:[#allocation2 + $0x1e8] sm:$0xff] %v1060
  %1069 = vst [vmem:[#allocation2 + $0x1f0] sm:$0xff] %v1061
  %1070 = vst [vmem:[#allocation2 + $0x1f8] sm:$0xff] %v1062
  %1071 = vrot.lane.b32.xlu0 %v609, 111
  %v1072 = vpop.permute.xlu0 %1071
  %1073 = vrot.lane.b32.xlu0 %v613, 111
  %v1074 = vpop.permute.xlu0 %1073
  %1075 = vrot.lane.b32.xlu0 %v610, 111
  %v1076 = vpop.permute.xlu0 %1075
  %1077 = vrot.lane.b32.xlu0 %v614, 111
  %v1078 = vpop.permute.xlu0 %1077
  %1079 = vrot.lane.b32.xlu0 %v611, 111
  %v1080 = vpop.permute.xlu0 %1079
  %1081 = vrot.lane.b32.xlu0 %v615, 111
  %v1082 = vpop.permute.xlu0 %1081
  %1083 = vrot.lane.b32.xlu0 %v612, 111
  %v1084 = vpop.permute.xlu0 %1083
  %1085 = vrot.lane.b32.xlu0 %v616, 111
  %v1086 = vpop.permute.xlu0 %1085
  %v1087 = vsel %vm366, %v1080, %v1084
  %v1088 = vsel %vm366, %v1082, %v1086
  %v1089 = vsel %vm366, %v1076, %v1080
  %v1090 = vsel %vm366, %v1078, %v1082
  %v1091 = vsel %vm366, %v1072, %v1076
  %v1092 = vsel %vm366, %v1074, %v1078
  %v1093 = vsel %vm366, %v1084, %v1072
  %v1094 = vsel %vm366, %v1086, %v1074
  %v1095 = vld [vmem:[%s371] ss:$8 sm:$0xf]
  %v1097 = vlaneseq
  %v1098 = vshrl.u32 %v1097, 7
  %v1099 = vsub.s32 0, %v1098
  %v1100 = vrot.slane %v1095, %v1099
  %v1101 = vlaneseq
  %v1102 = vshrl.u32 %v1101, 7
  %v1103 = vsub.s32 1, %v1102
  %v1104 = vrot.slane %v1095, %v1103
  %v1105 = vlaneseq
  %v1106 = vshrl.u32 %v1105, 7
  %v1107 = vsub.s32 2, %v1106
  %v1108 = vrot.slane %v1095, %v1107
  %v1109 = vlaneseq
  %v1110 = vshrl.u32 %v1109, 7
  %v1111 = vsub.s32 3, %v1110
  %v1112 = vrot.slane %v1095, %v1111
  %v1117 = vmul.f32 %v1091, %v1100
  %v1118 = vmul.f32 %v1089, %v1104
  %v1119 = vmul.f32 %v1087, %v1108
  %v1120 = vmul.f32 %v1093, %v1112
  %v1121 = vmul.f32 %v1092, %v1100
  %v1122 = vmul.f32 %v1090, %v1104
  %v1123 = vmul.f32 %v1088, %v1108
  %v1124 = vmul.f32 %v1094, %v1112
  %1125 = vst [vmem:[#allocation2 + $0x200] sm:$0xff] %v1117
  %1126 = vst [vmem:[#allocation2 + $0x208] sm:$0xff] %v1118
  %1127 = vst [vmem:[#allocation2 + $0x210] sm:$0xff] %v1119
  %1128 = vst [vmem:[#allocation2 + $0x218] sm:$0xff] %v1120
  %1129 = vst [vmem:[#allocation2 + $0x220] sm:$0xff] %v1121
  %1130 = vst [vmem:[#allocation2 + $0x228] sm:$0xff] %v1122
  %1131 = vst [vmem:[#allocation2 + $0x230] sm:$0xff] %v1123
  %1132 = vst [vmem:[#allocation2 + $0x238] sm:$0xff] %v1124
  %v1133 = vld [vmem:[#allocation2] sm:$0xff]
  %v1134 = vld [vmem:[#allocation2 + $0x8] sm:$0xff]
  %v1135 = vld [vmem:[#allocation2 + $0x10] sm:$0xff]
  %v1136 = vld [vmem:[#allocation2 + $0x18] sm:$0xff]
  %v1137 = vld [vmem:[#allocation2 + $0x20] sm:$0xff]
  %v1138 = vld [vmem:[#allocation2 + $0x28] sm:$0xff]
  %v1139 = vld [vmem:[#allocation2 + $0x30] sm:$0xff]
  %v1140 = vld [vmem:[#allocation2 + $0x38] sm:$0xff]
  %v1141 = vld [vmem:[#allocation2 + $0x40] sm:$0xff]
  %v1142 = vld [vmem:[#allocation2 + $0x48] sm:$0xff]
  %v1143 = vld [vmem:[#allocation2 + $0x50] sm:$0xff]
  %v1144 = vld [vmem:[#allocation2 + $0x58] sm:$0xff]
  %v1145 = vld [vmem:[#allocation2 + $0x60] sm:$0xff]
  %v1146 = vld [vmem:[#allocation2 + $0x68] sm:$0xff]
  %v1147 = vld [vmem:[#allocation2 + $0x70] sm:$0xff]
  %v1148 = vld [vmem:[#allocation2 + $0x78] sm:$0xff]
  %v1149 = vld [vmem:[#allocation2 + $0x80] sm:$0xff]
  %v1150 = vld [vmem:[#allocation2 + $0x88] sm:$0xff]
  %v1151 = vld [vmem:[#allocation2 + $0x90] sm:$0xff]
  %v1152 = vld [vmem:[#allocation2 + $0x98] sm:$0xff]
  %v1153 = vld [vmem:[#allocation2 + $0xa0] sm:$0xff]
  %v1154 = vld [vmem:[#allocation2 + $0xa8] sm:$0xff]
  %v1155 = vld [vmem:[#allocation2 + $0xb0] sm:$0xff]
  %v1156 = vld [vmem:[#allocation2 + $0xb8] sm:$0xff]
  %v1157 = vld [vmem:[#allocation2 + $0xc0] sm:$0xff]
  %v1158 = vld [vmem:[#allocation2 + $0xc8] sm:$0xff]
  %v1159 = vld [vmem:[#allocation2 + $0xd0] sm:$0xff]
  %v1160 = vld [vmem:[#allocation2 + $0xd8] sm:$0xff]
  %v1161 = vld [vmem:[#allocation2 + $0xe0] sm:$0xff]
  %v1162 = vld [vmem:[#allocation2 + $0xe8] sm:$0xff]
  %v1163 = vld [vmem:[#allocation2 + $0xf0] sm:$0xff]
  %v1164 = vld [vmem:[#allocation2 + $0xf8] sm:$0xff]
  %v1165 = vld [vmem:[#allocation2 + $0x100] sm:$0xff]
  %v1166 = vld [vmem:[#allocation2 + $0x108] sm:$0xff]
  %v1167 = vld [vmem:[#allocation2 + $0x110] sm:$0xff]
  %v1168 = vld [vmem:[#allocation2 + $0x118] sm:$0xff]
  %v1169 = vld [vmem:[#allocation2 + $0x120] sm:$0xff]
  %v1170 = vld [vmem:[#allocation2 + $0x128] sm:$0xff]
  %v1171 = vld [vmem:[#allocation2 + $0x130] sm:$0xff]
  %v1172 = vld [vmem:[#allocation2 + $0x138] sm:$0xff]
  %v1173 = vld [vmem:[#allocation2 + $0x140] sm:$0xff]
  %v1174 = vld [vmem:[#allocation2 + $0x148] sm:$0xff]
  %v1175 = vld [vmem:[#allocation2 + $0x150] sm:$0xff]
  %v1176 = vld [vmem:[#allocation2 + $0x158] sm:$0xff]
  %v1177 = vld [vmem:[#allocation2 + $0x160] sm:$0xff]
  %v1178 = vld [vmem:[#allocation2 + $0x168] sm:$0xff]
  %v1179 = vld [vmem:[#allocation2 + $0x170] sm:$0xff]
  %v1180 = vld [vmem:[#allocation2 + $0x178] sm:$0xff]
  %v1181 = vld [vmem:[#allocation2 + $0x180] sm:$0xff]
  %v1182 = vld [vmem:[#allocation2 + $0x188] sm:$0xff]
  %v1183 = vld [vmem:[#allocation2 + $0x190] sm:$0xff]
  %v1184 = vld [vmem:[#allocation2 + $0x198] sm:$0xff]
  %v1185 = vld [vmem:[#allocation2 + $0x1a0] sm:$0xff]
  %v1186 = vld [vmem:[#allocation2 + $0x1a8] sm:$0xff]
  %v1187 = vld [vmem:[#allocation2 + $0x1b0] sm:$0xff]
  %v1188 = vld [vmem:[#allocation2 + $0x1b8] sm:$0xff]
  %v1189 = vld [vmem:[#allocation2 + $0x1c0] sm:$0xff]
  %v1190 = vld [vmem:[#allocation2 + $0x1c8] sm:$0xff]
  %v1191 = vld [vmem:[#allocation2 + $0x1d0] sm:$0xff]
  %v1192 = vld [vmem:[#allocation2 + $0x1d8] sm:$0xff]
  %v1193 = vld [vmem:[#allocation2 + $0x1e0] sm:$0xff]
  %v1194 = vld [vmem:[#allocation2 + $0x1e8] sm:$0xff]
  %v1195 = vld [vmem:[#allocation2 + $0x1f0] sm:$0xff]
  %v1196 = vld [vmem:[#allocation2 + $0x1f8] sm:$0xff]
  %v1197 = vld [vmem:[#allocation2 + $0x200] sm:$0xff]
  %v1198 = vld [vmem:[#allocation2 + $0x208] sm:$0xff]
  %v1199 = vld [vmem:[#allocation2 + $0x210] sm:$0xff]
  %v1200 = vld [vmem:[#allocation2 + $0x218] sm:$0xff]
  %v1201 = vld [vmem:[#allocation2 + $0x220] sm:$0xff]
  %v1202 = vld [vmem:[#allocation2 + $0x228] sm:$0xff]
  %v1203 = vld [vmem:[#allocation2 + $0x230] sm:$0xff]
  %v1204 = vld [vmem:[#allocation2 + $0x238] sm:$0xff]
  %1206 = vset.pattern.permute.xlu0 0
  %1207 = vperm.xlu0 %1206, %v625
  %v1208 = vpop.permute.xlu0 %1207
  %1211 = vset.pattern.permute.xlu0 0
  %1212 = vperm.xlu0 %1211, %v626
  %v1213 = vpop.permute.xlu0 %1212
  %1216 = vset.pattern.permute.xlu0 0
  %1217 = vperm.xlu0 %1216, %v627
  %v1218 = vpop.permute.xlu0 %1217
  %1221 = vset.pattern.permute.xlu0 0
  %1222 = vperm.xlu0 %1221, %v628
  %v1223 = vpop.permute.xlu0 %1222
  %vm1225 = vcmask 130048
  %v1227 = vsel %vm1225, %v618, 0
  %v1230 = vsel %vm1225, %v620, 0
  %v1233 = vsel %vm1225, %v622, 0
  %v1236 = vsel %vm1225, %v624, 0
  %1238 = vmatprep.subr.mxu0 %v1134
  %1239 = vmatpush1.msra.mxu0 %v1133
  %1240 = vmatprep.subr.mxu0 %v1138
  %1241 = vmatpush1.msra.mxu0 %v1137
  %1242 = vmatprep.subr.mxu0 %v1142
  %1243 = vmatpush1.msra.mxu0 %v1141
  %1244 = vmatprep.subr.mxu0 %v1146
  %1245 = vmatpush1.msra.mxu0 %v1145
  %1246 = vmatprep.subr.mxu0 %v1150
  %1247 = vmatpush1.msra.mxu0 %v1149
  %1248 = vmatprep.subr.mxu0 %v1154
  %1249 = vmatpush1.msra.mxu0 %v1153
  %1250 = vmatprep.subr.mxu0 %v1158
  %1251 = vmatpush1.msra.mxu0 %v1157
  %1252 = vmatprep.subr.mxu0 %v1162
  %1253 = vmatpush1.msra.mxu0 %v1161
  %1254 = vmatprep.subr.mxu0 %v1166
  %1255 = vmatpush1.msra.mxu0 %v1165
  %1256 = vmatprep.subr.mxu0 %v1170
  %1257 = vmatpush1.msra.mxu0 %v1169
  %1258 = vmatprep.subr.mxu0 %v1174
  %1259 = vmatpush1.msra.mxu0 %v1173
  %1260 = vmatprep.subr.mxu0 %v1178
  %1261 = vmatpush1.msra.mxu0 %v1177
  %1262 = vmatprep.subr.mxu0 %v1182
  %1263 = vmatpush1.msra.mxu0 %v1181
  %1264 = vmatprep.subr.mxu0 %v1186
  %1265 = vmatpush1.msra.mxu0 %v1185
  %1266 = vmatprep.subr.mxu0 %v1190
  %1267 = vmatpush1.msra.mxu0 %v1189
  %1268 = vmatprep.subr.mxu0 %v1194
  %1269 = vmatpush1.msra.mxu0 %v1193
  %1270 = vmatprep.subr.mxu0 %v1198
  %1271 = vmatpush1.msra.mxu0 %v1197
  %1272 = vmatprep.subr.mxu0 %v1202
  %1273 = vmatpush1.msra.mxu0 %v1201
  %1274 = vmatprep.subr.mxu0 0.0
  %1275 = vmatpush1.msra.mxu0 0.0
  %1276 = vmatprep.subr.mxu0 0.0
  %1277 = vmatpush1.msra.mxu0 0.0
  %1278 = vmatprep.subr.mxu0 0.0
  %1279 = vmatpush1.msra.mxu0 0.0
  %1280 = vmatprep.subr.mxu0 0.0
  %1281 = vmatpush1.msra.mxu0 0.0
  %1282 = vmatprep.subr.mxu0 0.0
  %1283 = vmatpush1.msra.mxu0 0.0
  %1284 = vmatprep.subr.mxu0 0.0
  %1285 = vmatpush1.msra.mxu0 0.0
  %1286 = vmatprep.subr.mxu0 0.0
  %1287 = vmatpush1.msra.mxu0 0.0
  %1288 = vmatprep.subr.mxu0 0.0
  %1289 = vmatpush1.msra.mxu0 0.0
  %1290 = vmatprep.subr.mxu0 0.0
  %1291 = vmatpush1.msra.mxu0 0.0
  %1292 = vmatprep.subr.mxu0 0.0
  %1293 = vmatpush1.msra.mxu0 0.0
  %1294 = vmatprep.subr.mxu0 0.0
  %1295 = vmatpush1.msra.mxu0 0.0
  %1296 = vmatprep.subr.mxu0 0.0
  %1297 = vmatpush1.msra.mxu0 0.0
  %1298 = vmatprep.subr.mxu0 0.0
  %1299 = vmatpush1.msra.mxu0 0.0
  %1300 = vmatprep.subr.mxu0 0.0
  %1301 = vmatpush1.msra.mxu0 0.0
  %1302 = vmatprep.mubr.f32.mxu0 %v1227
  %1303 = vmatmul.mubr.f32.gmra.mrb[0].mxu0 %v617
  %v1304 = vpop.f32.mrb[0].mxu0
  %v1305 = vadd.f32 %v1208, %v1304
  %v1306 = vpop.f32.mrb[0].mxu0
  %v1307 = vadd.f32 %v1208, %v1306
  %1308 = vmatprep.mubr.f32.mxu0 %v1230
  %1309 = vmatmul.mubr.f32.gmra.mrb[0].mxu0 %v619
  %v1310 = vpop.f32.mrb[0].mxu0
  %v1311 = vadd.f32 %v1213, %v1310
  %v1312 = vpop.f32.mrb[0].mxu0
  %v1313 = vadd.f32 %v1213, %v1312
  %1314 = vmatprep.mubr.f32.mxu0 %v1233
  %1315 = vmatmul.mubr.f32.gmra.mrb[0].mxu0 %v621
  %v1316 = vpop.f32.mrb[0].mxu0
  %v1317 = vadd.f32 %v1218, %v1316
  %v1318 = vpop.f32.mrb[0].mxu0
  %v1319 = vadd.f32 %v1218, %v1318
  %1320 = vmatprep.mubr.f32.mxu0 %v1236
  %1321 = vmatmul.mubr.f32.gmra.mrb[0].mxu0 %v623
  %v1322 = vpop.f32.mrb[0].mxu0
  %v1323 = vadd.f32 %v1223, %v1322
  %v1324 = vpop.f32.mrb[0].mxu0
  %v1325 = vadd.f32 %v1223, %v1324
  %1326 = vdwg.mxu0
  %1327 = vmatprep.subr.mxu0 %v1136
  %1328 = vmatpush1.msra.mxu0 %v1135
  %1329 = vmatprep.subr.mxu0 %v1140
  %1330 = vmatpush1.msra.mxu0 %v1139
  %1331 = vmatprep.subr.mxu0 %v1144
  %1332 = vmatpush1.msra.mxu0 %v1143
  %1333 = vmatprep.subr.mxu0 %v1148
  %1334 = vmatpush1.msra.mxu0 %v1147
  %1335 = vmatprep.subr.mxu0 %v1152
  %1336 = vmatpush1.msra.mxu0 %v1151
  %1337 = vmatprep.subr.mxu0 %v1156
  %1338 = vmatpush1.msra.mxu0 %v1155
  %1339 = vmatprep.subr.mxu0 %v1160
  %1340 = vmatpush1.msra.mxu0 %v1159
  %1341 = vmatprep.subr.mxu0 %v1164
  %1342 = vmatpush1.msra.mxu0 %v1163
  %1343 = vmatprep.subr.mxu0 %v1168
  %1344 = vmatpush1.msra.mxu0 %v1167
  %1345 = vmatprep.subr.mxu0 %v1172
  %1346 = vmatpush1.msra.mxu0 %v1171
  %1347 = vmatprep.subr.mxu0 %v1176
  %1348 = vmatpush1.msra.mxu0 %v1175
  %1349 = vmatprep.subr.mxu0 %v1180
  %1350 = vmatpush1.msra.mxu0 %v1179
  %1351 = vmatprep.subr.mxu0 %v1184
  %1352 = vmatpush1.msra.mxu0 %v1183
  %1353 = vmatprep.subr.mxu0 %v1188
  %1354 = vmatpush1.msra.mxu0 %v1187
  %1355 = vmatprep.subr.mxu0 %v1192
  %1356 = vmatpush1.msra.mxu0 %v1191
  %1357 = vmatprep.subr.mxu0 %v1196
  %1358 = vmatpush1.msra.mxu0 %v1195
  %1359 = vmatprep.subr.mxu0 %v1200
  %1360 = vmatpush1.msra.mxu0 %v1199
  %1361 = vmatprep.subr.mxu0 %v1204
  %1362 = vmatpush1.msra.mxu0 %v1203
  %1363 = vmatprep.subr.mxu0 0.0
  %1364 = vmatpush1.msra.mxu0 0.0
  %1365 = vmatprep.subr.mxu0 0.0
  %1366 = vmatpush1.msra.mxu0 0.0
  %1367 = vmatprep.subr.mxu0 0.0
  %1368 = vmatpush1.msra.mxu0 0.0
  %1369 = vmatprep.subr.mxu0 0.0
  %1370 = vmatpush1.msra.mxu0 0.0
  %1371 = vmatprep.subr.mxu0 0.0
  %1372 = vmatpush1.msra.mxu0 0.0
  %1373 = vmatprep.subr.mxu0 0.0
  %1374 = vmatpush1.msra.mxu0 0.0
  %1375 = vmatprep.subr.mxu0 0.0
  %1376 = vmatpush1.msra.mxu0 0.0
  %1377 = vmatprep.subr.mxu0 0.0
  %1378 = vmatpush1.msra.mxu0 0.0
  %1379 = vmatprep.subr.mxu0 0.0
  %1380 = vmatpush1.msra.mxu0 0.0
  %1381 = vmatprep.subr.mxu0 0.0
  %1382 = vmatpush1.msra.mxu0 0.0
  %1383 = vmatprep.subr.mxu0 0.0
  %1384 = vmatpush1.msra.mxu0 0.0
  %1385 = vmatprep.subr.mxu0 0.0
  %1386 = vmatpush1.msra.mxu0 0.0
  %1387 = vmatprep.subr.mxu0 0.0
  %1388 = vmatpush1.msra.mxu0 0.0
  %1389 = vmatprep.subr.mxu0 0.0
  %1390 = vmatpush1.msra.mxu0 0.0
  %1391 = vmatprep.mubr.f32.mxu0 %v1227
  %1392 = vmatmul.mubr.f32.gmra.mrb[0].mxu0 %v617
  %v1393 = vpop.f32.mrb[0].mxu0
  %v1394 = vadd.f32 %v1208, %v1393
  %v1395 = vpop.f32.mrb[0].mxu0
  %v1396 = vadd.f32 %v1208, %v1395
  %1397 = vmatprep.mubr.f32.mxu0 %v1230
  %1398 = vmatmul.mubr.f32.gmra.mrb[0].mxu0 %v619
  %v1399 = vpop.f32.mrb[0].mxu0
  %v1400 = vadd.f32 %v1213, %v1399
  %v1401 = vpop.f32.mrb[0].mxu0
  %v1402 = vadd.f32 %v1213, %v1401
  %1403 = vmatprep.mubr.f32.mxu0 %v1233
  %1404 = vmatmul.mubr.f32.gmra.mrb[0].mxu0 %v621
  %v1405 = vpop.f32.mrb[0].mxu0
  %v1406 = vadd.f32 %v1218, %v1405
  %v1407 = vpop.f32.mrb[0].mxu0
  %v1408 = vadd.f32 %v1218, %v1407
  %1409 = vmatprep.mubr.f32.mxu0 %v1236
  %1410 = vmatmul.mubr.f32.gmra.mrb[0].mxu0 %v623
  %v1411 = vpop.f32.mrb[0].mxu0
  %v1412 = vadd.f32 %v1223, %v1411
  %v1413 = vpop.f32.mrb[0].mxu0
  %v1414 = vadd.f32 %v1223, %v1413
  %1415 = vdwg.mxu0
  %v1416 = vmax.f32 %v1305, 0.0
  %v1417 = vmax.f32 %v1307, 0.0
  %v1418 = vmax.f32 %v1394, 0.0
  %v1419 = vmax.f32 %v1396, 0.0
  %v1420 = vmax.f32 %v1311, 0.0
  %v1421 = vmax.f32 %v1313, 0.0
  %v1422 = vmax.f32 %v1400, 0.0
  %v1423 = vmax.f32 %v1402, 0.0
  %v1424 = vmax.f32 %v1317, 0.0
  %v1425 = vmax.f32 %v1319, 0.0
  %v1426 = vmax.f32 %v1406, 0.0
  %v1427 = vmax.f32 %v1408, 0.0
  %v1428 = vmax.f32 %v1323, 0.0
  %v1429 = vmax.f32 %v1325, 0.0
  %v1430 = vmax.f32 %v1412, 0.0
  %v1431 = vmax.f32 %v1414, 0.0
  %v1432 = vld [vmem:[%s6] sm:$0xff]
  %v1433 = vld [vmem:[%s6 + $0x8] sm:$0xff]
  %v1434 = vld [vmem:[%s6 + $0x10] sm:$0xff]
  %v1435 = vld [vmem:[%s6 + $0x18] sm:$0xff]
  %v1436 = vld [vmem:[%s6 + $0x20] sm:$0xff]
  %v1437 = vld [vmem:[%s6 + $0x28] sm:$0xff]
  %v1438 = vld [vmem:[%s7] sm:$0xff]
  %v1439 = vld [vmem:[%s7 + $0x8] sm:$0xff]
  %1440 = vrot.lane.b32.xlu0 %v1416, 17
  %v1441 = vpop.permute.xlu0 %1440
  %1442 = vrot.lane.b32.xlu0 %v1420, 17
  %v1443 = vpop.permute.xlu0 %1442
  %1444 = vrot.lane.b32.xlu0 %v1424, 17
  %v1445 = vpop.permute.xlu0 %1444
  %1446 = vrot.lane.b32.xlu0 %v1428, 17
  %v1447 = vpop.permute.xlu0 %1446
  %1448 = vrot.lane.b32.xlu0 %v1417, 17
  %v1449 = vpop.permute.xlu0 %1448
  %1450 = vrot.lane.b32.xlu0 %v1421, 17
  %v1451 = vpop.permute.xlu0 %1450
  %1452 = vrot.lane.b32.xlu0 %v1425, 17
  %v1453 = vpop.permute.xlu0 %1452
  %1454 = vrot.lane.b32.xlu0 %v1429, 17
  %v1455 = vpop.permute.xlu0 %1454
  %1456 = vrot.lane.b32.xlu0 %v1418, 17
  %v1457 = vpop.permute.xlu0 %1456
  %1458 = vrot.lane.b32.xlu0 %v1422, 17
  %v1459 = vpop.permute.xlu0 %1458
  %1460 = vrot.lane.b32.xlu0 %v1426, 17
  %v1461 = vpop.permute.xlu0 %1460
  %1462 = vrot.lane.b32.xlu0 %v1430, 17
  %v1463 = vpop.permute.xlu0 %1462
  %1464 = vrot.lane.b32.xlu0 %v1419, 17
  %v1465 = vpop.permute.xlu0 %1464
  %1466 = vrot.lane.b32.xlu0 %v1423, 17
  %v1467 = vpop.permute.xlu0 %1466
  %1468 = vrot.lane.b32.xlu0 %v1427, 17
  %v1469 = vpop.permute.xlu0 %1468
  %1470 = vrot.lane.b32.xlu0 %v1431, 17
  %v1471 = vpop.permute.xlu0 %1470
  %v1472 = vsel %vm55, %v1457, %v1465
  %v1473 = vsel %vm55, %v1459, %v1467
  %v1474 = vsel %vm55, %v1461, %v1469
  %v1475 = vsel %vm55, %v1463, %v1471
  %v1476 = vsel %vm55, %v1449, %v1457
  %v1477 = vsel %vm55, %v1451, %v1459
  %v1478 = vsel %vm55, %v1453, %v1461
  %v1479 = vsel %vm55, %v1455, %v1463
  %v1480 = vsel %vm55, %v1441, %v1449
  %v1481 = vsel %vm55, %v1443, %v1451
  %v1482 = vsel %vm55, %v1445, %v1453
  %v1483 = vsel %vm55, %v1447, %v1455
  %v1484 = vsel %vm55, %v1465, %v1441
  %v1485 = vsel %vm55, %v1467, %v1443
  %v1486 = vsel %vm55, %v1469, %v1445
  %v1487 = vsel %vm55, %v1471, %v1447
  %v1488 = vld [vmem:[%s1] ss:$8 sm:$0xf]
  %v1490 = vlaneseq
  %v1491 = vshrl.u32 %v1490, 7
  %v1492 = vsub.s32 0, %v1491
  %v1493 = vrot.slane %v1488, %v1492
  %v1494 = vlaneseq
  %v1495 = vshrl.u32 %v1494, 7
  %v1496 = vsub.s32 1, %v1495
  %v1497 = vrot.slane %v1488, %v1496
  %v1498 = vlaneseq
  %v1499 = vshrl.u32 %v1498, 7
  %v1500 = vsub.s32 2, %v1499
  %v1501 = vrot.slane %v1488, %v1500
  %v1502 = vlaneseq
  %v1503 = vshrl.u32 %v1502, 7
  %v1504 = vsub.s32 3, %v1503
  %v1505 = vrot.slane %v1488, %v1504
  %v1510 = vmul.f32 %v1484, %v1493
  %v1511 = vmul.f32 %v1480, %v1497
  %v1512 = vmul.f32 %v1476, %v1501
  %v1513 = vmul.f32 %v1472, %v1505
  %v1514 = vmul.f32 %v1485, %v1493
  %v1515 = vmul.f32 %v1481, %v1497
  %v1516 = vmul.f32 %v1477, %v1501
  %v1517 = vmul.f32 %v1473, %v1505
  %v1518 = vmul.f32 %v1486, %v1493
  %v1519 = vmul.f32 %v1482, %v1497
  %v1520 = vmul.f32 %v1478, %v1501
  %v1521 = vmul.f32 %v1474, %v1505
  %v1522 = vmul.f32 %v1487, %v1493
  %v1523 = vmul.f32 %v1483, %v1497
  %v1524 = vmul.f32 %v1479, %v1501
  %v1525 = vmul.f32 %v1475, %v1505
  %1526 = vst [vmem:[#allocation2] sm:$0xff] %v1510
  %1527 = vst [vmem:[#allocation2 + $0x8] sm:$0xff] %v1511
  %1528 = vst [vmem:[#allocation2 + $0x10] sm:$0xff] %v1512
  %1529 = vst [vmem:[#allocation2 + $0x18] sm:$0xff] %v1513
  %1530 = vst [vmem:[#allocation2 + $0x20] sm:$0xff] %v1514
  %1531 = vst [vmem:[#allocation2 + $0x28] sm:$0xff] %v1515
  %1532 = vst [vmem:[#allocation2 + $0x30] sm:$0xff] %v1516
  %1533 = vst [vmem:[#allocation2 + $0x38] sm:$0xff] %v1517
  %1534 = vst [vmem:[#allocation2 + $0x40] sm:$0xff] %v1518
  %1535 = vst [vmem:[#allocation2 + $0x48] sm:$0xff] %v1519
  %1536 = vst [vmem:[#allocation2 + $0x50] sm:$0xff] %v1520
  %1537 = vst [vmem:[#allocation2 + $0x58] sm:$0xff] %v1521
  %1538 = vst [vmem:[#allocation2 + $0x60] sm:$0xff] %v1522
  %1539 = vst [vmem:[#allocation2 + $0x68] sm:$0xff] %v1523
  %1540 = vst [vmem:[#allocation2 + $0x70] sm:$0xff] %v1524
  %1541 = vst [vmem:[#allocation2 + $0x78] sm:$0xff] %v1525
  %1542 = vrot.lane.b32.xlu0 %v1416, 16
  %v1543 = vpop.permute.xlu0 %1542
  %1544 = vrot.lane.b32.xlu0 %v1420, 16
  %v1545 = vpop.permute.xlu0 %1544
  %1546 = vrot.lane.b32.xlu0 %v1424, 16
  %v1547 = vpop.permute.xlu0 %1546
  %1548 = vrot.lane.b32.xlu0 %v1428, 16
  %v1549 = vpop.permute.xlu0 %1548
  %1550 = vrot.lane.b32.xlu0 %v1417, 16
  %v1551 = vpop.permute.xlu0 %1550
  %1552 = vrot.lane.b32.xlu0 %v1421, 16
  %v1553 = vpop.permute.xlu0 %1552
  %1554 = vrot.lane.b32.xlu0 %v1425, 16
  %v1555 = vpop.permute.xlu0 %1554
  %1556 = vrot.lane.b32.xlu0 %v1429, 16
  %v1557 = vpop.permute.xlu0 %1556
  %1558 = vrot.lane.b32.xlu0 %v1418, 16
  %v1559 = vpop.permute.xlu0 %1558
  %1560 = vrot.lane.b32.xlu0 %v1422, 16
  %v1561 = vpop.permute.xlu0 %1560
  %1562 = vrot.lane.b32.xlu0 %v1426, 16
  %v1563 = vpop.permute.xlu0 %1562
  %1564 = vrot.lane.b32.xlu0 %v1430, 16
  %v1565 = vpop.permute.xlu0 %1564
  %1566 = vrot.lane.b32.xlu0 %v1419, 16
  %v1567 = vpop.permute.xlu0 %1566
  %1568 = vrot.lane.b32.xlu0 %v1423, 16
  %v1569 = vpop.permute.xlu0 %1568
  %1570 = vrot.lane.b32.xlu0 %v1427, 16
  %v1571 = vpop.permute.xlu0 %1570
  %1572 = vrot.lane.b32.xlu0 %v1431, 16
  %v1573 = vpop.permute.xlu0 %1572
  %v1574 = vsel %vm98, %v1559, %v1567
  %v1575 = vsel %vm98, %v1561, %v1569
  %v1576 = vsel %vm98, %v1563, %v1571
  %v1577 = vsel %vm98, %v1565, %v1573
  %v1578 = vsel %vm98, %v1551, %v1559
  %v1579 = vsel %vm98, %v1553, %v1561
  %v1580 = vsel %vm98, %v1555, %v1563
  %v1581 = vsel %vm98, %v1557, %v1565
  %v1582 = vsel %vm98, %v1543, %v1551
  %v1583 = vsel %vm98, %v1545, %v1553
  %v1584 = vsel %vm98, %v1547, %v1555
  %v1585 = vsel %vm98, %v1549, %v1557
  %v1586 = vsel %vm98, %v1567, %v1543
  %v1587 = vsel %vm98, %v1569, %v1545
  %v1588 = vsel %vm98, %v1571, %v1547
  %v1589 = vsel %vm98, %v1573, %v1549
  %v1590 = vld [vmem:[%s103] ss:$8 sm:$0xf]
  %v1592 = vlaneseq
  %v1593 = vshrl.u32 %v1592, 7
  %v1594 = vsub.s32 0, %v1593
  %v1595 = vrot.slane %v1590, %v1594
  %v1596 = vlaneseq
  %v1597 = vshrl.u32 %v1596, 7
  %v1598 = vsub.s32 1, %v1597
  %v1599 = vrot.slane %v1590, %v1598
  %v1600 = vlaneseq
  %v1601 = vshrl.u32 %v1600, 7
  %v1602 = vsub.s32 2, %v1601
  %v1603 = vrot.slane %v1590, %v1602
  %v1604 = vlaneseq
  %v1605 = vshrl.u32 %v1604, 7
  %v1606 = vsub.s32 3, %v1605
  %v1607 = vrot.slane %v1590, %v1606
  %v1612 = vmul.f32 %v1586, %v1595
  %v1613 = vmul.f32 %v1582, %v1599
  %v1614 = vmul.f32 %v1578, %v1603
  %v1615 = vmul.f32 %v1574, %v1607
  %v1616 = vmul.f32 %v1587, %v1595
  %v1617 = vmul.f32 %v1583, %v1599
  %v1618 = vmul.f32 %v1579, %v1603
  %v1619 = vmul.f32 %v1575, %v1607
  %v1620 = vmul.f32 %v1588, %v1595
  %v1621 = vmul.f32 %v1584, %v1599
  %v1622 = vmul.f32 %v1580, %v1603
  %v1623 = vmul.f32 %v1576, %v1607
  %v1624 = vmul.f32 %v1589, %v1595
  %v1625 = vmul.f32 %v1585, %v1599
  %v1626 = vmul.f32 %v1581, %v1603
  %v1627 = vmul.f32 %v1577, %v1607
  %1628 = vst [vmem:[#allocation2 + $0x80] sm:$0xff] %v1612
  %1629 = vst [vmem:[#allocation2 + $0x88] sm:$0xff] %v1613
  %1630 = vst [vmem:[#allocation2 + $0x90] sm:$0xff] %v1614
  %1631 = vst [vmem:[#allocation2 + $0x98] sm:$0xff] %v1615
  %1632 = vst [vmem:[#allocation2 + $0xa0] sm:$0xff] %v1616
  %1633 = vst [vmem:[#allocation2 + $0xa8] sm:$0xff] %v1617
  %1634 = vst [vmem:[#allocation2 + $0xb0] sm:$0xff] %v1618
  %1635 = vst [vmem:[#allocation2 + $0xb8] sm:$0xff] %v1619
  %1636 = vst [vmem:[#allocation2 + $0xc0] sm:$0xff] %v1620
  %1637 = vst [vmem:[#allocation2 + $0xc8] sm:$0xff] %v1621
  %1638 = vst [vmem:[#allocation2 + $0xd0] sm:$0xff] %v1622
  %1639 = vst [vmem:[#allocation2 + $0xd8] sm:$0xff] %v1623
  %1640 = vst [vmem:[#allocation2 + $0xe0] sm:$0xff] %v1624
  %1641 = vst [vmem:[#allocation2 + $0xe8] sm:$0xff] %v1625
  %1642 = vst [vmem:[#allocation2 + $0xf0] sm:$0xff] %v1626
  %1643 = vst [vmem:[#allocation2 + $0xf8] sm:$0xff] %v1627
  %1644 = vrot.lane.b32.xlu0 %v1416, 15
  %v1645 = vpop.permute.xlu0 %1644
  %1646 = vrot.lane.b32.xlu0 %v1420, 15
  %v1647 = vpop.permute.xlu0 %1646
  %1648 = vrot.lane.b32.xlu0 %v1424, 15
  %v1649 = vpop.permute.xlu0 %1648
  %1650 = vrot.lane.b32.xlu0 %v1428, 15
  %v1651 = vpop.permute.xlu0 %1650
  %1652 = vrot.lane.b32.xlu0 %v1417, 15
  %v1653 = vpop.permute.xlu0 %1652
  %1654 = vrot.lane.b32.xlu0 %v1421, 15
  %v1655 = vpop.permute.xlu0 %1654
  %1656 = vrot.lane.b32.xlu0 %v1425, 15
  %v1657 = vpop.permute.xlu0 %1656
  %1658 = vrot.lane.b32.xlu0 %v1429, 15
  %v1659 = vpop.permute.xlu0 %1658
  %1660 = vrot.lane.b32.xlu0 %v1418, 15
  %v1661 = vpop.permute.xlu0 %1660
  %1662 = vrot.lane.b32.xlu0 %v1422, 15
  %v1663 = vpop.permute.xlu0 %1662
  %1664 = vrot.lane.b32.xlu0 %v1426, 15
  %v1665 = vpop.permute.xlu0 %1664
  %1666 = vrot.lane.b32.xlu0 %v1430, 15
  %v1667 = vpop.permute.xlu0 %1666
  %1668 = vrot.lane.b32.xlu0 %v1419, 15
  %v1669 = vpop.permute.xlu0 %1668
  %1670 = vrot.lane.b32.xlu0 %v1423, 15
  %v1671 = vpop.permute.xlu0 %1670
  %1672 = vrot.lane.b32.xlu0 %v1427, 15
  %v1673 = vpop.permute.xlu0 %1672
  %1674 = vrot.lane.b32.xlu0 %v1431, 15
  %v1675 = vpop.permute.xlu0 %1674
  %v1676 = vsel %vm142, %v1661, %v1669
  %v1677 = vsel %vm142, %v1663, %v1671
  %v1678 = vsel %vm142, %v1665, %v1673
  %v1679 = vsel %vm142, %v1667, %v1675
  %v1680 = vsel %vm142, %v1653, %v1661
  %v1681 = vsel %vm142, %v1655, %v1663
  %v1682 = vsel %vm142, %v1657, %v1665
  %v1683 = vsel %vm142, %v1659, %v1667
  %v1684 = vsel %vm142, %v1645, %v1653
  %v1685 = vsel %vm142, %v1647, %v1655
  %v1686 = vsel %vm142, %v1649, %v1657
  %v1687 = vsel %vm142, %v1651, %v1659
  %v1688 = vsel %vm142, %v1669, %v1645
  %v1689 = vsel %vm142, %v1671, %v1647
  %v1690 = vsel %vm142, %v1673, %v1649
  %v1691 = vsel %vm142, %v1675, %v1651
  %v1692 = vld [vmem:[%s147] ss:$8 sm:$0xf]
  %v1694 = vlaneseq
  %v1695 = vshrl.u32 %v1694, 7
  %v1696 = vsub.s32 0, %v1695
  %v1697 = vrot.slane %v1692, %v1696
  %v1698 = vlaneseq
  %v1699 = vshrl.u32 %v1698, 7
  %v1700 = vsub.s32 1, %v1699
  %v1701 = vrot.slane %v1692, %v1700
  %v1702 = vlaneseq
  %v1703 = vshrl.u32 %v1702, 7
  %v1704 = vsub.s32 2, %v1703
  %v1705 = vrot.slane %v1692, %v1704
  %v1706 = vlaneseq
  %v1707 = vshrl.u32 %v1706, 7
  %v1708 = vsub.s32 3, %v1707
  %v1709 = vrot.slane %v1692, %v1708
  %v1714 = vmul.f32 %v1688, %v1697
  %v1715 = vmul.f32 %v1684, %v1701
  %v1716 = vmul.f32 %v1680, %v1705
  %v1717 = vmul.f32 %v1676, %v1709
  %v1718 = vmul.f32 %v1689, %v1697
  %v1719 = vmul.f32 %v1685, %v1701
  %v1720 = vmul.f32 %v1681, %v1705
  %v1721 = vmul.f32 %v1677, %v1709
  %v1722 = vmul.f32 %v1690, %v1697
  %v1723 = vmul.f32 %v1686, %v1701
  %v1724 = vmul.f32 %v1682, %v1705
  %v1725 = vmul.f32 %v1678, %v1709
  %v1726 = vmul.f32 %v1691, %v1697
  %v1727 = vmul.f32 %v1687, %v1701
  %v1728 = vmul.f32 %v1683, %v1705
  %v1729 = vmul.f32 %v1679, %v1709
  %1730 = vst [vmem:[#allocation2 + $0x100] sm:$0xff] %v1714
  %1731 = vst [vmem:[#allocation2 + $0x108] sm:$0xff] %v1715
  %1732 = vst [vmem:[#allocation2 + $0x110] sm:$0xff] %v1716
  %1733 = vst [vmem:[#allocation2 + $0x118] sm:$0xff] %v1717
  %1734 = vst [vmem:[#allocation2 + $0x120] sm:$0xff] %v1718
  %1735 = vst [vmem:[#allocation2 + $0x128] sm:$0xff] %v1719
  %1736 = vst [vmem:[#allocation2 + $0x130] sm:$0xff] %v1720
  %1737 = vst [vmem:[#allocation2 + $0x138] sm:$0xff] %v1721
  %1738 = vst [vmem:[#allocation2 + $0x140] sm:$0xff] %v1722
  %1739 = vst [vmem:[#allocation2 + $0x148] sm:$0xff] %v1723
  %1740 = vst [vmem:[#allocation2 + $0x150] sm:$0xff] %v1724
  %1741 = vst [vmem:[#allocation2 + $0x158] sm:$0xff] %v1725
  %1742 = vst [vmem:[#allocation2 + $0x160] sm:$0xff] %v1726
  %1743 = vst [vmem:[#allocation2 + $0x168] sm:$0xff] %v1727
  %1744 = vst [vmem:[#allocation2 + $0x170] sm:$0xff] %v1728
  %1745 = vst [vmem:[#allocation2 + $0x178] sm:$0xff] %v1729
  %1746 = vrot.lane.b32.xlu0 %v1416, 1
  %v1747 = vpop.permute.xlu0 %1746
  %1748 = vrot.lane.b32.xlu0 %v1420, 1
  %v1749 = vpop.permute.xlu0 %1748
  %1750 = vrot.lane.b32.xlu0 %v1424, 1
  %v1751 = vpop.permute.xlu0 %1750
  %1752 = vrot.lane.b32.xlu0 %v1428, 1
  %v1753 = vpop.permute.xlu0 %1752
  %1754 = vrot.lane.b32.xlu0 %v1417, 1
  %v1755 = vpop.permute.xlu0 %1754
  %1756 = vrot.lane.b32.xlu0 %v1421, 1
  %v1757 = vpop.permute.xlu0 %1756
  %1758 = vrot.lane.b32.xlu0 %v1425, 1
  %v1759 = vpop.permute.xlu0 %1758
  %1760 = vrot.lane.b32.xlu0 %v1429, 1
  %v1761 = vpop.permute.xlu0 %1760
  %1762 = vrot.lane.b32.xlu0 %v1418, 1
  %v1763 = vpop.permute.xlu0 %1762
  %1764 = vrot.lane.b32.xlu0 %v1422, 1
  %v1765 = vpop.permute.xlu0 %1764
  %1766 = vrot.lane.b32.xlu0 %v1426, 1
  %v1767 = vpop.permute.xlu0 %1766
  %1768 = vrot.lane.b32.xlu0 %v1430, 1
  %v1769 = vpop.permute.xlu0 %1768
  %1770 = vrot.lane.b32.xlu0 %v1419, 1
  %v1771 = vpop.permute.xlu0 %1770
  %1772 = vrot.lane.b32.xlu0 %v1423, 1
  %v1773 = vpop.permute.xlu0 %1772
  %1774 = vrot.lane.b32.xlu0 %v1427, 1
  %v1775 = vpop.permute.xlu0 %1774
  %1776 = vrot.lane.b32.xlu0 %v1431, 1
  %v1777 = vpop.permute.xlu0 %1776
  %v1778 = vsel %vm186, %v1763, %v1771
  %v1779 = vsel %vm186, %v1765, %v1773
  %v1780 = vsel %vm186, %v1767, %v1775
  %v1781 = vsel %vm186, %v1769, %v1777
  %v1782 = vsel %vm186, %v1755, %v1763
  %v1783 = vsel %vm186, %v1757, %v1765
  %v1784 = vsel %vm186, %v1759, %v1767
  %v1785 = vsel %vm186, %v1761, %v1769
  %v1786 = vsel %vm186, %v1747, %v1755
  %v1787 = vsel %vm186, %v1749, %v1757
  %v1788 = vsel %vm186, %v1751, %v1759
  %v1789 = vsel %vm186, %v1753, %v1761
  %v1790 = vsel %vm186, %v1771, %v1747
  %v1791 = vsel %vm186, %v1773, %v1749
  %v1792 = vsel %vm186, %v1775, %v1751
  %v1793 = vsel %vm186, %v1777, %v1753
  %v1794 = vld [vmem:[%s191] ss:$8 sm:$0xf]
  %v1796 = vlaneseq
  %v1797 = vshrl.u32 %v1796, 7
  %v1798 = vsub.s32 0, %v1797
  %v1799 = vrot.slane %v1794, %v1798
  %v1800 = vlaneseq
  %v1801 = vshrl.u32 %v1800, 7
  %v1802 = vsub.s32 1, %v1801
  %v1803 = vrot.slane %v1794, %v1802
  %v1804 = vlaneseq
  %v1805 = vshrl.u32 %v1804, 7
  %v1806 = vsub.s32 2, %v1805
  %v1807 = vrot.slane %v1794, %v1806
  %v1808 = vlaneseq
  %v1809 = vshrl.u32 %v1808, 7
  %v1810 = vsub.s32 3, %v1809
  %v1811 = vrot.slane %v1794, %v1810
  %v1816 = vmul.f32 %v1790, %v1799
  %v1817 = vmul.f32 %v1786, %v1803
  %v1818 = vmul.f32 %v1782, %v1807
  %v1819 = vmul.f32 %v1778, %v1811
  %v1820 = vmul.f32 %v1791, %v1799
  %v1821 = vmul.f32 %v1787, %v1803
  %v1822 = vmul.f32 %v1783, %v1807
  %v1823 = vmul.f32 %v1779, %v1811
  %v1824 = vmul.f32 %v1792, %v1799
  %v1825 = vmul.f32 %v1788, %v1803
  %v1826 = vmul.f32 %v1784, %v1807
  %v1827 = vmul.f32 %v1780, %v1811
  %v1828 = vmul.f32 %v1793, %v1799
  %v1829 = vmul.f32 %v1789, %v1803
  %v1830 = vmul.f32 %v1785, %v1807
  %v1831 = vmul.f32 %v1781, %v1811
  %1832 = vst [vmem:[#allocation2 + $0x180] sm:$0xff] %v1816
  %1833 = vst [vmem:[#allocation2 + $0x188] sm:$0xff] %v1817
  %1834 = vst [vmem:[#allocation2 + $0x190] sm:$0xff] %v1818
  %1835 = vst [vmem:[#allocation2 + $0x198] sm:$0xff] %v1819
  %1836 = vst [vmem:[#allocation2 + $0x1a0] sm:$0xff] %v1820
  %1837 = vst [vmem:[#allocation2 + $0x1a8] sm:$0xff] %v1821
  %1838 = vst [vmem:[#allocation2 + $0x1b0] sm:$0xff] %v1822
  %1839 = vst [vmem:[#allocation2 + $0x1b8] sm:$0xff] %v1823
  %1840 = vst [vmem:[#allocation2 + $0x1c0] sm:$0xff] %v1824
  %1841 = vst [vmem:[#allocation2 + $0x1c8] sm:$0xff] %v1825
  %1842 = vst [vmem:[#allocation2 + $0x1d0] sm:$0xff] %v1826
  %1843 = vst [vmem:[#allocation2 + $0x1d8] sm:$0xff] %v1827
  %1844 = vst [vmem:[#allocation2 + $0x1e0] sm:$0xff] %v1828
  %1845 = vst [vmem:[#allocation2 + $0x1e8] sm:$0xff] %v1829
  %1846 = vst [vmem:[#allocation2 + $0x1f0] sm:$0xff] %v1830
  %1847 = vst [vmem:[#allocation2 + $0x1f8] sm:$0xff] %v1831
  %1848 = vst [vmem:[#allocation2 + $0x200] sm:$0xff] %v1416
  %1849 = vst [vmem:[#allocation2 + $0x208] sm:$0xff] %v1417
  %1850 = vst [vmem:[#allocation2 + $0x210] sm:$0xff] %v1418
  %1851 = vst [vmem:[#allocation2 + $0x218] sm:$0xff] %v1419
  %1852 = vst [vmem:[#allocation2 + $0x220] sm:$0xff] %v1420
  %1853 = vst [vmem:[#allocation2 + $0x228] sm:$0xff] %v1421
  %1854 = vst [vmem:[#allocation2 + $0x230] sm:$0xff] %v1422
  %1855 = vst [vmem:[#allocation2 + $0x238] sm:$0xff] %v1423
  %1856 = vst [vmem:[#allocation2 + $0x240] sm:$0xff] %v1424
  %1857 = vst [vmem:[#allocation2 + $0x248] sm:$0xff] %v1425
  %1858 = vst [vmem:[#allocation2 + $0x250] sm:$0xff] %v1426
  %1859 = vst [vmem:[#allocation2 + $0x258] sm:$0xff] %v1427
  %1860 = vst [vmem:[#allocation2 + $0x260] sm:$0xff] %v1428
  %1861 = vst [vmem:[#allocation2 + $0x268] sm:$0xff] %v1429
  %1862 = vst [vmem:[#allocation2 + $0x270] sm:$0xff] %v1430
  %1863 = vst [vmem:[#allocation2 + $0x278] sm:$0xff] %v1431
  %1864 = vrot.lane.b32.xlu0 %v1416, 127
  %v1865 = vpop.permute.xlu0 %1864
  %1866 = vrot.lane.b32.xlu0 %v1420, 127
  %v1867 = vpop.permute.xlu0 %1866
  %1868 = vrot.lane.b32.xlu0 %v1424, 127
  %v1869 = vpop.permute.xlu0 %1868
  %1870 = vrot.lane.b32.xlu0 %v1428, 127
  %v1871 = vpop.permute.xlu0 %1870
  %1872 = vrot.lane.b32.xlu0 %v1417, 127
  %v1873 = vpop.permute.xlu0 %1872
  %1874 = vrot.lane.b32.xlu0 %v1421, 127
  %v1875 = vpop.permute.xlu0 %1874
  %1876 = vrot.lane.b32.xlu0 %v1425, 127
  %v1877 = vpop.permute.xlu0 %1876
  %1878 = vrot.lane.b32.xlu0 %v1429, 127
  %v1879 = vpop.permute.xlu0 %1878
  %1880 = vrot.lane.b32.xlu0 %v1418, 127
  %v1881 = vpop.permute.xlu0 %1880
  %1882 = vrot.lane.b32.xlu0 %v1422, 127
  %v1883 = vpop.permute.xlu0 %1882
  %1884 = vrot.lane.b32.xlu0 %v1426, 127
  %v1885 = vpop.permute.xlu0 %1884
  %1886 = vrot.lane.b32.xlu0 %v1430, 127
  %v1887 = vpop.permute.xlu0 %1886
  %1888 = vrot.lane.b32.xlu0 %v1419, 127
  %v1889 = vpop.permute.xlu0 %1888
  %1890 = vrot.lane.b32.xlu0 %v1423, 127
  %v1891 = vpop.permute.xlu0 %1890
  %1892 = vrot.lane.b32.xlu0 %v1427, 127
  %v1893 = vpop.permute.xlu0 %1892
  %1894 = vrot.lane.b32.xlu0 %v1431, 127
  %v1895 = vpop.permute.xlu0 %1894
  %v1896 = vsel %vm234, %v1881, %v1889
  %v1897 = vsel %vm234, %v1883, %v1891
  %v1898 = vsel %vm234, %v1885, %v1893
  %v1899 = vsel %vm234, %v1887, %v1895
  %v1900 = vsel %vm234, %v1873, %v1881
  %v1901 = vsel %vm234, %v1875, %v1883
  %v1902 = vsel %vm234, %v1877, %v1885
  %v1903 = vsel %vm234, %v1879, %v1887
  %v1904 = vsel %vm234, %v1865, %v1873
  %v1905 = vsel %vm234, %v1867, %v1875
  %v1906 = vsel %vm234, %v1869, %v1877
  %v1907 = vsel %vm234, %v1871, %v1879
  %v1908 = vsel %vm234, %v1889, %v1865
  %v1909 = vsel %vm234, %v1891, %v1867
  %v1910 = vsel %vm234, %v1893, %v1869
  %v1911 = vsel %vm234, %v1895, %v1871
  %v1912 = vld [vmem:[%s239] ss:$8 sm:$0xf]
  %v1914 = vlaneseq
  %v1915 = vshrl.u32 %v1914, 7
  %v1916 = vsub.s32 0, %v1915
  %v1917 = vrot.slane %v1912, %v1916
  %v1918 = vlaneseq
  %v1919 = vshrl.u32 %v1918, 7
  %v1920 = vsub.s32 1, %v1919
  %v1921 = vrot.slane %v1912, %v1920
  %v1922 = vlaneseq
  %v1923 = vshrl.u32 %v1922, 7
  %v1924 = vsub.s32 2, %v1923
  %v1925 = vrot.slane %v1912, %v1924
  %v1926 = vlaneseq
  %v1927 = vshrl.u32 %v1926, 7
  %v1928 = vsub.s32 3, %v1927
  %v1929 = vrot.slane %v1912, %v1928
  %v1934 = vmul.f32 %v1904, %v1917
  %v1935 = vmul.f32 %v1900, %v1921
  %v1936 = vmul.f32 %v1896, %v1925
  %v1937 = vmul.f32 %v1908, %v1929
  %v1938 = vmul.f32 %v1905, %v1917
  %v1939 = vmul.f32 %v1901, %v1921
  %v1940 = vmul.f32 %v1897, %v1925
  %v1941 = vmul.f32 %v1909, %v1929
  %v1942 = vmul.f32 %v1906, %v1917
  %v1943 = vmul.f32 %v1902, %v1921
  %v1944 = vmul.f32 %v1898, %v1925
  %v1945 = vmul.f32 %v1910, %v1929
  %v1946 = vmul.f32 %v1907, %v1917
  %v1947 = vmul.f32 %v1903, %v1921
  %v1948 = vmul.f32 %v1899, %v1925
  %v1949 = vmul.f32 %v1911, %v1929
  %1950 = vst [vmem:[#allocation2 + $0x280] sm:$0xff] %v1934
  %1951 = vst [vmem:[#allocation2 + $0x288] sm:$0xff] %v1935
  %1952 = vst [vmem:[#allocation2 + $0x290] sm:$0xff] %v1936
  %1953 = vst [vmem:[#allocation2 + $0x298] sm:$0xff] %v1937
  %1954 = vst [vmem:[#allocation2 + $0x2a0] sm:$0xff] %v1938
  %1955 = vst [vmem:[#allocation2 + $0x2a8] sm:$0xff] %v1939
  %1956 = vst [vmem:[#allocation2 + $0x2b0] sm:$0xff] %v1940
  %1957 = vst [vmem:[#allocation2 + $0x2b8] sm:$0xff] %v1941
  %1958 = vst [vmem:[#allocation2 + $0x2c0] sm:$0xff] %v1942
  %1959 = vst [vmem:[#allocation2 + $0x2c8] sm:$0xff] %v1943
  %1960 = vst [vmem:[#allocation2 + $0x2d0] sm:$0xff] %v1944
  %1961 = vst [vmem:[#allocation2 + $0x2d8] sm:$0xff] %v1945
  %1962 = vst [vmem:[#allocation2 + $0x2e0] sm:$0xff] %v1946
  %1963 = vst [vmem:[#allocation2 + $0x2e8] sm:$0xff] %v1947
  %1964 = vst [vmem:[#allocation2 + $0x2f0] sm:$0xff] %v1948
  %1965 = vst [vmem:[#allocation2 + $0x2f8] sm:$0xff] %v1949
  %1966 = vrot.lane.b32.xlu0 %v1416, 113
  %v1967 = vpop.permute.xlu0 %1966
  %1968 = vrot.lane.b32.xlu0 %v1420, 113
  %v1969 = vpop.permute.xlu0 %1968
  %1970 = vrot.lane.b32.xlu0 %v1424, 113
  %v1971 = vpop.permute.xlu0 %1970
  %1972 = vrot.lane.b32.xlu0 %v1428, 113
  %v1973 = vpop.permute.xlu0 %1972
  %1974 = vrot.lane.b32.xlu0 %v1417, 113
  %v1975 = vpop.permute.xlu0 %1974
  %1976 = vrot.lane.b32.xlu0 %v1421, 113
  %v1977 = vpop.permute.xlu0 %1976
  %1978 = vrot.lane.b32.xlu0 %v1425, 113
  %v1979 = vpop.permute.xlu0 %1978
  %1980 = vrot.lane.b32.xlu0 %v1429, 113
  %v1981 = vpop.permute.xlu0 %1980
  %1982 = vrot.lane.b32.xlu0 %v1418, 113
  %v1983 = vpop.permute.xlu0 %1982
  %1984 = vrot.lane.b32.xlu0 %v1422, 113
  %v1985 = vpop.permute.xlu0 %1984
  %1986 = vrot.lane.b32.xlu0 %v1426, 113
  %v1987 = vpop.permute.xlu0 %1986
  %1988 = vrot.lane.b32.xlu0 %v1430, 113
  %v1989 = vpop.permute.xlu0 %1988
  %1990 = vrot.lane.b32.xlu0 %v1419, 113
  %v1991 = vpop.permute.xlu0 %1990
  %1992 = vrot.lane.b32.xlu0 %v1423, 113
  %v1993 = vpop.permute.xlu0 %1992
  %1994 = vrot.lane.b32.xlu0 %v1427, 113
  %v1995 = vpop.permute.xlu0 %1994
  %1996 = vrot.lane.b32.xlu0 %v1431, 113
  %v1997 = vpop.permute.xlu0 %1996
  %v1998 = vsel %vm278, %v1983, %v1991
  %v1999 = vsel %vm278, %v1985, %v1993
  %v2000 = vsel %vm278, %v1987, %v1995
  %v2001 = vsel %vm278, %v1989, %v1997
  %v2002 = vsel %vm278, %v1975, %v1983
  %v2003 = vsel %vm278, %v1977, %v1985
  %v2004 = vsel %vm278, %v1979, %v1987
  %v2005 = vsel %vm278, %v1981, %v1989
  %v2006 = vsel %vm278, %v1967, %v1975
  %v2007 = vsel %vm278, %v1969, %v1977
  %v2008 = vsel %vm278, %v1971, %v1979
  %v2009 = vsel %vm278, %v1973, %v1981
  %v2010 = vsel %vm278, %v1991, %v1967
  %v2011 = vsel %vm278, %v1993, %v1969
  %v2012 = vsel %vm278, %v1995, %v1971
  %v2013 = vsel %vm278, %v1997, %v1973
  %v2014 = vld [vmem:[%s283] ss:$8 sm:$0xf]
  %v2016 = vlaneseq
  %v2017 = vshrl.u32 %v2016, 7
  %v2018 = vsub.s32 0, %v2017
  %v2019 = vrot.slane %v2014, %v2018
  %v2020 = vlaneseq
  %v2021 = vshrl.u32 %v2020, 7
  %v2022 = vsub.s32 1, %v2021
  %v2023 = vrot.slane %v2014, %v2022
  %v2024 = vlaneseq
  %v2025 = vshrl.u32 %v2024, 7
  %v2026 = vsub.s32 2, %v2025
  %v2027 = vrot.slane %v2014, %v2026
  %v2028 = vlaneseq
  %v2029 = vshrl.u32 %v2028, 7
  %v2030 = vsub.s32 3, %v2029
  %v2031 = vrot.slane %v2014, %v2030
  %v2036 = vmul.f32 %v2006, %v2019
  %v2037 = vmul.f32 %v2002, %v2023
  %v2038 = vmul.f32 %v1998, %v2027
  %v2039 = vmul.f32 %v2010, %v2031
  %v2040 = vmul.f32 %v2007, %v2019
  %v2041 = vmul.f32 %v2003, %v2023
  %v2042 = vmul.f32 %v1999, %v2027
  %v2043 = vmul.f32 %v2011, %v2031
  %v2044 = vmul.f32 %v2008, %v2019
  %v2045 = vmul.f32 %v2004, %v2023
  %v2046 = vmul.f32 %v2000, %v2027
  %v2047 = vmul.f32 %v2012, %v2031
  %v2048 = vmul.f32 %v2009, %v2019
  %v2049 = vmul.f32 %v2005, %v2023
  %v2050 = vmul.f32 %v2001, %v2027
  %v2051 = vmul.f32 %v2013, %v2031
  %2052 = vst [vmem:[#allocation2 + $0x300] sm:$0xff] %v2036
  %2053 = vst [vmem:[#allocation2 + $0x308] sm:$0xff] %v2037
  %2054 = vst [vmem:[#allocation2 + $0x310] sm:$0xff] %v2038
  %2055 = vst [vmem:[#allocation2 + $0x318] sm:$0xff] %v2039
  %2056 = vst [vmem:[#allocation2 + $0x320] sm:$0xff] %v2040
  %2057 = vst [vmem:[#allocation2 + $0x328] sm:$0xff] %v2041
  %2058 = vst [vmem:[#allocation2 + $0x330] sm:$0xff] %v2042
  %2059 = vst [vmem:[#allocation2 + $0x338] sm:$0xff] %v2043
  %2060 = vst [vmem:[#allocation2 + $0x340] sm:$0xff] %v2044
  %2061 = vst [vmem:[#allocation2 + $0x348] sm:$0xff] %v2045
  %2062 = vst [vmem:[#allocation2 + $0x350] sm:$0xff] %v2046
  %2063 = vst [vmem:[#allocation2 + $0x358] sm:$0xff] %v2047
  %2064 = vst [vmem:[#allocation2 + $0x360] sm:$0xff] %v2048
  %2065 = vst [vmem:[#allocation2 + $0x368] sm:$0xff] %v2049
  %2066 = vst [vmem:[#allocation2 + $0x370] sm:$0xff] %v2050
  %2067 = vst [vmem:[#allocation2 + $0x378] sm:$0xff] %v2051
  %2068 = vrot.lane.b32.xlu0 %v1416, 112
  %v2069 = vpop.permute.xlu0 %2068
  %2070 = vrot.lane.b32.xlu0 %v1420, 112
  %v2071 = vpop.permute.xlu0 %2070
  %2072 = vrot.lane.b32.xlu0 %v1424, 112
  %v2073 = vpop.permute.xlu0 %2072
  %2074 = vrot.lane.b32.xlu0 %v1428, 112
  %v2075 = vpop.permute.xlu0 %2074
  %2076 = vrot.lane.b32.xlu0 %v1417, 112
  %v2077 = vpop.permute.xlu0 %2076
  %2078 = vrot.lane.b32.xlu0 %v1421, 112
  %v2079 = vpop.permute.xlu0 %2078
  %2080 = vrot.lane.b32.xlu0 %v1425, 112
  %v2081 = vpop.permute.xlu0 %2080
  %2082 = vrot.lane.b32.xlu0 %v1429, 112
  %v2083 = vpop.permute.xlu0 %2082
  %2084 = vrot.lane.b32.xlu0 %v1418, 112
  %v2085 = vpop.permute.xlu0 %2084
  %2086 = vrot.lane.b32.xlu0 %v1422, 112
  %v2087 = vpop.permute.xlu0 %2086
  %2088 = vrot.lane.b32.xlu0 %v1426, 112
  %v2089 = vpop.permute.xlu0 %2088
  %2090 = vrot.lane.b32.xlu0 %v1430, 112
  %v2091 = vpop.permute.xlu0 %2090
  %2092 = vrot.lane.b32.xlu0 %v1419, 112
  %v2093 = vpop.permute.xlu0 %2092
  %2094 = vrot.lane.b32.xlu0 %v1423, 112
  %v2095 = vpop.permute.xlu0 %2094
  %2096 = vrot.lane.b32.xlu0 %v1427, 112
  %v2097 = vpop.permute.xlu0 %2096
  %2098 = vrot.lane.b32.xlu0 %v1431, 112
  %v2099 = vpop.permute.xlu0 %2098
  %v2100 = vsel %vm322, %v2085, %v2093
  %v2101 = vsel %vm322, %v2087, %v2095
  %v2102 = vsel %vm322, %v2089, %v2097
  %v2103 = vsel %vm322, %v2091, %v2099
  %v2104 = vsel %vm322, %v2077, %v2085
  %v2105 = vsel %vm322, %v2079, %v2087
  %v2106 = vsel %vm322, %v2081, %v2089
  %v2107 = vsel %vm322, %v2083, %v2091
  %v2108 = vsel %vm322, %v2069, %v2077
  %v2109 = vsel %vm322, %v2071, %v2079
  %v2110 = vsel %vm322, %v2073, %v2081
  %v2111 = vsel %vm322, %v2075, %v2083
  %v2112 = vsel %vm322, %v2093, %v2069
  %v2113 = vsel %vm322, %v2095, %v2071
  %v2114 = vsel %vm322, %v2097, %v2073
  %v2115 = vsel %vm322, %v2099, %v2075
  %v2116 = vld [vmem:[%s327] ss:$8 sm:$0xf]
  %v2118 = vlaneseq
  %v2119 = vshrl.u32 %v2118, 7
  %v2120 = vsub.s32 0, %v2119
  %v2121 = vrot.slane %v2116, %v2120
  %v2122 = vlaneseq
  %v2123 = vshrl.u32 %v2122, 7
  %v2124 = vsub.s32 1, %v2123
  %v2125 = vrot.slane %v2116, %v2124
  %v2126 = vlaneseq
  %v2127 = vshrl.u32 %v2126, 7
  %v2128 = vsub.s32 2, %v2127
  %v2129 = vrot.slane %v2116, %v2128
  %v2130 = vlaneseq
  %v2131 = vshrl.u32 %v2130, 7
  %v2132 = vsub.s32 3, %v2131
  %v2133 = vrot.slane %v2116, %v2132
  %v2138 = vmul.f32 %v2108, %v2121
  %v2139 = vmul.f32 %v2104, %v2125
  %v2140 = vmul.f32 %v2100, %v2129
  %v2141 = vmul.f32 %v2112, %v2133
  %v2142 = vmul.f32 %v2109, %v2121
  %v2143 = vmul.f32 %v2105, %v2125
  %v2144 = vmul.f32 %v2101, %v2129
  %v2145 = vmul.f32 %v2113, %v2133
  %v2146 = vmul.f32 %v2110, %v2121
  %v2147 = vmul.f32 %v2106, %v2125
  %v2148 = vmul.f32 %v2102, %v2129
  %v2149 = vmul.f32 %v2114, %v2133
  %v2150 = vmul.f32 %v2111, %v2121
  %v2151 = vmul.f32 %v2107, %v2125
  %v2152 = vmul.f32 %v2103, %v2129
  %v2153 = vmul.f32 %v2115, %v2133
  %2154 = vst [vmem:[#allocation2 + $0x380] sm:$0xff] %v2138
  %2155 = vst [vmem:[#allocation2 + $0x388] sm:$0xff] %v2139
  %2156 = vst [vmem:[#allocation2 + $0x390] sm:$0xff] %v2140
  %2157 = vst [vmem:[#allocation2 + $0x398] sm:$0xff] %v2141
  %2158 = vst [vmem:[#allocation2 + $0x3a0] sm:$0xff] %v2142
  %2159 = vst [vmem:[#allocation2 + $0x3a8] sm:$0xff] %v2143
  %2160 = vst [vmem:[#allocation2 + $0x3b0] sm:$0xff] %v2144
  %2161 = vst [vmem:[#allocation2 + $0x3b8] sm:$0xff] %v2145
  %2162 = vst [vmem:[#allocation2 + $0x3c0] sm:$0xff] %v2146
  %2163 = vst [vmem:[#allocation2 + $0x3c8] sm:$0xff] %v2147
  %2164 = vst [vmem:[#allocation2 + $0x3d0] sm:$0xff] %v2148
  %2165 = vst [vmem:[#allocation2 + $0x3d8] sm:$0xff] %v2149
  %2166 = vst [vmem:[#allocation2 + $0x3e0] sm:$0xff] %v2150
  %2167 = vst [vmem:[#allocation2 + $0x3e8] sm:$0xff] %v2151
  %2168 = vst [vmem:[#allocation2 + $0x3f0] sm:$0xff] %v2152
  %2169 = vst [vmem:[#allocation2 + $0x3f8] sm:$0xff] %v2153
  %2170 = vrot.lane.b32.xlu0 %v1416, 111
  %v2171 = vpop.permute.xlu0 %2170
  %2172 = vrot.lane.b32.xlu0 %v1420, 111
  %v2173 = vpop.permute.xlu0 %2172
  %2174 = vrot.lane.b32.xlu0 %v1424, 111
  %v2175 = vpop.permute.xlu0 %2174
  %2176 = vrot.lane.b32.xlu0 %v1428, 111
  %v2177 = vpop.permute.xlu0 %2176
  %2178 = vrot.lane.b32.xlu0 %v1417, 111
  %v2179 = vpop.permute.xlu0 %2178
  %2180 = vrot.lane.b32.xlu0 %v1421, 111
  %v2181 = vpop.permute.xlu0 %2180
  %2182 = vrot.lane.b32.xlu0 %v1425, 111
  %v2183 = vpop.permute.xlu0 %2182
  %2184 = vrot.lane.b32.xlu0 %v1429, 111
  %v2185 = vpop.permute.xlu0 %2184
  %2186 = vrot.lane.b32.xlu0 %v1418, 111
  %v2187 = vpop.permute.xlu0 %2186
  %2188 = vrot.lane.b32.xlu0 %v1422, 111
  %v2189 = vpop.permute.xlu0 %2188
  %2190 = vrot.lane.b32.xlu0 %v1426, 111
  %v2191 = vpop.permute.xlu0 %2190
  %2192 = vrot.lane.b32.xlu0 %v1430, 111
  %v2193 = vpop.permute.xlu0 %2192
  %2194 = vrot.lane.b32.xlu0 %v1419, 111
  %v2195 = vpop.permute.xlu0 %2194
  %2196 = vrot.lane.b32.xlu0 %v1423, 111
  %v2197 = vpop.permute.xlu0 %2196
  %2198 = vrot.lane.b32.xlu0 %v1427, 111
  %v2199 = vpop.permute.xlu0 %2198
  %2200 = vrot.lane.b32.xlu0 %v1431, 111
  %v2201 = vpop.permute.xlu0 %2200
  %v2202 = vsel %vm366, %v2187, %v2195
  %v2203 = vsel %vm366, %v2189, %v2197
  %v2204 = vsel %vm366, %v2191, %v2199
  %v2205 = vsel %vm366, %v2193, %v2201
  %v2206 = vsel %vm366, %v2179, %v2187
  %v2207 = vsel %vm366, %v2181, %v2189
  %v2208 = vsel %vm366, %v2183, %v2191
  %v2209 = vsel %vm366, %v2185, %v2193
  %v2210 = vsel %vm366, %v2171, %v2179
  %v2211 = vsel %vm366, %v2173, %v2181
  %v2212 = vsel %vm366, %v2175, %v2183
  %v2213 = vsel %vm366, %v2177, %v2185
  %v2214 = vsel %vm366, %v2195, %v2171
  %v2215 = vsel %vm366, %v2197, %v2173
  %v2216 = vsel %vm366, %v2199, %v2175
  %v2217 = vsel %vm366, %v2201, %v2177
  %v2218 = vld [vmem:[%s371] ss:$8 sm:$0xf]
  %v2220 = vlaneseq
  %v2221 = vshrl.u32 %v2220, 7
  %v2222 = vsub.s32 0, %v2221
  %v2223 = vrot.slane %v2218, %v2222
  %v2224 = vlaneseq
  %v2225 = vshrl.u32 %v2224, 7
  %v2226 = vsub.s32 1, %v2225
  %v2227 = vrot.slane %v2218, %v2226
  %v2228 = vlaneseq
  %v2229 = vshrl.u32 %v2228, 7
  %v2230 = vsub.s32 2, %v2229
  %v2231 = vrot.slane %v2218, %v2230
  %v2232 = vlaneseq
  %v2233 = vshrl.u32 %v2232, 7
  %v2234 = vsub.s32 3, %v2233
  %v2235 = vrot.slane %v2218, %v2234
  %v2240 = vmul.f32 %v2210, %v2223
  %v2241 = vmul.f32 %v2206, %v2227
  %v2242 = vmul.f32 %v2202, %v2231
  %v2243 = vmul.f32 %v2214, %v2235
  %v2244 = vmul.f32 %v2211, %v2223
  %v2245 = vmul.f32 %v2207, %v2227
  %v2246 = vmul.f32 %v2203, %v2231
  %v2247 = vmul.f32 %v2215, %v2235
  %v2248 = vmul.f32 %v2212, %v2223
  %v2249 = vmul.f32 %v2208, %v2227
  %v2250 = vmul.f32 %v2204, %v2231
  %v2251 = vmul.f32 %v2216, %v2235
  %v2252 = vmul.f32 %v2213, %v2223
  %v2253 = vmul.f32 %v2209, %v2227
  %v2254 = vmul.f32 %v2205, %v2231
  %v2255 = vmul.f32 %v2217, %v2235
  %2256 = vst [vmem:[#allocation2 + $0x400] sm:$0xff] %v2240
  %2257 = vst [vmem:[#allocation2 + $0x408] sm:$0xff] %v2241
  %2258 = vst [vmem:[#allocation2 + $0x410] sm:$0xff] %v2242
  %2259 = vst [vmem:[#allocation2 + $0x418] sm:$0xff] %v2243
  %2260 = vst [vmem:[#allocation2 + $0x420] sm:$0xff] %v2244
  %2261 = vst [vmem:[#allocation2 + $0x428] sm:$0xff] %v2245
  %2262 = vst [vmem:[#allocation2 + $0x430] sm:$0xff] %v2246
  %2263 = vst [vmem:[#allocation2 + $0x438] sm:$0xff] %v2247
  %2264 = vst [vmem:[#allocation2 + $0x440] sm:$0xff] %v2248
  %2265 = vst [vmem:[#allocation2 + $0x448] sm:$0xff] %v2249
  %2266 = vst [vmem:[#allocation2 + $0x450] sm:$0xff] %v2250
  %2267 = vst [vmem:[#allocation2 + $0x458] sm:$0xff] %v2251
  %2268 = vst [vmem:[#allocation2 + $0x460] sm:$0xff] %v2252
  %2269 = vst [vmem:[#allocation2 + $0x468] sm:$0xff] %v2253
  %2270 = vst [vmem:[#allocation2 + $0x470] sm:$0xff] %v2254
  %2271 = vst [vmem:[#allocation2 + $0x478] sm:$0xff] %v2255
  %v2272 = vld [vmem:[#allocation2] sm:$0xff]
  %v2273 = vld [vmem:[#allocation2 + $0x8] sm:$0xff]
  %v2274 = vld [vmem:[#allocation2 + $0x10] sm:$0xff]
  %v2275 = vld [vmem:[#allocation2 + $0x18] sm:$0xff]
  %v2276 = vld [vmem:[#allocation2 + $0x20] sm:$0xff]
  %v2277 = vld [vmem:[#allocation2 + $0x28] sm:$0xff]
  %v2278 = vld [vmem:[#allocation2 + $0x30] sm:$0xff]
  %v2279 = vld [vmem:[#allocation2 + $0x38] sm:$0xff]
  %v2280 = vld [vmem:[#allocation2 + $0x40] sm:$0xff]
  %v2281 = vld [vmem:[#allocation2 + $0x48] sm:$0xff]
  %v2282 = vld [vmem:[#allocation2 + $0x50] sm:$0xff]
  %v2283 = vld [vmem:[#allocation2 + $0x58] sm:$0xff]
  %v2284 = vld [vmem:[#allocation2 + $0x60] sm:$0xff]
  %v2285 = vld [vmem:[#allocation2 + $0x68] sm:$0xff]
  %v2286 = vld [vmem:[#allocation2 + $0x70] sm:$0xff]
  %v2287 = vld [vmem:[#allocation2 + $0x78] sm:$0xff]
  %v2288 = vld [vmem:[#allocation2 + $0x80] sm:$0xff]
  %v2289 = vld [vmem:[#allocation2 + $0x88] sm:$0xff]
  %v2290 = vld [vmem:[#allocation2 + $0x90] sm:$0xff]
  %v2291 = vld [vmem:[#allocation2 + $0x98] sm:$0xff]
  %v2292 = vld [vmem:[#allocation2 + $0xa0] sm:$0xff]
  %v2293 = vld [vmem:[#allocation2 + $0xa8] sm:$0xff]
  %v2294 = vld [vmem:[#allocation2 + $0xb0] sm:$0xff]
  %v2295 = vld [vmem:[#allocation2 + $0xb8] sm:$0xff]
  %v2296 = vld [vmem:[#allocation2 + $0xc0] sm:$0xff]
  %v2297 = vld [vmem:[#allocation2 + $0xc8] sm:$0xff]
  %v2298 = vld [vmem:[#allocation2 + $0xd0] sm:$0xff]
  %v2299 = vld [vmem:[#allocation2 + $0xd8] sm:$0xff]
  %v2300 = vld [vmem:[#allocation2 + $0xe0] sm:$0xff]
  %v2301 = vld [vmem:[#allocation2 + $0xe8] sm:$0xff]
  %v2302 = vld [vmem:[#allocation2 + $0xf0] sm:$0xff]
  %v2303 = vld [vmem:[#allocation2 + $0xf8] sm:$0xff]
  %v2304 = vld [vmem:[#allocation2 + $0x100] sm:$0xff]
  %v2305 = vld [vmem:[#allocation2 + $0x108] sm:$0xff]
  %v2306 = vld [vmem:[#allocation2 + $0x110] sm:$0xff]
  %v2307 = vld [vmem:[#allocation2 + $0x118] sm:$0xff]
  %v2308 = vld [vmem:[#allocation2 + $0x120] sm:$0xff]
  %v2309 = vld [vmem:[#allocation2 + $0x128] sm:$0xff]
  %v2310 = vld [vmem:[#allocation2 + $0x130] sm:$0xff]
  %v2311 = vld [vmem:[#allocation2 + $0x138] sm:$0xff]
  %v2312 = vld [vmem:[#allocation2 + $0x140] sm:$0xff]
  %v2313 = vld [vmem:[#allocation2 + $0x148] sm:$0xff]
  %v2314 = vld [vmem:[#allocation2 + $0x150] sm:$0xff]
  %v2315 = vld [vmem:[#allocation2 + $0x158] sm:$0xff]
  %v2316 = vld [vmem:[#allocation2 + $0x160] sm:$0xff]
  %v2317 = vld [vmem:[#allocation2 + $0x168] sm:$0xff]
  %v2318 = vld [vmem:[#allocation2 + $0x170] sm:$0xff]
  %v2319 = vld [vmem:[#allocation2 + $0x178] sm:$0xff]
  %v2320 = vld [vmem:[#allocation2 + $0x180] sm:$0xff]
  %v2321 = vld [vmem:[#allocation2 + $0x188] sm:$0xff]
  %v2322 = vld [vmem:[#allocation2 + $0x190] sm:$0xff]
  %v2323 = vld [vmem:[#allocation2 + $0x198] sm:$0xff]
  %v2324 = vld [vmem:[#allocation2 + $0x1a0] sm:$0xff]
  %v2325 = vld [vmem:[#allocation2 + $0x1a8] sm:$0xff]
  %v2326 = vld [vmem:[#allocation2 + $0x1b0] sm:$0xff]
  %v2327 = vld [vmem:[#allocation2 + $0x1b8] sm:$0xff]
  %v2328 = vld [vmem:[#allocation2 + $0x1c0] sm:$0xff]
  %v2329 = vld [vmem:[#allocation2 + $0x1c8] sm:$0xff]
  %v2330 = vld [vmem:[#allocation2 + $0x1d0] sm:$0xff]
  %v2331 = vld [vmem:[#allocation2 + $0x1d8] sm:$0xff]
  %v2332 = vld [vmem:[#allocation2 + $0x1e0] sm:$0xff]
  %v2333 = vld [vmem:[#allocation2 + $0x1e8] sm:$0xff]
  %v2334 = vld [vmem:[#allocation2 + $0x1f0] sm:$0xff]
  %v2335 = vld [vmem:[#allocation2 + $0x1f8] sm:$0xff]
  %v2336 = vld [vmem:[#allocation2 + $0x200] sm:$0xff]
  %v2337 = vld [vmem:[#allocation2 + $0x208] sm:$0xff]
  %v2338 = vld [vmem:[#allocation2 + $0x210] sm:$0xff]
  %v2339 = vld [vmem:[#allocation2 + $0x218] sm:$0xff]
  %v2340 = vld [vmem:[#allocation2 + $0x220] sm:$0xff]
  %v2341 = vld [vmem:[#allocation2 + $0x228] sm:$0xff]
  %v2342 = vld [vmem:[#allocation2 + $0x230] sm:$0xff]
  %v2343 = vld [vmem:[#allocation2 + $0x238] sm:$0xff]
  %v2344 = vld [vmem:[#allocation2 + $0x240] sm:$0xff]
  %v2345 = vld [vmem:[#allocation2 + $0x248] sm:$0xff]
  %v2346 = vld [vmem:[#allocation2 + $0x250] sm:$0xff]
  %v2347 = vld [vmem:[#allocation2 + $0x258] sm:$0xff]
  %v2348 = vld [vmem:[#allocation2 + $0x260] sm:$0xff]
  %v2349 = vld [vmem:[#allocation2 + $0x268] sm:$0xff]
  %v2350 = vld [vmem:[#allocation2 + $0x270] sm:$0xff]
  %v2351 = vld [vmem:[#allocation2 + $0x278] sm:$0xff]
  %v2352 = vld [vmem:[#allocation2 + $0x280] sm:$0xff]
  %v2353 = vld [vmem:[#allocation2 + $0x288] sm:$0xff]
  %v2354 = vld [vmem:[#allocation2 + $0x290] sm:$0xff]
  %v2355 = vld [vmem:[#allocation2 + $0x298] sm:$0xff]
  %v2356 = vld [vmem:[#allocation2 + $0x2a0] sm:$0xff]
  %v2357 = vld [vmem:[#allocation2 + $0x2a8] sm:$0xff]
  %v2358 = vld [vmem:[#allocation2 + $0x2b0] sm:$0xff]
  %v2359 = vld [vmem:[#allocation2 + $0x2b8] sm:$0xff]
  %v2360 = vld [vmem:[#allocation2 + $0x2c0] sm:$0xff]
  %v2361 = vld [vmem:[#allocation2 + $0x2c8] sm:$0xff]
  %v2362 = vld [vmem:[#allocation2 + $0x2d0] sm:$0xff]
  %v2363 = vld [vmem:[#allocation2 + $0x2d8] sm:$0xff]
  %v2364 = vld [vmem:[#allocation2 + $0x2e0] sm:$0xff]
  %v2365 = vld [vmem:[#allocation2 + $0x2e8] sm:$0xff]
  %v2366 = vld [vmem:[#allocation2 + $0x2f0] sm:$0xff]
  %v2367 = vld [vmem:[#allocation2 + $0x2f8] sm:$0xff]
  %v2368 = vld [vmem:[#allocation2 + $0x300] sm:$0xff]
  %v2369 = vld [vmem:[#allocation2 + $0x308] sm:$0xff]
  %v2370 = vld [vmem:[#allocation2 + $0x310] sm:$0xff]
  %v2371 = vld [vmem:[#allocation2 + $0x318] sm:$0xff]
  %v2372 = vld [vmem:[#allocation2 + $0x320] sm:$0xff]
  %v2373 = vld [vmem:[#allocation2 + $0x328] sm:$0xff]
  %v2374 = vld [vmem:[#allocation2 + $0x330] sm:$0xff]
  %v2375 = vld [vmem:[#allocation2 + $0x338] sm:$0xff]
  %v2376 = vld [vmem:[#allocation2 + $0x340] sm:$0xff]
  %v2377 = vld [vmem:[#allocation2 + $0x348] sm:$0xff]
  %v2378 = vld [vmem:[#allocation2 + $0x350] sm:$0xff]
  %v2379 = vld [vmem:[#allocation2 + $0x358] sm:$0xff]
  %v2380 = vld [vmem:[#allocation2 + $0x360] sm:$0xff]
  %v2381 = vld [vmem:[#allocation2 + $0x368] sm:$0xff]
  %v2382 = vld [vmem:[#allocation2 + $0x370] sm:$0xff]
  %v2383 = vld [vmem:[#allocation2 + $0x378] sm:$0xff]
  %v2384 = vld [vmem:[#allocation2 + $0x380] sm:$0xff]
  %v2385 = vld [vmem:[#allocation2 + $0x388] sm:$0xff]
  %v2386 = vld [vmem:[#allocation2 + $0x390] sm:$0xff]
  %v2387 = vld [vmem:[#allocation2 + $0x398] sm:$0xff]
  %v2388 = vld [vmem:[#allocation2 + $0x3a0] sm:$0xff]
  %v2389 = vld [vmem:[#allocation2 + $0x3a8] sm:$0xff]
  %v2390 = vld [vmem:[#allocation2 + $0x3b0] sm:$0xff]
  %v2391 = vld [vmem:[#allocation2 + $0x3b8] sm:$0xff]
  %v2392 = vld [vmem:[#allocation2 + $0x3c0] sm:$0xff]
  %v2393 = vld [vmem:[#allocation2 + $0x3c8] sm:$0xff]
  %v2394 = vld [vmem:[#allocation2 + $0x3d0] sm:$0xff]
  %v2395 = vld [vmem:[#allocation2 + $0x3d8] sm:$0xff]
  %v2396 = vld [vmem:[#allocation2 + $0x3e0] sm:$0xff]
  %v2397 = vld [vmem:[#allocation2 + $0x3e8] sm:$0xff]
  %v2398 = vld [vmem:[#allocation2 + $0x3f0] sm:$0xff]
  %v2399 = vld [vmem:[#allocation2 + $0x3f8] sm:$0xff]
  %v2400 = vld [vmem:[#allocation2 + $0x400] sm:$0xff]
  %v2401 = vld [vmem:[#allocation2 + $0x408] sm:$0xff]
  %v2402 = vld [vmem:[#allocation2 + $0x410] sm:$0xff]
  %v2403 = vld [vmem:[#allocation2 + $0x418] sm:$0xff]
  %v2404 = vld [vmem:[#allocation2 + $0x420] sm:$0xff]
  %v2405 = vld [vmem:[#allocation2 + $0x428] sm:$0xff]
  %v2406 = vld [vmem:[#allocation2 + $0x430] sm:$0xff]
  %v2407 = vld [vmem:[#allocation2 + $0x438] sm:$0xff]
  %v2408 = vld [vmem:[#allocation2 + $0x440] sm:$0xff]
  %v2409 = vld [vmem:[#allocation2 + $0x448] sm:$0xff]
  %v2410 = vld [vmem:[#allocation2 + $0x450] sm:$0xff]
  %v2411 = vld [vmem:[#allocation2 + $0x458] sm:$0xff]
  %v2412 = vld [vmem:[#allocation2 + $0x460] sm:$0xff]
  %v2413 = vld [vmem:[#allocation2 + $0x468] sm:$0xff]
  %v2414 = vld [vmem:[#allocation2 + $0x470] sm:$0xff]
  %v2415 = vld [vmem:[#allocation2 + $0x478] sm:$0xff]
  %2417 = vset.pattern.permute.xlu0 0
  %2418 = vperm.xlu0 %2417, %v1438
  %v2419 = vpop.permute.xlu0 %2418
  %2422 = vset.pattern.permute.xlu0 0
  %2423 = vperm.xlu0 %2422, %v1439
  %v2424 = vpop.permute.xlu0 %2423
  %vm2426 = vcmask 261120
  %v2428 = vsel %vm2426, %v1434, 0
  %v2431 = vsel %vm2426, %v1437, 0
  %2433 = vmatprep.subr.mxu0 %v2273
  %2434 = vmatpush1.msra.mxu0 %v2272
  %2435 = vmatprep.subr.mxu0 %v2277
  %2436 = vmatpush1.msra.mxu0 %v2276
  %2437 = vmatprep.subr.mxu0 %v2281
  %2438 = vmatpush1.msra.mxu0 %v2280
  %2439 = vmatprep.subr.mxu0 %v2285
  %2440 = vmatpush1.msra.mxu0 %v2284
  %2441 = vmatprep.subr.mxu0 %v2289
  %2442 = vmatpush1.msra.mxu0 %v2288
  %2443 = vmatprep.subr.mxu0 %v2293
  %2444 = vmatpush1.msra.mxu0 %v2292
  %2445 = vmatprep.subr.mxu0 %v2297
  %2446 = vmatpush1.msra.mxu0 %v2296
  %2447 = vmatprep.subr.mxu0 %v2301
  %2448 = vmatpush1.msra.mxu0 %v2300
  %2449 = vmatprep.subr.mxu0 %v2305
  %2450 = vmatpush1.msra.mxu0 %v2304
  %2451 = vmatprep.subr.mxu0 %v2309
  %2452 = vmatpush1.msra.mxu0 %v2308
  %2453 = vmatprep.subr.mxu0 %v2313
  %2454 = vmatpush1.msra.mxu0 %v2312
  %2455 = vmatprep.subr.mxu0 %v2317
  %2456 = vmatpush1.msra.mxu0 %v2316
  %2457 = vmatprep.subr.mxu0 %v2321
  %2458 = vmatpush1.msra.mxu0 %v2320
  %2459 = vmatprep.subr.mxu0 %v2325
  %2460 = vmatpush1.msra.mxu0 %v2324
  %2461 = vmatprep.subr.mxu0 %v2329
  %2462 = vmatpush1.msra.mxu0 %v2328
  %2463 = vmatprep.subr.mxu0 %v2333
  %2464 = vmatpush1.msra.mxu0 %v2332
  %2465 = vmatprep.subr.mxu0 %v2337
  %2466 = vmatpush1.msra.mxu0 %v2336
  %2467 = vmatprep.subr.mxu0 %v2341
  %2468 = vmatpush1.msra.mxu0 %v2340
  %2469 = vmatprep.subr.mxu0 %v2345
  %2470 = vmatpush1.msra.mxu0 %v2344
  %2471 = vmatprep.subr.mxu0 %v2349
  %2472 = vmatpush1.msra.mxu0 %v2348
  %2473 = vmatprep.subr.mxu0 %v2353
  %2474 = vmatpush1.msra.mxu0 %v2352
  %2475 = vmatprep.subr.mxu0 %v2357
  %2476 = vmatpush1.msra.mxu0 %v2356
  %2477 = vmatprep.subr.mxu0 %v2361
  %2478 = vmatpush1.msra.mxu0 %v2360
  %2479 = vmatprep.subr.mxu0 %v2365
  %2480 = vmatpush1.msra.mxu0 %v2364
  %2481 = vmatprep.subr.mxu0 %v2369
  %2482 = vmatpush1.msra.mxu0 %v2368
  %2483 = vmatprep.subr.mxu0 %v2373
  %2484 = vmatpush1.msra.mxu0 %v2372
  %2485 = vmatprep.subr.mxu0 %v2377
  %2486 = vmatpush1.msra.mxu0 %v2376
  %2487 = vmatprep.subr.mxu0 %v2381
  %2488 = vmatpush1.msra.mxu0 %v2380
  %2489 = vmatprep.subr.mxu0 %v2385
  %2490 = vmatpush1.msra.mxu0 %v2384
  %2491 = vmatprep.subr.mxu0 %v2389
  %2492 = vmatpush1.msra.mxu0 %v2388
  %2493 = vmatprep.subr.mxu0 %v2393
  %2494 = vmatpush1.msra.mxu0 %v2392
  %2495 = vmatprep.subr.mxu0 %v2397
  %2496 = vmatpush1.msra.mxu0 %v2396
  %2497 = vmatprep.mubr.f32.mxu0 %v1433
  %2498 = vmatmul.mubr.f32.gmra.mrb[0].mxu0 %v1432
  %v2499 = vpop.f32.mrb[0].mxu0
  %v2500 = vadd.f32 %v2419, %v2499
  %v2501 = vpop.f32.mrb[0].mxu0
  %v2502 = vadd.f32 %v2419, %v2501
  %2503 = vmatprep.mubr.f32.mxu0 %v1436
  %2504 = vmatmul.mubr.f32.gmra.mrb[0].mxu0 %v1435
  %v2505 = vpop.f32.mrb[0].mxu0
  %v2506 = vadd.f32 %v2424, %v2505
  %v2507 = vpop.f32.mrb[0].mxu0
  %v2508 = vadd.f32 %v2424, %v2507
  %2509 = vdwg.mxu0
  %2510 = vmatprep.subr.mxu0 %v2401
  %2511 = vmatpush1.msra.mxu0 %v2400
  %2512 = vmatprep.subr.mxu0 %v2405
  %2513 = vmatpush1.msra.mxu0 %v2404
  %2514 = vmatprep.subr.mxu0 %v2409
  %2515 = vmatpush1.msra.mxu0 %v2408
  %2516 = vmatprep.subr.mxu0 %v2413
  %2517 = vmatpush1.msra.mxu0 %v2412
  %2518 = vmatprep.subr.mxu0 0.0
  %2519 = vmatpush1.msra.mxu0 0.0
  %2520 = vmatprep.subr.mxu0 0.0
  %2521 = vmatpush1.msra.mxu0 0.0
  %2522 = vmatprep.subr.mxu0 0.0
  %2523 = vmatpush1.msra.mxu0 0.0
  %2524 = vmatprep.subr.mxu0 0.0
  %2525 = vmatpush1.msra.mxu0 0.0
  %2526 = vmatprep.subr.mxu0 0.0
  %2527 = vmatpush1.msra.mxu0 0.0
  %2528 = vmatprep.subr.mxu0 0.0
  %2529 = vmatpush1.msra.mxu0 0.0
  %2530 = vmatprep.subr.mxu0 0.0
  %2531 = vmatpush1.msra.mxu0 0.0
  %2532 = vmatprep.subr.mxu0 0.0
  %2533 = vmatpush1.msra.mxu0 0.0
  %2534 = vmatprep.subr.mxu0 0.0
  %2535 = vmatpush1.msra.mxu0 0.0
  %2536 = vmatprep.subr.mxu0 0.0
  %2537 = vmatpush1.msra.mxu0 0.0
  %2538 = vmatprep.subr.mxu0 0.0
  %2539 = vmatpush1.msra.mxu0 0.0
  %2540 = vmatprep.subr.mxu0 0.0
  %2541 = vmatpush1.msra.mxu0 0.0
  %2542 = vmatprep.subr.mxu0 0.0
  %2543 = vmatpush1.msra.mxu0 0.0
  %2544 = vmatprep.subr.mxu0 0.0
  %2545 = vmatpush1.msra.mxu0 0.0
  %2546 = vmatprep.subr.mxu0 0.0
  %2547 = vmatpush1.msra.mxu0 0.0
  %2548 = vmatprep.subr.mxu0 0.0
  %2549 = vmatpush1.msra.mxu0 0.0
  %2550 = vmatprep.subr.mxu0 0.0
  %2551 = vmatpush1.msra.mxu0 0.0
  %2552 = vmatprep.subr.mxu0 0.0
  %2553 = vmatpush1.msra.mxu0 0.0
  %2554 = vmatprep.subr.mxu0 0.0
  %2555 = vmatpush1.msra.mxu0 0.0
  %2556 = vmatprep.subr.mxu0 0.0
  %2557 = vmatpush1.msra.mxu0 0.0
  %2558 = vmatprep.subr.mxu0 0.0
  %2559 = vmatpush1.msra.mxu0 0.0
  %2560 = vmatprep.subr.mxu0 0.0
  %2561 = vmatpush1.msra.mxu0 0.0
  %2562 = vmatprep.subr.mxu0 0.0
  %2563 = vmatpush1.msra.mxu0 0.0
  %2564 = vmatprep.subr.mxu0 0.0
  %2565 = vmatpush1.msra.mxu0 0.0
  %2566 = vmatprep.subr.mxu0 0.0
  %2567 = vmatpush1.msra.mxu0 0.0
  %2568 = vmatprep.subr.mxu0 0.0
  %2569 = vmatpush1.msra.mxu0 0.0
  %2570 = vmatprep.subr.mxu0 0.0
  %2571 = vmatpush1.msra.mxu0 0.0
  %2572 = vmatprep.subr.mxu0 0.0
  %2573 = vmatpush1.msra.mxu0 0.0
  %2574 = vmatprep.mubr.f32.mxu0 0.0
  %2575 = vmatmul.mubr.f32.gmra.mrb[0].mxu0 %v2428
  %v2576 = vpop.f32.mrb[0].mxu0
  %v2577 = vadd.f32 %v2500, %v2576
  %v2578 = vpop.f32.mrb[0].mxu0
  %v2579 = vadd.f32 %v2502, %v2578
  %2580 = vmatprep.mubr.f32.mxu0 0.0
  %2581 = vmatmul.mubr.f32.gmra.mrb[0].mxu0 %v2431
  %v2582 = vpop.f32.mrb[0].mxu0
  %v2583 = vadd.f32 %v2506, %v2582
  %v2584 = vpop.f32.mrb[0].mxu0
  %v2585 = vadd.f32 %v2508, %v2584
  %2586 = vdwg.mxu0
  %2587 = vmatprep.subr.mxu0 %v2275
  %2588 = vmatpush1.msra.mxu0 %v2274
  %2589 = vmatprep.subr.mxu0 %v2279
  %2590 = vmatpush1.msra.mxu0 %v2278
  %2591 = vmatprep.subr.mxu0 %v2283
  %2592 = vmatpush1.msra.mxu0 %v2282
  %2593 = vmatprep.subr.mxu0 %v2287
  %2594 = vmatpush1.msra.mxu0 %v2286
  %2595 = vmatprep.subr.mxu0 %v2291
  %2596 = vmatpush1.msra.mxu0 %v2290
  %2597 = vmatprep.subr.mxu0 %v2295
  %2598 = vmatpush1.msra.mxu0 %v2294
  %2599 = vmatprep.subr.mxu0 %v2299
  %2600 = vmatpush1.msra.mxu0 %v2298
  %2601 = vmatprep.subr.mxu0 %v2303
  %2602 = vmatpush1.msra.mxu0 %v2302
  %2603 = vmatprep.subr.mxu0 %v2307
  %2604 = vmatpush1.msra.mxu0 %v2306
  %2605 = vmatprep.subr.mxu0 %v2311
  %2606 = vmatpush1.msra.mxu0 %v2310
  %2607 = vmatprep.subr.mxu0 %v2315
  %2608 = vmatpush1.msra.mxu0 %v2314
  %2609 = vmatprep.subr.mxu0 %v2319
  %2610 = vmatpush1.msra.mxu0 %v2318
  %2611 = vmatprep.subr.mxu0 %v2323
  %2612 = vmatpush1.msra.mxu0 %v2322
  %2613 = vmatprep.subr.mxu0 %v2327
  %2614 = vmatpush1.msra.mxu0 %v2326
  %2615 = vmatprep.subr.mxu0 %v2331
  %2616 = vmatpush1.msra.mxu0 %v2330
  %2617 = vmatprep.subr.mxu0 %v2335
  %2618 = vmatpush1.msra.mxu0 %v2334
  %2619 = vmatprep.subr.mxu0 %v2339
  %2620 = vmatpush1.msra.mxu0 %v2338
  %2621 = vmatprep.subr.mxu0 %v2343
  %2622 = vmatpush1.msra.mxu0 %v2342
  %2623 = vmatprep.subr.mxu0 %v2347
  %2624 = vmatpush1.msra.mxu0 %v2346
  %2625 = vmatprep.subr.mxu0 %v2351
  %2626 = vmatpush1.msra.mxu0 %v2350
  %2627 = vmatprep.subr.mxu0 %v2355
  %2628 = vmatpush1.msra.mxu0 %v2354
  %2629 = vmatprep.subr.mxu0 %v2359
  %2630 = vmatpush1.msra.mxu0 %v2358
  %2631 = vmatprep.subr.mxu0 %v2363
  %2632 = vmatpush1.msra.mxu0 %v2362
  %2633 = vmatprep.subr.mxu0 %v2367
  %2634 = vmatpush1.msra.mxu0 %v2366
  %2635 = vmatprep.subr.mxu0 %v2371
  %2636 = vmatpush1.msra.mxu0 %v2370
  %2637 = vmatprep.subr.mxu0 %v2375
  %2638 = vmatpush1.msra.mxu0 %v2374
  %2639 = vmatprep.subr.mxu0 %v2379
  %2640 = vmatpush1.msra.mxu0 %v2378
  %2641 = vmatprep.subr.mxu0 %v2383
  %2642 = vmatpush1.msra.mxu0 %v2382
  %2643 = vmatprep.subr.mxu0 %v2387
  %2644 = vmatpush1.msra.mxu0 %v2386
  %2645 = vmatprep.subr.mxu0 %v2391
  %2646 = vmatpush1.msra.mxu0 %v2390
  %2647 = vmatprep.subr.mxu0 %v2395
  %2648 = vmatpush1.msra.mxu0 %v2394
  %2649 = vmatprep.subr.mxu0 %v2399
  %2650 = vmatpush1.msra.mxu0 %v2398
  %2651 = vmatprep.mubr.f32.mxu0 %v1433
  %2652 = vmatmul.mubr.f32.gmra.mrb[0].mxu0 %v1432
  %v2653 = vpop.f32.mrb[0].mxu0
  %v2654 = vadd.f32 %v2419, %v2653
  %v2655 = vpop.f32.mrb[0].mxu0
  %v2656 = vadd.f32 %v2419, %v2655
  %2657 = vmatprep.mubr.f32.mxu0 %v1436
  %2658 = vmatmul.mubr.f32.gmra.mrb[0].mxu0 %v1435
  %v2659 = vpop.f32.mrb[0].mxu0
  %v2660 = vadd.f32 %v2424, %v2659
  %v2661 = vpop.f32.mrb[0].mxu0
  %v2662 = vadd.f32 %v2424, %v2661
  %2663 = vdwg.mxu0
  %2664 = vmatprep.subr.mxu0 %v2403
  %2665 = vmatpush1.msra.mxu0 %v2402
  %2666 = vmatprep.subr.mxu0 %v2407
  %2667 = vmatpush1.msra.mxu0 %v2406
  %2668 = vmatprep.subr.mxu0 %v2411
  %2669 = vmatpush1.msra.mxu0 %v2410
  %2670 = vmatprep.subr.mxu0 %v2415
  %2671 = vmatpush1.msra.mxu0 %v2414
  %2672 = vmatprep.subr.mxu0 0.0
  %2673 = vmatpush1.msra.mxu0 0.0
  %2674 = vmatprep.subr.mxu0 0.0
  %2675 = vmatpush1.msra.mxu0 0.0
  %2676 = vmatprep.subr.mxu0 0.0
  %2677 = vmatpush1.msra.mxu0 0.0
  %2678 = vmatprep.subr.mxu0 0.0
  %2679 = vmatpush1.msra.mxu0 0.0
  %2680 = vmatprep.subr.mxu0 0.0
  %2681 = vmatpush1.msra.mxu0 0.0
  %2682 = vmatprep.subr.mxu0 0.0
  %2683 = vmatpush1.msra.mxu0 0.0
  %2684 = vmatprep.subr.mxu0 0.0
  %2685 = vmatpush1.msra.mxu0 0.0
  %2686 = vmatprep.subr.mxu0 0.0
  %2687 = vmatpush1.msra.mxu0 0.0
  %2688 = vmatprep.subr.mxu0 0.0
  %2689 = vmatpush1.msra.mxu0 0.0
  %2690 = vmatprep.subr.mxu0 0.0
  %2691 = vmatpush1.msra.mxu0 0.0
  %2692 = vmatprep.subr.mxu0 0.0
  %2693 = vmatpush1.msra.mxu0 0.0
  %2694 = vmatprep.subr.mxu0 0.0
  %2695 = vmatpush1.msra.mxu0 0.0
  %2696 = vmatprep.subr.mxu0 0.0
  %2697 = vmatpush1.msra.mxu0 0.0
  %2698 = vmatprep.subr.mxu0 0.0
  %2699 = vmatpush1.msra.mxu0 0.0
  %2700 = vmatprep.subr.mxu0 0.0
  %2701 = vmatpush1.msra.mxu0 0.0
  %2702 = vmatprep.subr.mxu0 0.0
  %2703 = vmatpush1.msra.mxu0 0.0
  %2704 = vmatprep.subr.mxu0 0.0
  %2705 = vmatpush1.msra.mxu0 0.0
  %2706 = vmatprep.subr.mxu0 0.0
  %2707 = vmatpush1.msra.mxu0 0.0
  %2708 = vmatprep.subr.mxu0 0.0
  %2709 = vmatpush1.msra.mxu0 0.0
  %2710 = vmatprep.subr.mxu0 0.0
  %2711 = vmatpush1.msra.mxu0 0.0
  %2712 = vmatprep.subr.mxu0 0.0
  %2713 = vmatpush1.msra.mxu0 0.0
  %2714 = vmatprep.subr.mxu0 0.0
  %2715 = vmatpush1.msra.mxu0 0.0
  %2716 = vmatprep.subr.mxu0 0.0
  %2717 = vmatpush1.msra.mxu0 0.0
  %2718 = vmatprep.subr.mxu0 0.0
  %2719 = vmatpush1.msra.mxu0 0.0
  %2720 = vmatprep.subr.mxu0 0.0
  %2721 = vmatpush1.msra.mxu0 0.0
  %2722 = vmatprep.subr.mxu0 0.0
  %2723 = vmatpush1.msra.mxu0 0.0
  %2724 = vmatprep.subr.mxu0 0.0
  %2725 = vmatpush1.msra.mxu0 0.0
  %2726 = vmatprep.subr.mxu0 0.0
  %2727 = vmatpush1.msra.mxu0 0.0
  %2728 = vmatprep.mubr.f32.mxu0 0.0
  %2729 = vmatmul.mubr.f32.gmra.mrb[0].mxu0 %v2428
  %v2730 = vpop.f32.mrb[0].mxu0
  %v2731 = vadd.f32 %v2654, %v2730
  %v2732 = vpop.f32.mrb[0].mxu0
  %v2733 = vadd.f32 %v2656, %v2732
  %2734 = vmatprep.mubr.f32.mxu0 0.0
  %2735 = vmatmul.mubr.f32.gmra.mrb[0].mxu0 %v2431
  %v2736 = vpop.f32.mrb[0].mxu0
  %v2737 = vadd.f32 %v2660, %v2736
  %v2738 = vpop.f32.mrb[0].mxu0
  %v2739 = vadd.f32 %v2662, %v2738
  %2740 = vdwg.mxu0
  %v2741 = vmax.f32 %v2577, 0.0
  %v2742 = vmax.f32 %v2579, 0.0
  %v2743 = vmax.f32 %v2731, 0.0
  %v2744 = vmax.f32 %v2733, 0.0
  %v2745 = vmax.f32 %v2583, 0.0
  %v2746 = vmax.f32 %v2585, 0.0
  %v2747 = vmax.f32 %v2737, 0.0
  %v2748 = vmax.f32 %v2739, 0.0
  %v2749 = vld [vmem:[%s8] sm:$0x1]
  %v2750 = vld [vmem:[#allocation3] sm:$0x1]
  %2752 = vset.pattern.permute.xlu0 0
  %2753 = vperm.xlu0 %2752, %v2750
  %v2754 = vpop.permute.xlu0 %2753
  %v2756 = vlaneseq
  %v2757 = vshrl.u32 %v2756, 7
  %v2758 = vsub.s32 0, %v2757
  %v2759 = vrot.slane %v2754, %v2758
  %v2761 = vsel %vm1225, %v2749, 0
  %2763 = vmatprep.subr.mxu0 %v2742
  %2764 = vmatpush1.msra.mxu0 %v2741
  %2765 = vmatprep.subr.mxu0 %v2746
  %2766 = vmatpush1.msra.mxu0 %v2745
  %2767 = vmatprep.subr.mxu0 0.0
  %2768 = vmatpush1.msra.mxu0 0.0
  %2769 = vmatprep.subr.mxu0 0.0
  %2770 = vmatpush1.msra.mxu0 0.0
  %2771 = vmatprep.subr.mxu0 0.0
  %2772 = vmatpush1.msra.mxu0 0.0
  %2773 = vmatprep.subr.mxu0 0.0
  %2774 = vmatpush1.msra.mxu0 0.0
  %2775 = vmatprep.subr.mxu0 0.0
  %2776 = vmatpush1.msra.mxu0 0.0
  %2777 = vmatprep.subr.mxu0 0.0
  %2778 = vmatpush1.msra.mxu0 0.0
  %2779 = vmatprep.subr.mxu0 0.0
  %2780 = vmatpush1.msra.mxu0 0.0
  %2781 = vmatprep.subr.mxu0 0.0
  %2782 = vmatpush1.msra.mxu0 0.0
  %2783 = vmatprep.subr.mxu0 0.0
  %2784 = vmatpush1.msra.mxu0 0.0
  %2785 = vmatprep.subr.mxu0 0.0
  %2786 = vmatpush1.msra.mxu0 0.0
  %2787 = vmatprep.subr.mxu0 0.0
  %2788 = vmatpush1.msra.mxu0 0.0
  %2789 = vmatprep.subr.mxu0 0.0
  %2790 = vmatpush1.msra.mxu0 0.0
  %2791 = vmatprep.subr.mxu0 0.0
  %2792 = vmatpush1.msra.mxu0 0.0
  %2793 = vmatprep.subr.mxu0 0.0
  %2794 = vmatpush1.msra.mxu0 0.0
  %2795 = vmatprep.subr.mxu0 0.0
  %2796 = vmatpush1.msra.mxu0 0.0
  %2797 = vmatprep.subr.mxu0 0.0
  %2798 = vmatpush1.msra.mxu0 0.0
  %2799 = vmatprep.subr.mxu0 0.0
  %2800 = vmatpush1.msra.mxu0 0.0
  %2801 = vmatprep.subr.mxu0 0.0
  %2802 = vmatpush1.msra.mxu0 0.0
  %2803 = vmatprep.subr.mxu0 0.0
  %2804 = vmatpush1.msra.mxu0 0.0
  %2805 = vmatprep.subr.mxu0 0.0
  %2806 = vmatpush1.msra.mxu0 0.0
  %2807 = vmatprep.subr.mxu0 0.0
  %2808 = vmatpush1.msra.mxu0 0.0
  %2809 = vmatprep.subr.mxu0 0.0
  %2810 = vmatpush1.msra.mxu0 0.0
  %2811 = vmatprep.subr.mxu0 0.0
  %2812 = vmatpush1.msra.mxu0 0.0
  %2813 = vmatprep.subr.mxu0 0.0
  %2814 = vmatpush1.msra.mxu0 0.0
  %2815 = vmatprep.subr.mxu0 0.0
  %2816 = vmatpush1.msra.mxu0 0.0
  %2817 = vmatprep.subr.mxu0 0.0
  %2818 = vmatpush1.msra.mxu0 0.0
  %2819 = vmatprep.subr.mxu0 0.0
  %2820 = vmatpush1.msra.mxu0 0.0
  %2821 = vmatprep.subr.mxu0 0.0
  %2822 = vmatpush1.msra.mxu0 0.0
  %2823 = vmatprep.subr.mxu0 0.0
  %2824 = vmatpush1.msra.mxu0 0.0
  %2825 = vmatprep.subr.mxu0 0.0
  %2826 = vmatpush1.msra.mxu0 0.0
  %2827 = vmatprep.mubr.f32.mxu0 0.0
  %2828 = vmatmul.mubr.f32.gmra.mrb[0].mxu0 %v2761
  %v2829 = vpop.f32.mrb[0].mxu0
  %v2830 = vadd.f32 %v2759, %v2829
  %v2831 = vpop.f32.mrb[0].mxu0
  %v2832 = vadd.f32 %v2759, %v2831
  %2833 = vdwg.mxu0
  %2834 = vmatprep.subr.mxu0 %v2744
  %2835 = vmatpush1.msra.mxu0 %v2743
  %2836 = vmatprep.subr.mxu0 %v2748
  %2837 = vmatpush1.msra.mxu0 %v2747
  %2838 = vmatprep.subr.mxu0 0.0
  %2839 = vmatpush1.msra.mxu0 0.0
  %2840 = vmatprep.subr.mxu0 0.0
  %2841 = vmatpush1.msra.mxu0 0.0
  %2842 = vmatprep.subr.mxu0 0.0
  %2843 = vmatpush1.msra.mxu0 0.0
  %2844 = vmatprep.subr.mxu0 0.0
  %2845 = vmatpush1.msra.mxu0 0.0
  %2846 = vmatprep.subr.mxu0 0.0
  %2847 = vmatpush1.msra.mxu0 0.0
  %2848 = vmatprep.subr.mxu0 0.0
  %2849 = vmatpush1.msra.mxu0 0.0
  %2850 = vmatprep.subr.mxu0 0.0
  %2851 = vmatpush1.msra.mxu0 0.0
  %2852 = vmatprep.subr.mxu0 0.0
  %2853 = vmatpush1.msra.mxu0 0.0
  %2854 = vmatprep.subr.mxu0 0.0
  %2855 = vmatpush1.msra.mxu0 0.0
  %2856 = vmatprep.subr.mxu0 0.0
  %2857 = vmatpush1.msra.mxu0 0.0
  %2858 = vmatprep.subr.mxu0 0.0
  %2859 = vmatpush1.msra.mxu0 0.0
  %2860 = vmatprep.subr.mxu0 0.0
  %2861 = vmatpush1.msra.mxu0 0.0
  %2862 = vmatprep.subr.mxu0 0.0
  %2863 = vmatpush1.msra.mxu0 0.0
  %2864 = vmatprep.subr.mxu0 0.0
  %2865 = vmatpush1.msra.mxu0 0.0
  %2866 = vmatprep.subr.mxu0 0.0
  %2867 = vmatpush1.msra.mxu0 0.0
  %2868 = vmatprep.subr.mxu0 0.0
  %2869 = vmatpush1.msra.mxu0 0.0
  %2870 = vmatprep.subr.mxu0 0.0
  %2871 = vmatpush1.msra.mxu0 0.0
  %2872 = vmatprep.subr.mxu0 0.0
  %2873 = vmatpush1.msra.mxu0 0.0
  %2874 = vmatprep.subr.mxu0 0.0
  %2875 = vmatpush1.msra.mxu0 0.0
  %2876 = vmatprep.subr.mxu0 0.0
  %2877 = vmatpush1.msra.mxu0 0.0
  %2878 = vmatprep.subr.mxu0 0.0
  %2879 = vmatpush1.msra.mxu0 0.0
  %2880 = vmatprep.subr.mxu0 0.0
  %2881 = vmatpush1.msra.mxu0 0.0
  %2882 = vmatprep.subr.mxu0 0.0
  %2883 = vmatpush1.msra.mxu0 0.0
  %2884 = vmatprep.subr.mxu0 0.0
  %2885 = vmatpush1.msra.mxu0 0.0
  %2886 = vmatprep.subr.mxu0 0.0
  %2887 = vmatpush1.msra.mxu0 0.0
  %2888 = vmatprep.subr.mxu0 0.0
  %2889 = vmatpush1.msra.mxu0 0.0
  %2890 = vmatprep.subr.mxu0 0.0
  %2891 = vmatpush1.msra.mxu0 0.0
  %2892 = vmatprep.subr.mxu0 0.0
  %2893 = vmatpush1.msra.mxu0 0.0
  %2894 = vmatprep.subr.mxu0 0.0
  %2895 = vmatpush1.msra.mxu0 0.0
  %2896 = vmatprep.subr.mxu0 0.0
  %2897 = vmatpush1.msra.mxu0 0.0
  %2898 = vmatprep.mubr.f32.mxu0 0.0
  %2899 = vmatmul.mubr.f32.gmra.mrb[0].mxu0 %v2761
  %v2900 = vpop.f32.mrb[0].mxu0
  %v2901 = vadd.f32 %v2759, %v2900
  %v2902 = vpop.f32.mrb[0].mxu0
  %v2903 = vadd.f32 %v2759, %v2902
  %2904 = vdwg.mxu0
  %v2905 = vxor.u32 %v2830, 2147483648
  %v2906 = vxor.u32 %v2832, 2147483648
  %v2907 = vxor.u32 %v2901, 2147483648
  %v2908 = vxor.u32 %v2903, 2147483648
  %v2909 = vmul.f32 %v2905, 1.442695
  %v2910 = vpow.pop %v2909
  %v2911 = vmul.f32 %v2906, 1.442695
  %v2912 = vpow.pop %v2911
  %v2913 = vmul.f32 %v2907, 1.442695
  %v2914 = vpow.pop %v2913
  %v2915 = vmul.f32 %v2908, 1.442695
  %v2916 = vpow.pop %v2915
  %v2917 = vadd.f32 %v2910, 1.0
  %v2918 = vadd.f32 %v2912, 1.0
  %v2919 = vadd.f32 %v2914, 1.0
  %v2920 = vadd.f32 %v2916, 1.0
  %v2921 = vrcp.pop %v2917
  %v2922 = vmul.f32 1.0, %v2921
  %v2923 = vrcp.pop %v2918
  %v2924 = vmul.f32 1.0, %v2923
  %v2925 = vrcp.pop %v2919
  %v2926 = vmul.f32 1.0, %v2925
  %v2927 = vrcp.pop %v2920
  %v2928 = vmul.f32 1.0, %v2927
  %v2933 = vcombine.low %v2922, %v2924
  %v2934 = vcombine.low %v2926, %v2928
  %v2936 = vunpack.c.l.s4 1966171168
  %v2937 = vunpack.c.0.s8 %v2936
  %v2938 = vlaneseq
  %v2939 = vshrl.u32 %v2938, 7
  %v2940 = vsub.s32 %v2937, %v2939
  %v2941 = vrot.slane %v2933, %v2940
  %v2943 = vunpack.c.l.s4 1966171168
  %v2944 = vunpack.c.0.s8 %v2943
  %v2945 = vlaneseq
  %v2946 = vshrl.u32 %v2945, 7
  %v2947 = vsub.s32 %v2944, %v2946
  %v2948 = vrot.slane %v2934, %v2947
  %v2949 = vcombine.low %v2941, %v2948
  %v2951 = vunpack.c.l.s4 1966171168
  %v2952 = vunpack.c.0.s8 %v2951
  %v2953 = vlaneseq
  %v2954 = vshrl.u32 %v2953, 7
  %v2955 = vsub.s32 %v2952, %v2954
  %v2956 = vrot.slane %v2949, %v2955
  %v2958 = vlaneseq
  %vm2959 = vcmp.ge.s32.totalorder %v2958, 0
  %vm2960 = vcmp.lt.s32.totalorder %v2958, 512
  %vm2961 = vmand %vm2959, %vm2960
  %2962 = vst.msk [vmem:[%s10] sm:$0xf] %vm2961, %v2956
  // Predicated region
  $region42: #{_simple_unet_forward_impl.1} parent=0 // pred_check
    _
  $region43: #{_simple_unet_forward_impl.1} parent=0 // pred_check_branch
    %2964 = sbr.rel (0) target = $region45
  $region44: #{_simple_unet_forward_impl.1} parent=0 // pred_region
    _
  $region45: #{_simple_unet_forward_impl.1} parent=0 // pred_fallthru
    _
  // Predicated region
  $region46: #{_simple_unet_forward_impl.1} parent=0 // pred_check
    _
  $region47: #{_simple_unet_forward_impl.1} parent=0 // pred_check_branch
    %2966 = sbr.rel (0) target = $region49
  $region48: #{_simple_unet_forward_impl.1} parent=0 // pred_region
    _
  $region49: #{_simple_unet_forward_impl.1} parent=0 // pred_fallthru
    _

</llo_original>
